<compile_context>
chip_gen: v5e
topology: v5e:2x2
jax: 0.10.0
libtpu: 0.0.40
codegen_flags: <defaults>
</compile_context>

<pallas_src>
import functools
import math

import jax
import jax.numpy as jnp
from jax.experimental import pallas as pl
from jax.experimental.pallas import tpu as pltpu

VMEM_LIMIT = 32 * 1024 * 1024  # safe scoped-VMEM budget on v5e/v6e/v7x


def _round_up(x, m):
    return (x + m - 1) // m * m


# ----------------------------------------------------------------------------
# Pallas kernels
# ----------------------------------------------------------------------------
def _mm_bias_kernel(w_ref, p_ref, b_ref, o_ref):
    acc = jnp.dot(w_ref[...], p_ref[...], preferred_element_type=jnp.float32)
    o_ref[...] = acc + b_ref[...]          # f32 epilogue (bias broadcast over lanes)


def matmul_bias(wm, patches, bias):
    """wm: (Cout, K) bf16, patches: (K, M) bf16, bias: (Cout,) f32 -> (Cout, M) f32."""
    Cout, K = wm.shape
    _, M = patches.shape
    Cp = _round_up(Cout, 8)
    TM = 512 if M >= 512 else _round_up(M, 128)
    Mp = _round_up(M, TM)
    if Cp != Cout:
        wm = jnp.pad(wm, ((0, Cp - Cout), (0, 0)))
        bias = jnp.pad(bias, ((0, Cp - Cout),))
    if Mp != M:
        patches = jnp.pad(patches, ((0, 0), (0, Mp - M)))
    out = pl.pallas_call(
        _mm_bias_kernel,
        out_shape=jax.ShapeDtypeStruct((Cp, Mp), jnp.float32),
        grid=(Mp // TM,),
        in_specs=[
            pl.BlockSpec((Cp, K), lambda i: (0, 0)),     # weights resident
            pl.BlockSpec((K, TM), lambda i: (0, i)),     # lane-dense M tiles
            pl.BlockSpec((Cp, 1), lambda i: (0, 0)),
        ],
        out_specs=pl.BlockSpec((Cp, TM), lambda i: (0, i)),  # lane-dense output
        compiler_params=pltpu.CompilerParams(
            dimension_semantics=("parallel",), vmem_limit_bytes=VMEM_LIMIT),
    )(wm, patches, bias.reshape(Cp, 1).astype(jnp.float32))
    return out[:Cout, :M]


def _bn_stats_kernel(x_ref, s_ref, ss_ref):
    @pl.when(pl.program_id(0) == 0)
    def _():
        s_ref[...] = jnp.zeros_like(s_ref)
        ss_ref[...] = jnp.zeros_like(ss_ref)
    x = x_ref[...]                                        # (C, TMB)
    s_ref[...] += jnp.sum(x, axis=-1, keepdims=True)      # per-channel sum
    ss_ref[...] += jnp.sum(x * x, axis=-1, keepdims=True)  # per-channel sumsq


def _bn_apply_kernel(x_ref, s_ref, ss_ref, *rest, inv_count, eps, slope, add_res):
    if add_res:
        r_ref, o_ref = rest
    else:
        (o_ref,) = rest
    x = x_ref[...]                                        # (C, TMB)
    mean = s_ref[...] * inv_count                         # (C, 1)
    var = jnp.maximum(ss_ref[...] * inv_count - mean * mean, 0.0)
    y = (x - mean) * jax.lax.rsqrt(var + eps)
    if add_res:
        y = y + r_ref[...]
    o_ref[...] = jnp.where(y > 0, y, slope * y)           # LeakyReLU(0.2)


def bn_leaky(x, residual=None, slope=0.2, eps=1e-5):
    """Train-mode BatchNorm + optional residual + LeakyReLU.

    x: (C, N, *spatial) channel-major.  Stats over the flattened (N, *spatial) axis.
    """
    shp = x.shape
    C = shp[0]
    M = math.prod(shp[1:])
    xf = x.reshape(C, M)
    TMB = 2048 if M >= 2048 else _round_up(M, 128)
    Mp = _round_up(M, TMB)
    if Mp != M:
        xf = jnp.pad(xf, ((0, 0), (0, Mp - M)))           # zeros: no effect on sums

    # Pass 1: per-channel sum / sumsq accumulated over the M grid.
    s, ss = pl.pallas_call(
        _bn_stats_kernel,
        out_shape=(jax.ShapeDtypeStruct((C, 1), jnp.float32),
                   jax.ShapeDtypeStruct((C, 1), jnp.float32)),
        grid=(Mp // TMB,),
        in_specs=[pl.BlockSpec((C, TMB), lambda i: (0, i))],
        out_specs=(pl.BlockSpec((C, 1), lambda i: (0, 0)),
                   pl.BlockSpec((C, 1), lambda i: (0, 0))),
        compiler_params=pltpu.CompilerParams(
            dimension_semantics=("arbitrary",), vmem_limit_bytes=VMEM_LIMIT),
    )(xf)

    # Pass 2: normalize (+ residual) + LeakyReLU, tiled & parallel over M.
    add_res = residual is not None
    args = [xf, s, ss]
    in_specs = [pl.BlockSpec((C, TMB), lambda i: (0, i)),
                pl.BlockSpec((C, 1), lambda i: (0, 0)),
                pl.BlockSpec((C, 1), lambda i: (0, 0))]
    if add_res:
        rf = residual.reshape(C, M)
        if Mp != M:
            rf = jnp.pad(rf, ((0, 0), (0, Mp - M)))
        args.append(rf)
        in_specs.append(pl.BlockSpec((C, TMB), lambda i: (0, i)))
    out = pl.pallas_call(
        functools.partial(_bn_apply_kernel, inv_count=1.0 / M, eps=eps,
                          slope=slope, add_res=add_res),
        out_shape=jax.ShapeDtypeStruct((C, Mp), jnp.float32),
        grid=(Mp // TMB,),
        in_specs=in_specs,
        out_specs=pl.BlockSpec((C, TMB), lambda i: (0, i)),
        compiler_params=pltpu.CompilerParams(
            dimension_semantics=("parallel",), vmem_limit_bytes=VMEM_LIMIT),
    )(*args)
    return out[:, :M].reshape(shp)


def _soft_argmin_kernel(x_ref, o_ref):
    x = x_ref[...]                                   # (TR, D, W): W on lanes
    neg = -x
    m = jnp.max(neg, axis=1, keepdims=True)          # reduce over D (sublanes)
    e = jnp.exp(neg - m)
    p = e / jnp.sum(e, axis=1, keepdims=True)        # softmax(-x) over D
    d = jax.lax.broadcasted_iota(jnp.int32, x.shape, 1).astype(jnp.float32)
    o_ref[...] = jnp.sum(d * p, axis=1, keepdims=True)   # (TR, 1, W) lane-dense


def soft_argmin(cv):
    """cv: (1, N, H, W, D) channel-major -> (1, N, H, W)."""
    _, N, H, W, D = cv.shape
    x = cv.reshape(N * H, W, D).transpose(0, 2, 1)   # (rows, D, W)
    R = N * H
    TR = 256 if R >= 256 else _round_up(R, 8)
    Rp = _round_up(R, TR)
    if Rp != R:
        x = jnp.pad(x, ((0, Rp - R), (0, 0), (0, 0)))
    out = pl.pallas_call(
        _soft_argmin_kernel,
        out_shape=jax.ShapeDtypeStruct((Rp, 1, W), jnp.float32),
        grid=(Rp // TR,),
        in_specs=[pl.BlockSpec((TR, D, W), lambda i: (i, 0, 0))],
        out_specs=pl.BlockSpec((TR, 1, W), lambda i: (i, 0, 0)),
        compiler_params=pltpu.CompilerParams(
            dimension_semantics=("parallel",), vmem_limit_bytes=VMEM_LIMIT),
    )(x)
    return out[:R, 0, :].reshape(1, N, H, W)


# ----------------------------------------------------------------------------
# Conv wrappers (im2col glue in bf16 around the Pallas matmul kernel)
# ----------------------------------------------------------------------------
def conv2d(x, w, b, stride=1, padding=0, dilation=1):
    """x: (Cin, N, H, W) channel-major; w: (Cout, Cin, kh, kw) -> (Cout, N, Ho, Wo)."""
    Cin, N, H, W = x.shape
    Cout, _, kh, kw = w.shape
    xp = jnp.pad(x, ((0, 0), (0, 0), (padding, padding),
                     (padding, padding))).astype(jnp.bfloat16)
    Ho = (H + 2 * padding - dilation * (kh - 1) - 1) // stride + 1
    Wo = (W + 2 * padding - dilation * (kw - 1) - 1) // stride + 1
    taps = []
    for i in range(kh):
        for j in range(kw):
            taps.append(xp[:, :,
                           i * dilation:i * dilation + (Ho - 1) * stride + 1:stride,
                           j * dilation:j * dilation + (Wo - 1) * stride + 1:stride])
    patches = jnp.stack(taps, axis=1).reshape(Cin * kh * kw, N * Ho * Wo)
    Wm = w.reshape(Cout, Cin * kh * kw).astype(jnp.bfloat16)
    bias = b if b is not None else jnp.zeros((Cout,), jnp.float32)
    out = matmul_bias(Wm, patches, bias)
    return out.reshape(Cout, N, Ho, Wo)


def conv3d(x, w, b):
    """x: (Cin, N, S1, S2, S3); w: (Cout, Cin, 3, 3, 3), stride 1, pad 1."""
    Cin, N, S1, S2, S3 = x.shape
    Cout = w.shape[0]
    xp = jnp.pad(x, ((0, 0), (0, 0), (1, 1), (1, 1), (1, 1))).astype(jnp.bfloat16)
    taps = []
    for i in range(3):
        for j in range(3):
            for l in range(3):
                taps.append(xp[:, :, i:i + S1, j:j + S2, l:l + S3])
    patches = jnp.stack(taps, axis=1).reshape(Cin * 27, N * S1 * S2 * S3)
    Wm = w.reshape(Cout, Cin * 27).astype(jnp.bfloat16)
    bias = b if b is not None else jnp.zeros((Cout,), jnp.float32)
    out = matmul_bias(Wm, patches, bias)
    return out.reshape(Cout, N, S1, S2, S3)


# ----------------------------------------------------------------------------
# StereoNet forward (structure mirrors the PyTorch module; channel-major layout)
# ----------------------------------------------------------------------------
def resblock_fwd(p, x, dilation):
    res = x
    out = conv2d(x, p["w1"], None, stride=1, padding=dilation, dilation=dilation)
    out = bn_leaky(out)
    out = conv2d(out, p["w2"], None, stride=1, padding=dilation, dilation=dilation)
    out = bn_leaky(out, residual=res)
    return out


def feature_extractor_fwd(p, x):
    for c in p["down"]:
        x = conv2d(x, c["w"], c["b"], stride=2, padding=2)
    for rb in p["res"]:
        x = resblock_fwd(rb, x, dilation=1)
    return conv2d(x, p["last"]["w"], p["last"]["b"], stride=1, padding=1)


def cost_volume_fwd(lf, rf, D):
    vols = [lf - rf]
    for d in range(1, D):
        diff = lf[:, :, :, d:] - rf[:, :, :, :-d]
        vols.append(jnp.pad(diff, ((0, 0), (0, 0), (0, 0), (d, 0))))
    return jnp.stack(vols, axis=4)            # (C, N, H, W, D)


def cost_filter_fwd(p, cv):
    x = cv
    for blk in p["blocks"]:
        x = conv3d(x, blk["w"], blk["b"])
        x = bn_leaky(x)
    return conv3d(x, p["last"]["w"], p["last"]["b"])


def refiner_fwd(p, disp, img):
    x = jnp.concatenate([img, disp], axis=0)   # (4, N, h, w)
    x = conv2d(x, p["first"]["w"], p["first"]["b"], padding=1)
    for rb, d in zip(p["res"], (1, 2, 4, 8, 1, 1)):
        x = resblock_fwd(rb, x, dilation=d)
    residual = conv2d(x, p["last"]["w"], p["last"]["b"], padding=1)
    return jax.nn.relu(residual + disp)


def bilinear_ac(x, oh, ow):
    """Bilinear resize, align_corners=True (XLA glue). x: (..., H, W) on last 2 dims."""
    H, W = x.shape[-2], x.shape[-1]
    if oh == H and ow == W:
        return x

    def grid1d(o, i):
        if o == 1:
            return jnp.zeros((1,), jnp.float32)
        return jnp.arange(o, dtype=jnp.float32) * ((i - 1) / (o - 1))

    ys, xs = grid1d(oh, H), grid1d(ow, W)
    y0 = jnp.clip(jnp.floor(ys).astype(jnp.int32), 0, H - 1)
    y1 = jnp.clip(y0 + 1, 0, H - 1)
    wy = ys - y0.astype(jnp.float32)
    x0 = jnp.clip(jnp.floor(xs).astype(jnp.int32), 0, W - 1)
    x1 = jnp.clip(x0 + 1, 0, W - 1)
    wx = xs - x0.astype(jnp.float32)
    top, bot = x[..., y0, :], x[..., y1, :]
    v = top * (1.0 - wy)[None, None, :, None] + bot * wy[None, None, :, None]
    l, r = v[..., x0], v[..., x1]
    return l * (1.0 - wx)[None, None, None, :] + r * wx[None, None, None, :]


def stereonet_fwd(params, left, right, K, dmax, R):
    lt = jnp.transpose(left, (1, 0, 2, 3))     # (3, N, H, W) channel-major
    rt = jnp.transpose(right, (1, 0, 2, 3))
    lf = feature_extractor_fwd(params["fe"], lt)
    rf = feature_extractor_fwd(params["fe"], rt)
    D = dmax // (2 ** K)
    cv = cost_volume_fwd(lf, rf, D)
    cvf = cost_filter_fwd(params["cvf"], cv)           # (1, N, h, w, D)
    disp_coarse = soft_argmin(cvf)                     # (1, N, h, w)

    Hf, Wf = left.shape[2], left.shape[3]
    disp_up = bilinear_ac(disp_coarse, Hf, Wf)
    disp_all = [jax.nn.relu(disp_up)[0] * (2.0 ** K)]
    for i in range(1, R + 1):
        h, w = disp_coarse.shape[2] * 2, disp_coarse.shape[3] * 2
        disp_coarse = bilinear_ac(disp_coarse, h, w) * 2.0
        img_ds = bilinear_ac(lt, h, w)
        disp_coarse = refiner_fwd(params["ref"], disp_coarse, img_ds)
        disp_up = bilinear_ac(disp_coarse, Hf, Wf)
        disp_all.append(jax.nn.relu(disp_up)[0] * (2.0 ** (K - i)))
    return disp_all


# ----------------------------------------------------------------------------
# Deterministic parameter init (synthetic; kaiming-like scales)
# ----------------------------------------------------------------------------
def _conv2d_init(key, cin, cout, k, bias=True):
    std = math.sqrt(2.0 / (cout * k * k))
    w = std * jax.random.normal(key, (cout, cin, k, k), jnp.float32)
    b = jnp.zeros((cout,), jnp.float32) if bias else None
    return {"w": w, "b": b}


def _conv3d_init(key, cin, cout, k):
    std = 1.0 / math.sqrt(cin * k * k * k)
    w = std * jax.random.normal(key, (cout, cin, k, k, k), jnp.float32)
    return {"w": w, "b": jnp.zeros((cout,), jnp.float32)}


def init_stereonet(key, K):
    keys = iter(jax.random.split(key, 64))
    fe = {"down": [], "res": [], "last": None}
    fe["down"].append(_conv2d_init(next(keys), 3, 32, 5))
    for _ in range(1, K):
        fe["down"].append(_conv2d_init(next(keys), 32, 32, 5))
    for _ in range(6):
        fe["res"].append({"w1": _conv2d_init(next(keys), 32, 32, 3, bias=False)["w"],
                          "w2": _conv2d_init(next(keys), 32, 32, 3, bias=False)["w"]})
    fe["last"] = _conv2d_init(next(keys), 32, 32, 3)

    cvf = {"blocks": [], "last": None}
    for _ in range(4):
        cvf["blocks"].append(_conv3d_init(next(keys), 32, 32, 3))
    cvf["last"] = _conv3d_init(next(keys), 32, 1, 3)

    ref = {"first": _conv2d_init(next(keys), 4, 32, 3), "res": [], "last": None}
    for _ in range(6):
        ref["res"].append({"w1": _conv2d_init(next(keys), 32, 32, 3, bias=False)["w"],
                           "w2": _conv2d_init(next(keys), 32, 32, 3, bias=False)["w"]})
    ref["last"] = _conv2d_init(next(keys), 32, 1, 3)
    return {"fe": fe, "cvf": cvf, "ref": ref}


# ----------------------------------------------------------------------------
if __name__ == "__main__":
    K, DMAX, R = 2, 8, 1
    key = jax.random.PRNGKey(0)
    pkey, lkey, rkey = jax.random.split(key, 3)
    params = init_stereonet(pkey, K)
    left = jax.random.normal(lkey, (2, 3, 16, 16), jnp.float32)
    right = jax.random.normal(rkey, (2, 3, 16, 16), jnp.float32)

    fwd = jax.jit(lambda p, l, r: stereonet_fwd(p, l, r, K=K, dmax=DMAX, R=R))
    outs = jax.block_until_ready(fwd(params, left, right))

    assert len(outs) == R + 1
    for o in outs:
        assert o.shape == (2, 16, 16) and o.dtype == jnp.float32
        assert bool(jnp.all(jnp.isfinite(o)))
    print("KERNEL_OK")
</pallas_src>

<mosaic_0001>
module attributes {stable_mosaic.version = 11 : i64} {
  func.func @_mm_bias_kernel(%arg0: i32, %arg1: memref<32x75xbf16, #tpu.memory_space<vmem>>, %arg2: memref<75x128xbf16, #tpu.memory_space<vmem>>, %arg3: memref<32x1xf32, #tpu.memory_space<vmem>>, %arg4: memref<32x128xf32, #tpu.memory_space<vmem>>) attributes {dimension_semantics = [#tpu.dimension_semantics<parallel>], iteration_bounds = array<i64: 1>, scalar_prefetch = 0 : i64, scratch_operands = 0 : i64, tpu.core_type = #tpu.core_type<tc>, window_params = [{pipeline_mode = #tpu.pipeline_mode<synchronous>, transform_indices = @transform_0, window_bounds = array<i64: 32, 75>}, {transform_indices = @transform_1, window_bounds = array<i64: 75, 128>}, {pipeline_mode = #tpu.pipeline_mode<synchronous>, transform_indices = @transform_2, window_bounds = array<i64: 32, 1>}, {transform_indices = @transform_3, window_bounds = array<i64: 32, 128>}]} {
    %c0 = arith.constant 0 : index
    %c0_0 = arith.constant 0 : index
    %0 = vector.load %arg1[%c0, %c0_0] : memref<32x75xbf16, #tpu.memory_space<vmem>>, vector<32x75xbf16>
    %c0_1 = arith.constant 0 : index
    %c0_2 = arith.constant 0 : index
    %1 = vector.load %arg2[%c0_1, %c0_2] : memref<75x128xbf16, #tpu.memory_space<vmem>>, vector<75x128xbf16>
    %cst = arith.constant dense<0.000000e+00> : vector<32x128xf32>
    %2 = tpu.matmul %0, %1, %cst {dimension_numbers = #tpu.dot_dimension_numbers<[1], [0], [0], [1], [0, 0, 1, 1], [], []>} : vector<32x75xbf16>, vector<75x128xbf16>, vector<32x128xf32> -> vector<32x128xf32>
    %c0_3 = arith.constant 0 : index
    %c0_4 = arith.constant 0 : index
    %3 = vector.load %arg3[%c0_3, %c0_4] : memref<32x1xf32, #tpu.memory_space<vmem>>, vector<32x1xf32>
    %4 = vector.broadcast %3 : vector<32x1xf32> to vector<32x128xf32>
    %5 = arith.addf %2, %4 : vector<32x128xf32>
    %c0_5 = arith.constant 0 : index
    %c0_6 = arith.constant 0 : index
    %6 = vector.load %arg4[%c0_5, %c0_6] : memref<32x128xf32, #tpu.memory_space<vmem>>, vector<32x128xf32>
    tpu.vector_store %arg4[%c0_5, %c0_6], %5 {strides = array<i32>} : memref<32x128xf32, #tpu.memory_space<vmem>>, vector<32x128xf32>,
    return
  }
  func.func @transform_0(%arg0: i32) -> (i32, i32) {
    %c0_i32 = arith.constant 0 : i32
    %c0_i32_0 = arith.constant 0 : i32
    %c0_i32_1 = arith.constant 0 : i32
    return %c0_i32, %c0_i32_0 : i32, i32
  }
  func.func @transform_1(%arg0: i32) -> (i32, i32) {
    %c0_i32 = arith.constant 0 : i32
    %c0_i32_0 = arith.constant 0 : i32
    return %c0_i32, %arg0 : i32, i32
  }
  func.func @transform_2(%arg0: i32) -> (i32, i32) {
    %c0_i32 = arith.constant 0 : i32
    %c0_i32_0 = arith.constant 0 : i32
    %c0_i32_1 = arith.constant 0 : i32
    return %c0_i32, %c0_i32_0 : i32, i32
  }
  func.func @transform_3(%arg0: i32) -> (i32, i32) {
    %c0_i32 = arith.constant 0 : i32
    %c0_i32_0 = arith.constant 0 : i32
    return %c0_i32, %arg0 : i32, i32
  }
}

module attributes {stable_mosaic.version = 11 : i64} {
  func.func @_mm_bias_kernel(%arg0: i32, %arg1: memref<32x800xbf16, #tpu.memory_space<vmem>>, %arg2: memref<800x128xbf16, #tpu.memory_space<vmem>>, %arg3: memref<32x1xf32, #tpu.memory_space<vmem>>, %arg4: memref<32x128xf32, #tpu.memory_space<vmem>>) attributes {dimension_semantics = [#tpu.dimension_semantics<parallel>], iteration_bounds = array<i64: 1>, scalar_prefetch = 0 : i64, scratch_operands = 0 : i64, tpu.core_type = #tpu.core_type<tc>, window_params = [{pipeline_mode = #tpu.pipeline_mode<synchronous>, transform_indices = @transform_0, window_bounds = array<i64: 32, 800>}, {transform_indices = @transform_1, window_bounds = array<i64: 800, 128>}, {pipeline_mode = #tpu.pipeline_mode<synchronous>, transform_indices = @transform_2, window_bounds = array<i64: 32, 1>}, {transform_indices = @transform_3, window_bounds = array<i64: 32, 128>}]} {
    %c0 = arith.constant 0 : index
    %c0_0 = arith.constant 0 : index
    %0 = vector.load %arg1[%c0, %c0_0] : memref<32x800xbf16, #tpu.memory_space<vmem>>, vector<32x800xbf16>
    %c0_1 = arith.constant 0 : index
    %c0_2 = arith.constant 0 : index
    %1 = vector.load %arg2[%c0_1, %c0_2] : memref<800x128xbf16, #tpu.memory_space<vmem>>, vector<800x128xbf16>
    %cst = arith.constant dense<0.000000e+00> : vector<32x128xf32>
    %2 = tpu.matmul %0, %1, %cst {dimension_numbers = #tpu.dot_dimension_numbers<[1], [0], [0], [1], [0, 0, 1, 1], [], []>} : vector<32x800xbf16>, vector<800x128xbf16>, vector<32x128xf32> -> vector<32x128xf32>
    %c0_3 = arith.constant 0 : index
    %c0_4 = arith.constant 0 : index
    %3 = vector.load %arg3[%c0_3, %c0_4] : memref<32x1xf32, #tpu.memory_space<vmem>>, vector<32x1xf32>
    %4 = vector.broadcast %3 : vector<32x1xf32> to vector<32x128xf32>
    %5 = arith.addf %2, %4 : vector<32x128xf32>
    %c0_5 = arith.constant 0 : index
    %c0_6 = arith.constant 0 : index
    %6 = vector.load %arg4[%c0_5, %c0_6] : memref<32x128xf32, #tpu.memory_space<vmem>>, vector<32x128xf32>
    tpu.vector_store %arg4[%c0_5, %c0_6], %5 {strides = array<i32>} : memref<32x128xf32, #tpu.memory_space<vmem>>, vector<32x128xf32>,
    return
  }
  func.func @transform_0(%arg0: i32) -> (i32, i32) {
    %c0_i32 = arith.constant 0 : i32
    %c0_i32_0 = arith.constant 0 : i32
    %c0_i32_1 = arith.constant 0 : i32
    return %c0_i32, %c0_i32_0 : i32, i32
  }
  func.func @transform_1(%arg0: i32) -> (i32, i32) {
    %c0_i32 = arith.constant 0 : i32
    %c0_i32_0 = arith.constant 0 : i32
    return %c0_i32, %arg0 : i32, i32
  }
  func.func @transform_2(%arg0: i32) -> (i32, i32) {
    %c0_i32 = arith.constant 0 : i32
    %c0_i32_0 = arith.constant 0 : i32
    %c0_i32_1 = arith.constant 0 : i32
    return %c0_i32, %c0_i32_0 : i32, i32
  }
  func.func @transform_3(%arg0: i32) -> (i32, i32) {
    %c0_i32 = arith.constant 0 : i32
    %c0_i32_0 = arith.constant 0 : i32
    return %c0_i32, %arg0 : i32, i32
  }
}

module attributes {stable_mosaic.version = 11 : i64} {
  func.func @_bn_stats_kernel(%arg0: i32, %arg1: memref<32x128xf32, #tpu.memory_space<vmem>>, %arg2: memref<32x1xf32, #tpu.memory_space<vmem>>, %arg3: memref<32x1xf32, #tpu.memory_space<vmem>>) attributes {dimension_semantics = [#tpu.dimension_semantics<arbitrary>], iteration_bounds = array<i64: 1>, scalar_prefetch = 0 : i64, scratch_operands = 0 : i64, tpu.core_type = #tpu.core_type<tc>, window_params = [{transform_indices = @transform_0, window_bounds = array<i64: 32, 128>}, {pipeline_mode = #tpu.pipeline_mode<synchronous>, transform_indices = @transform_1, window_bounds = array<i64: 32, 1>}, {pipeline_mode = #tpu.pipeline_mode<synchronous>, transform_indices = @transform_2, window_bounds = array<i64: 32, 1>}]} {
    %c0_i32 = arith.constant 0 : i32
    %0 = arith.cmpi eq, %arg0, %c0_i32 : i32
    %1 = arith.extui %0 : i1 to i32
    %c0_i32_0 = arith.constant 0 : i32
    %2 = arith.cmpi ne, %1, %c0_i32_0 : i32
    scf.if %2 {
      %cst_11 = arith.constant 0.000000e+00 : f32
      %15 = vector.broadcast %cst_11 : f32 to vector<32x1xf32>
      %c0_12 = arith.constant 0 : index
      %c0_13 = arith.constant 0 : index
      %16 = vector.load %arg2[%c0_12, %c0_13] : memref<32x1xf32, #tpu.memory_space<vmem>>, vector<32x1xf32>
      tpu.vector_store %arg2[%c0_12, %c0_13], %15 {strides = array<i32>} : memref<32x1xf32, #tpu.memory_space<vmem>>, vector<32x1xf32>,
      %cst_14 = arith.constant 0.000000e+00 : f32
      %17 = vector.broadcast %cst_14 : f32 to vector<32x1xf32>
      %c0_15 = arith.constant 0 : index
      %c0_16 = arith.constant 0 : index
      %18 = vector.load %arg3[%c0_15, %c0_16] : memref<32x1xf32, #tpu.memory_space<vmem>>, vector<32x1xf32>
      tpu.vector_store %arg3[%c0_15, %c0_16], %17 {strides = array<i32>} : memref<32x1xf32, #tpu.memory_space<vmem>>, vector<32x1xf32>,
    } else {
    }
    %c0 = arith.constant 0 : index
    %c0_1 = arith.constant 0 : index
    %3 = vector.load %arg1[%c0, %c0_1] : memref<32x128xf32, #tpu.memory_space<vmem>>, vector<32x128xf32>
    %c0_2 = arith.constant 0 : index
    %c0_3 = arith.constant 0 : index
    %4 = vector.load %arg2[%c0_2, %c0_3] : memref<32x1xf32, #tpu.memory_space<vmem>>, vector<32x1xf32>
    %cst = arith.constant dense<0.000000e+00> : vector<32xf32>
    %5 = vector.multi_reduction <add>, %3, %cst [1] : vector<32x128xf32> to vector<32xf32>
    %6 = vector.shape_cast %5 : vector<32xf32> to vector<32x1xf32>
    %7 = arith.addf %4, %6 : vector<32x1xf32>
    %c0_4 = arith.constant 0 : index
    %c0_5 = arith.constant 0 : index
    %8 = vector.load %arg2[%c0_4, %c0_5] : memref<32x1xf32, #tpu.memory_space<vmem>>, vector<32x1xf32>
    tpu.vector_store %arg2[%c0_4, %c0_5], %7 {strides = array<i32>} : memref<32x1xf32, #tpu.memory_space<vmem>>, vector<32x1xf32>,
    %c0_6 = arith.constant 0 : index
    %c0_7 = arith.constant 0 : index
    %9 = vector.load %arg3[%c0_6, %c0_7] : memref<32x1xf32, #tpu.memory_space<vmem>>, vector<32x1xf32>
    %10 = arith.mulf %3, %3 : vector<32x128xf32>
    %cst_8 = arith.constant dense<0.000000e+00> : vector<32xf32>
    %11 = vector.multi_reduction <add>, %10, %cst_8 [1] : vector<32x128xf32> to vector<32xf32>
    %12 = vector.shape_cast %11 : vector<32xf32> to vector<32x1xf32>
    %13 = arith.addf %9, %12 : vector<32x1xf32>
    %c0_9 = arith.constant 0 : index
    %c0_10 = arith.constant 0 : index
    %14 = vector.load %arg3[%c0_9, %c0_10] : memref<32x1xf32, #tpu.memory_space<vmem>>, vector<32x1xf32>
    tpu.vector_store %arg3[%c0_9, %c0_10], %13 {strides = array<i32>} : memref<32x1xf32, #tpu.memory_space<vmem>>, vector<32x1xf32>,
    return
  }
  func.func @transform_0(%arg0: i32) -> (i32, i32) {
    %c0_i32 = arith.constant 0 : i32
    %c0_i32_0 = arith.constant 0 : i32
    return %c0_i32, %arg0 : i32, i32
  }
  func.func @transform_1(%arg0: i32) -> (i32, i32) {
    %c0_i32 = arith.constant 0 : i32
    %c0_i32_0 = arith.constant 0 : i32
    %c0_i32_1 = arith.constant 0 : i32
    return %c0_i32, %c0_i32_0 : i32, i32
  }
  func.func @transform_2(%arg0: i32) -> (i32, i32) {
    %c0_i32 = arith.constant 0 : i32
    %c0_i32_0 = arith.constant 0 : i32
    %c0_i32_1 = arith.constant 0 : i32
    return %c0_i32, %c0_i32_0 : i32, i32
  }
}

module attributes {stable_mosaic.version = 11 : i64} {
  func.func @_mm_bias_kernel(%arg0: i32, %arg1: memref<32x288xbf16, #tpu.memory_space<vmem>>, %arg2: memref<288x128xbf16, #tpu.memory_space<vmem>>, %arg3: memref<32x1xf32, #tpu.memory_space<vmem>>, %arg4: memref<32x128xf32, #tpu.memory_space<vmem>>) attributes {dimension_semantics = [#tpu.dimension_semantics<parallel>], iteration_bounds = array<i64: 1>, scalar_prefetch = 0 : i64, scratch_operands = 0 : i64, tpu.core_type = #tpu.core_type<tc>, window_params = [{pipeline_mode = #tpu.pipeline_mode<synchronous>, transform_indices = @transform_0, window_bounds = array<i64: 32, 288>}, {transform_indices = @transform_1, window_bounds = array<i64: 288, 128>}, {pipeline_mode = #tpu.pipeline_mode<synchronous>, transform_indices = @transform_2, window_bounds = array<i64: 32, 1>}, {transform_indices = @transform_3, window_bounds = array<i64: 32, 128>}]} {
    %c0 = arith.constant 0 : index
    %c0_0 = arith.constant 0 : index
    %0 = vector.load %arg1[%c0, %c0_0] : memref<32x288xbf16, #tpu.memory_space<vmem>>, vector<32x288xbf16>
    %c0_1 = arith.constant 0 : index
    %c0_2 = arith.constant 0 : index
    %1 = vector.load %arg2[%c0_1, %c0_2] : memref<288x128xbf16, #tpu.memory_space<vmem>>, vector<288x128xbf16>
    %cst = arith.constant dense<0.000000e+00> : vector<32x128xf32>
    %2 = tpu.matmul %0, %1, %cst {dimension_numbers = #tpu.dot_dimension_numbers<[1], [0], [0], [1], [0, 0, 1, 1], [], []>} : vector<32x288xbf16>, vector<288x128xbf16>, vector<32x128xf32> -> vector<32x128xf32>
    %c0_3 = arith.constant 0 : index
    %c0_4 = arith.constant 0 : index
    %3 = vector.load %arg3[%c0_3, %c0_4] : memref<32x1xf32, #tpu.memory_space<vmem>>, vector<32x1xf32>
    %4 = vector.broadcast %3 : vector<32x1xf32> to vector<32x128xf32>
    %5 = arith.addf %2, %4 : vector<32x128xf32>
    %c0_5 = arith.constant 0 : index
    %c0_6 = arith.constant 0 : index
    %6 = vector.load %arg4[%c0_5, %c0_6] : memref<32x128xf32, #tpu.memory_space<vmem>>, vector<32x128xf32>
    tpu.vector_store %arg4[%c0_5, %c0_6], %5 {strides = array<i32>} : memref<32x128xf32, #tpu.memory_space<vmem>>, vector<32x128xf32>,
    return
  }
  func.func @transform_0(%arg0: i32) -> (i32, i32) {
    %c0_i32 = arith.constant 0 : i32
    %c0_i32_0 = arith.constant 0 : i32
    %c0_i32_1 = arith.constant 0 : i32
    return %c0_i32, %c0_i32_0 : i32, i32
  }
  func.func @transform_1(%arg0: i32) -> (i32, i32) {
    %c0_i32 = arith.constant 0 : i32
    %c0_i32_0 = arith.constant 0 : i32
    return %c0_i32, %arg0 : i32, i32
  }
  func.func @transform_2(%arg0: i32) -> (i32, i32) {
    %c0_i32 = arith.constant 0 : i32
    %c0_i32_0 = arith.constant 0 : i32
    %c0_i32_1 = arith.constant 0 : i32
    return %c0_i32, %c0_i32_0 : i32, i32
  }
  func.func @transform_3(%arg0: i32) -> (i32, i32) {
    %c0_i32 = arith.constant 0 : i32
    %c0_i32_0 = arith.constant 0 : i32
    return %c0_i32, %arg0 : i32, i32
  }
}

module attributes {stable_mosaic.version = 11 : i64} {
  func.func @_bn_apply_kernel(%arg0: i32, %arg1: memref<32x128xf32, #tpu.memory_space<vmem>>, %arg2: memref<32x1xf32, #tpu.memory_space<vmem>>, %arg3: memref<32x1xf32, #tpu.memory_space<vmem>>, %arg4: memref<32x128xf32, #tpu.memory_space<vmem>>) attributes {dimension_semantics = [#tpu.dimension_semantics<parallel>], iteration_bounds = array<i64: 1>, scalar_prefetch = 0 : i64, scratch_operands = 0 : i64, tpu.core_type = #tpu.core_type<tc>, window_params = [{transform_indices = @transform_0, window_bounds = array<i64: 32, 128>}, {pipeline_mode = #tpu.pipeline_mode<synchronous>, transform_indices = @transform_1, window_bounds = array<i64: 32, 1>}, {pipeline_mode = #tpu.pipeline_mode<synchronous>, transform_indices = @transform_2, window_bounds = array<i64: 32, 1>}, {transform_indices = @transform_3, window_bounds = array<i64: 32, 128>}]} {
    %c0 = arith.constant 0 : index
    %c0_0 = arith.constant 0 : index
    %0 = vector.load %arg1[%c0, %c0_0] : memref<32x128xf32, #tpu.memory_space<vmem>>, vector<32x128xf32>
    %c0_1 = arith.constant 0 : index
    %c0_2 = arith.constant 0 : index
    %1 = vector.load %arg2[%c0_1, %c0_2] : memref<32x1xf32, #tpu.memory_space<vmem>>, vector<32x1xf32>
    %cst = arith.constant 3.125000e-02 : f32
    %2 = vector.broadcast %cst : f32 to vector<32x1xf32>
    %3 = arith.mulf %1, %2 : vector<32x1xf32>
    %c0_3 = arith.constant 0 : index
    %c0_4 = arith.constant 0 : index
    %4 = vector.load %arg3[%c0_3, %c0_4] : memref<32x1xf32, #tpu.memory_space<vmem>>, vector<32x1xf32>
    %cst_5 = arith.constant 3.125000e-02 : f32
    %5 = vector.broadcast %cst_5 : f32 to vector<32x1xf32>
    %6 = arith.mulf %4, %5 : vector<32x1xf32>
    %7 = arith.mulf %3, %3 : vector<32x1xf32>
    %8 = arith.subf %6, %7 : vector<32x1xf32>
    %cst_6 = arith.constant 0.000000e+00 : f32
    %9 = vector.broadcast %cst_6 : f32 to vector<32x1xf32>
    %10 = arith.maximumf %8, %9 : vector<32x1xf32>
    %11 = vector.broadcast %3 : vector<32x1xf32> to vector<32x128xf32>
    %12 = arith.subf %0, %11 : vector<32x128xf32>
    %cst_7 = arith.constant 9.99999974E-6 : f32
    %13 = vector.broadcast %cst_7 : f32 to vector<32x1xf32>
    %14 = arith.addf %10, %13 : vector<32x1xf32>
    %15 = math.rsqrt %14 : vector<32x1xf32>
    %16 = vector.broadcast %15 : vector<32x1xf32> to vector<32x128xf32>
    %17 = arith.mulf %12, %16 : vector<32x128xf32>
    %cst_8 = arith.constant 0.000000e+00 : f32
    %18 = vector.broadcast %cst_8 : f32 to vector<32x128xf32>
    %19 = arith.cmpf ogt, %17, %18 : vector<32x128xf32>
    %cst_9 = arith.constant 2.000000e-01 : f32
    %20 = vector.broadcast %cst_9 : f32 to vector<32x128xf32>
    %21 = arith.mulf %20, %17 : vector<32x128xf32>
    %22 = arith.select %19, %17, %21 : vector<32x128xi1>, vector<32x128xf32>
    %c0_10 = arith.constant 0 : index
    %c0_11 = arith.constant 0 : index
    %23 = vector.load %arg4[%c0_10, %c0_11] : memref<32x128xf32, #tpu.memory_space<vmem>>, vector<32x128xf32>
    tpu.vector_store %arg4[%c0_10, %c0_11], %22 {strides = array<i32>} : memref<32x128xf32, #tpu.memory_space<vmem>>, vector<32x128xf32>,
    return
  }
  func.func @transform_0(%arg0: i32) -> (i32, i32) {
    %c0_i32 = arith.constant 0 : i32
    %c0_i32_0 = arith.constant 0 : i32
    return %c0_i32, %arg0 : i32, i32
  }
  func.func @transform_1(%arg0: i32) -> (i32, i32) {
    %c0_i32 = arith.constant 0 : i32
    %c0_i32_0 = arith.constant 0 : i32
    %c0_i32_1 = arith.constant 0 : i32
    return %c0_i32, %c0_i32_0 : i32, i32
  }
  func.func @transform_2(%arg0: i32) -> (i32, i32) {
    %c0_i32 = arith.constant 0 : i32
    %c0_i32_0 = arith.constant 0 : i32
    %c0_i32_1 = arith.constant 0 : i32
    return %c0_i32, %c0_i32_0 : i32, i32
  }
  func.func @transform_3(%arg0: i32) -> (i32, i32) {
    %c0_i32 = arith.constant 0 : i32
    %c0_i32_0 = arith.constant 0 : i32
    return %c0_i32, %arg0 : i32, i32
  }
}

module attributes {stable_mosaic.version = 11 : i64} {
  func.func @_bn_apply_kernel(%arg0: i32, %arg1: memref<32x128xf32, #tpu.memory_space<vmem>>, %arg2: memref<32x1xf32, #tpu.memory_space<vmem>>, %arg3: memref<32x1xf32, #tpu.memory_space<vmem>>, %arg4: memref<32x128xf32, #tpu.memory_space<vmem>>, %arg5: memref<32x128xf32, #tpu.memory_space<vmem>>) attributes {dimension_semantics = [#tpu.dimension_semantics<parallel>], iteration_bounds = array<i64: 1>, scalar_prefetch = 0 : i64, scratch_operands = 0 : i64, tpu.core_type = #tpu.core_type<tc>, window_params = [{transform_indices = @transform_0, window_bounds = array<i64: 32, 128>}, {pipeline_mode = #tpu.pipeline_mode<synchronous>, transform_indices = @transform_1, window_bounds = array<i64: 32, 1>}, {pipeline_mode = #tpu.pipeline_mode<synchronous>, transform_indices = @transform_2, window_bounds = array<i64: 32, 1>}, {transform_indices = @transform_3, window_bounds = array<i64: 32, 128>}, {transform_indices = @transform_4, window_bounds = array<i64: 32, 128>}]} {
    %c0 = arith.constant 0 : index
    %c0_0 = arith.constant 0 : index
    %0 = vector.load %arg1[%c0, %c0_0] : memref<32x128xf32, #tpu.memory_space<vmem>>, vector<32x128xf32>
    %c0_1 = arith.constant 0 : index
    %c0_2 = arith.constant 0 : index
    %1 = vector.load %arg2[%c0_1, %c0_2] : memref<32x1xf32, #tpu.memory_space<vmem>>, vector<32x1xf32>
    %cst = arith.constant 3.125000e-02 : f32
    %2 = vector.broadcast %cst : f32 to vector<32x1xf32>
    %3 = arith.mulf %1, %2 : vector<32x1xf32>
    %c0_3 = arith.constant 0 : index
    %c0_4 = arith.constant 0 : index
    %4 = vector.load %arg3[%c0_3, %c0_4] : memref<32x1xf32, #tpu.memory_space<vmem>>, vector<32x1xf32>
    %cst_5 = arith.constant 3.125000e-02 : f32
    %5 = vector.broadcast %cst_5 : f32 to vector<32x1xf32>
    %6 = arith.mulf %4, %5 : vector<32x1xf32>
    %7 = arith.mulf %3, %3 : vector<32x1xf32>
    %8 = arith.subf %6, %7 : vector<32x1xf32>
    %cst_6 = arith.constant 0.000000e+00 : f32
    %9 = vector.broadcast %cst_6 : f32 to vector<32x1xf32>
    %10 = arith.maximumf %8, %9 : vector<32x1xf32>
    %11 = vector.broadcast %3 : vector<32x1xf32> to vector<32x128xf32>
    %12 = arith.subf %0, %11 : vector<32x128xf32>
    %cst_7 = arith.constant 9.99999974E-6 : f32
    %13 = vector.broadcast %cst_7 : f32 to vector<32x1xf32>
    %14 = arith.addf %10, %13 : vector<32x1xf32>
    %15 = math.rsqrt %14 : vector<32x1xf32>
    %16 = vector.broadcast %15 : vector<32x1xf32> to vector<32x128xf32>
    %17 = arith.mulf %12, %16 : vector<32x128xf32>
    %c0_8 = arith.constant 0 : index
    %c0_9 = arith.constant 0 : index
    %18 = vector.load %arg4[%c0_8, %c0_9] : memref<32x128xf32, #tpu.memory_space<vmem>>, vector<32x128xf32>
    %19 = arith.addf %17, %18 : vector<32x128xf32>
    %cst_10 = arith.constant 0.000000e+00 : f32
    %20 = vector.broadcast %cst_10 : f32 to vector<32x128xf32>
    %21 = arith.cmpf ogt, %19, %20 : vector<32x128xf32>
    %cst_11 = arith.constant 2.000000e-01 : f32
    %22 = vector.broadcast %cst_11 : f32 to vector<32x128xf32>
    %23 = arith.mulf %22, %19 : vector<32x128xf32>
    %24 = arith.select %21, %19, %23 : vector<32x128xi1>, vector<32x128xf32>
    %c0_12 = arith.constant 0 : index
    %c0_13 = arith.constant 0 : index
    %25 = vector.load %arg5[%c0_12, %c0_13] : memref<32x128xf32, #tpu.memory_space<vmem>>, vector<32x128xf32>
    tpu.vector_store %arg5[%c0_12, %c0_13], %24 {strides = array<i32>} : memref<32x128xf32, #tpu.memory_space<vmem>>, vector<32x128xf32>,
    return
  }
  func.func @transform_0(%arg0: i32) -> (i32, i32) {
    %c0_i32 = arith.constant 0 : i32
    %c0_i32_0 = arith.constant 0 : i32
    return %c0_i32, %arg0 : i32, i32
  }
  func.func @transform_1(%arg0: i32) -> (i32, i32) {
    %c0_i32 = arith.constant 0 : i32
    %c0_i32_0 = arith.constant 0 : i32
    %c0_i32_1 = arith.constant 0 : i32
    return %c0_i32, %c0_i32_0 : i32, i32
  }
  func.func @transform_2(%arg0: i32) -> (i32, i32) {
    %c0_i32 = arith.constant 0 : i32
    %c0_i32_0 = arith.constant 0 : i32
    %c0_i32_1 = arith.constant 0 : i32
    return %c0_i32, %c0_i32_0 : i32, i32
  }
  func.func @transform_3(%arg0: i32) -> (i32, i32) {
    %c0_i32 = arith.constant 0 : i32
    %c0_i32_0 = arith.constant 0 : i32
    return %c0_i32, %arg0 : i32, i32
  }
  func.func @transform_4(%arg0: i32) -> (i32, i32) {
    %c0_i32 = arith.constant 0 : i32
    %c0_i32_0 = arith.constant 0 : i32
    return %c0_i32, %arg0 : i32, i32
  }
}

module attributes {stable_mosaic.version = 11 : i64} {
  func.func @_mm_bias_kernel(%arg0: i32, %arg1: memref<32x864xbf16, #tpu.memory_space<vmem>>, %arg2: memref<864x128xbf16, #tpu.memory_space<vmem>>, %arg3: memref<32x1xf32, #tpu.memory_space<vmem>>, %arg4: memref<32x128xf32, #tpu.memory_space<vmem>>) attributes {dimension_semantics = [#tpu.dimension_semantics<parallel>], iteration_bounds = array<i64: 1>, scalar_prefetch = 0 : i64, scratch_operands = 0 : i64, tpu.core_type = #tpu.core_type<tc>, window_params = [{pipeline_mode = #tpu.pipeline_mode<synchronous>, transform_indices = @transform_0, window_bounds = array<i64: 32, 864>}, {transform_indices = @transform_1, window_bounds = array<i64: 864, 128>}, {pipeline_mode = #tpu.pipeline_mode<synchronous>, transform_indices = @transform_2, window_bounds = array<i64: 32, 1>}, {transform_indices = @transform_3, window_bounds = array<i64: 32, 128>}]} {
    %c0 = arith.constant 0 : index
    %c0_0 = arith.constant 0 : index
    %0 = vector.load %arg1[%c0, %c0_0] : memref<32x864xbf16, #tpu.memory_space<vmem>>, vector<32x864xbf16>
    %c0_1 = arith.constant 0 : index
    %c0_2 = arith.constant 0 : index
    %1 = vector.load %arg2[%c0_1, %c0_2] : memref<864x128xbf16, #tpu.memory_space<vmem>>, vector<864x128xbf16>
    %cst = arith.constant dense<0.000000e+00> : vector<32x128xf32>
    %2 = tpu.matmul %0, %1, %cst {dimension_numbers = #tpu.dot_dimension_numbers<[1], [0], [0], [1], [0, 0, 1, 1], [], []>} : vector<32x864xbf16>, vector<864x128xbf16>, vector<32x128xf32> -> vector<32x128xf32>
    %c0_3 = arith.constant 0 : index
    %c0_4 = arith.constant 0 : index
    %3 = vector.load %arg3[%c0_3, %c0_4] : memref<32x1xf32, #tpu.memory_space<vmem>>, vector<32x1xf32>
    %4 = vector.broadcast %3 : vector<32x1xf32> to vector<32x128xf32>
    %5 = arith.addf %2, %4 : vector<32x128xf32>
    %c0_5 = arith.constant 0 : index
    %c0_6 = arith.constant 0 : index
    %6 = vector.load %arg4[%c0_5, %c0_6] : memref<32x128xf32, #tpu.memory_space<vmem>>, vector<32x128xf32>
    tpu.vector_store %arg4[%c0_5, %c0_6], %5 {strides = array<i32>} : memref<32x128xf32, #tpu.memory_space<vmem>>, vector<32x128xf32>,
    return
  }
  func.func @transform_0(%arg0: i32) -> (i32, i32) {
    %c0_i32 = arith.constant 0 : i32
    %c0_i32_0 = arith.constant 0 : i32
    %c0_i32_1 = arith.constant 0 : i32
    return %c0_i32, %c0_i32_0 : i32, i32
  }
  func.func @transform_1(%arg0: i32) -> (i32, i32) {
    %c0_i32 = arith.constant 0 : i32
    %c0_i32_0 = arith.constant 0 : i32
    return %c0_i32, %arg0 : i32, i32
  }
  func.func @transform_2(%arg0: i32) -> (i32, i32) {
    %c0_i32 = arith.constant 0 : i32
    %c0_i32_0 = arith.constant 0 : i32
    %c0_i32_1 = arith.constant 0 : i32
    return %c0_i32, %c0_i32_0 : i32, i32
  }
  func.func @transform_3(%arg0: i32) -> (i32, i32) {
    %c0_i32 = arith.constant 0 : i32
    %c0_i32_0 = arith.constant 0 : i32
    return %c0_i32, %arg0 : i32, i32
  }
}

module attributes {stable_mosaic.version = 11 : i64} {
  func.func @_bn_apply_kernel(%arg0: i32, %arg1: memref<32x128xf32, #tpu.memory_space<vmem>>, %arg2: memref<32x1xf32, #tpu.memory_space<vmem>>, %arg3: memref<32x1xf32, #tpu.memory_space<vmem>>, %arg4: memref<32x128xf32, #tpu.memory_space<vmem>>) attributes {dimension_semantics = [#tpu.dimension_semantics<parallel>], iteration_bounds = array<i64: 1>, scalar_prefetch = 0 : i64, scratch_operands = 0 : i64, tpu.core_type = #tpu.core_type<tc>, window_params = [{transform_indices = @transform_0, window_bounds = array<i64: 32, 128>}, {pipeline_mode = #tpu.pipeline_mode<synchronous>, transform_indices = @transform_1, window_bounds = array<i64: 32, 1>}, {pipeline_mode = #tpu.pipeline_mode<synchronous>, transform_indices = @transform_2, window_bounds = array<i64: 32, 1>}, {transform_indices = @transform_3, window_bounds = array<i64: 32, 128>}]} {
    %c0 = arith.constant 0 : index
    %c0_0 = arith.constant 0 : index
    %0 = vector.load %arg1[%c0, %c0_0] : memref<32x128xf32, #tpu.memory_space<vmem>>, vector<32x128xf32>
    %c0_1 = arith.constant 0 : index
    %c0_2 = arith.constant 0 : index
    %1 = vector.load %arg2[%c0_1, %c0_2] : memref<32x1xf32, #tpu.memory_space<vmem>>, vector<32x1xf32>
    %cst = arith.constant 1.562500e-02 : f32
    %2 = vector.broadcast %cst : f32 to vector<32x1xf32>
    %3 = arith.mulf %1, %2 : vector<32x1xf32>
    %c0_3 = arith.constant 0 : index
    %c0_4 = arith.constant 0 : index
    %4 = vector.load %arg3[%c0_3, %c0_4] : memref<32x1xf32, #tpu.memory_space<vmem>>, vector<32x1xf32>
    %cst_5 = arith.constant 1.562500e-02 : f32
    %5 = vector.broadcast %cst_5 : f32 to vector<32x1xf32>
    %6 = arith.mulf %4, %5 : vector<32x1xf32>
    %7 = arith.mulf %3, %3 : vector<32x1xf32>
    %8 = arith.subf %6, %7 : vector<32x1xf32>
    %cst_6 = arith.constant 0.000000e+00 : f32
    %9 = vector.broadcast %cst_6 : f32 to vector<32x1xf32>
    %10 = arith.maximumf %8, %9 : vector<32x1xf32>
    %11 = vector.broadcast %3 : vector<32x1xf32> to vector<32x128xf32>
    %12 = arith.subf %0, %11 : vector<32x128xf32>
    %cst_7 = arith.constant 9.99999974E-6 : f32
    %13 = vector.broadcast %cst_7 : f32 to vector<32x1xf32>
    %14 = arith.addf %10, %13 : vector<32x1xf32>
    %15 = math.rsqrt %14 : vector<32x1xf32>
    %16 = vector.broadcast %15 : vector<32x1xf32> to vector<32x128xf32>
    %17 = arith.mulf %12, %16 : vector<32x128xf32>
    %cst_8 = arith.constant 0.000000e+00 : f32
    %18 = vector.broadcast %cst_8 : f32 to vector<32x128xf32>
    %19 = arith.cmpf ogt, %17, %18 : vector<32x128xf32>
    %cst_9 = arith.constant 2.000000e-01 : f32
    %20 = vector.broadcast %cst_9 : f32 to vector<32x128xf32>
    %21 = arith.mulf %20, %17 : vector<32x128xf32>
    %22 = arith.select %19, %17, %21 : vector<32x128xi1>, vector<32x128xf32>
    %c0_10 = arith.constant 0 : index
    %c0_11 = arith.constant 0 : index
    %23 = vector.load %arg4[%c0_10, %c0_11] : memref<32x128xf32, #tpu.memory_space<vmem>>, vector<32x128xf32>
    tpu.vector_store %arg4[%c0_10, %c0_11], %22 {strides = array<i32>} : memref<32x128xf32, #tpu.memory_space<vmem>>, vector<32x128xf32>,
    return
  }
  func.func @transform_0(%arg0: i32) -> (i32, i32) {
    %c0_i32 = arith.constant 0 : i32
    %c0_i32_0 = arith.constant 0 : i32
    return %c0_i32, %arg0 : i32, i32
  }
  func.func @transform_1(%arg0: i32) -> (i32, i32) {
    %c0_i32 = arith.constant 0 : i32
    %c0_i32_0 = arith.constant 0 : i32
    %c0_i32_1 = arith.constant 0 : i32
    return %c0_i32, %c0_i32_0 : i32, i32
  }
  func.func @transform_2(%arg0: i32) -> (i32, i32) {
    %c0_i32 = arith.constant 0 : i32
    %c0_i32_0 = arith.constant 0 : i32
    %c0_i32_1 = arith.constant 0 : i32
    return %c0_i32, %c0_i32_0 : i32, i32
  }
  func.func @transform_3(%arg0: i32) -> (i32, i32) {
    %c0_i32 = arith.constant 0 : i32
    %c0_i32_0 = arith.constant 0 : i32
    return %c0_i32, %arg0 : i32, i32
  }
}

module attributes {stable_mosaic.version = 11 : i64} {
  func.func @_mm_bias_kernel(%arg0: i32, %arg1: memref<8x864xbf16, #tpu.memory_space<vmem>>, %arg2: memref<864x128xbf16, #tpu.memory_space<vmem>>, %arg3: memref<8x1xf32, #tpu.memory_space<vmem>>, %arg4: memref<8x128xf32, #tpu.memory_space<vmem>>) attributes {dimension_semantics = [#tpu.dimension_semantics<parallel>], iteration_bounds = array<i64: 1>, scalar_prefetch = 0 : i64, scratch_operands = 0 : i64, tpu.core_type = #tpu.core_type<tc>, window_params = [{pipeline_mode = #tpu.pipeline_mode<synchronous>, transform_indices = @transform_0, window_bounds = array<i64: 8, 864>}, {transform_indices = @transform_1, window_bounds = array<i64: 864, 128>}, {pipeline_mode = #tpu.pipeline_mode<synchronous>, transform_indices = @transform_2, window_bounds = array<i64: 8, 1>}, {transform_indices = @transform_3, window_bounds = array<i64: 8, 128>}]} {
    %c0 = arith.constant 0 : index
    %c0_0 = arith.constant 0 : index
    %0 = vector.load %arg1[%c0, %c0_0] : memref<8x864xbf16, #tpu.memory_space<vmem>>, vector<8x864xbf16>
    %c0_1 = arith.constant 0 : index
    %c0_2 = arith.constant 0 : index
    %1 = vector.load %arg2[%c0_1, %c0_2] : memref<864x128xbf16, #tpu.memory_space<vmem>>, vector<864x128xbf16>
    %cst = arith.constant dense<0.000000e+00> : vector<8x128xf32>
    %2 = tpu.matmul %0, %1, %cst {dimension_numbers = #tpu.dot_dimension_numbers<[1], [0], [0], [1], [0, 0, 1, 1], [], []>} : vector<8x864xbf16>, vector<864x128xbf16>, vector<8x128xf32> -> vector<8x128xf32>
    %c0_3 = arith.constant 0 : index
    %c0_4 = arith.constant 0 : index
    %3 = vector.load %arg3[%c0_3, %c0_4] : memref<8x1xf32, #tpu.memory_space<vmem>>, vector<8x1xf32>
    %4 = vector.broadcast %3 : vector<8x1xf32> to vector<8x128xf32>
    %5 = arith.addf %2, %4 : vector<8x128xf32>
    %c0_5 = arith.constant 0 : index
    %c0_6 = arith.constant 0 : index
    %6 = vector.load %arg4[%c0_5, %c0_6] : memref<8x128xf32, #tpu.memory_space<vmem>>, vector<8x128xf32>
    tpu.vector_store %arg4[%c0_5, %c0_6], %5 {strides = array<i32>} : memref<8x128xf32, #tpu.memory_space<vmem>>, vector<8x128xf32>,
    return
  }
  func.func @transform_0(%arg0: i32) -> (i32, i32) {
    %c0_i32 = arith.constant 0 : i32
    %c0_i32_0 = arith.constant 0 : i32
    %c0_i32_1 = arith.constant 0 : i32
    return %c0_i32, %c0_i32_0 : i32, i32
  }
  func.func @transform_1(%arg0: i32) -> (i32, i32) {
    %c0_i32 = arith.constant 0 : i32
    %c0_i32_0 = arith.constant 0 : i32
    return %c0_i32, %arg0 : i32, i32
  }
  func.func @transform_2(%arg0: i32) -> (i32, i32) {
    %c0_i32 = arith.constant 0 : i32
    %c0_i32_0 = arith.constant 0 : i32
    %c0_i32_1 = arith.constant 0 : i32
    return %c0_i32, %c0_i32_0 : i32, i32
  }
  func.func @transform_3(%arg0: i32) -> (i32, i32) {
    %c0_i32 = arith.constant 0 : i32
    %c0_i32_0 = arith.constant 0 : i32
    return %c0_i32, %arg0 : i32, i32
  }
}

module attributes {stable_mosaic.version = 11 : i64} {
  func.func @_soft_argmin_kernel(%arg0: i32, %arg1: memref<8x2x4xf32, #tpu.memory_space<vmem>>, %arg2: memref<8x1x4xf32, #tpu.memory_space<vmem>>) attributes {dimension_semantics = [#tpu.dimension_semantics<parallel>], iteration_bounds = array<i64: 1>, scalar_prefetch = 0 : i64, scratch_operands = 0 : i64, tpu.core_type = #tpu.core_type<tc>, window_params = [{transform_indices = @transform_0, window_bounds = array<i64: 8, 2, 4>}, {transform_indices = @transform_1, window_bounds = array<i64: 8, 1, 4>}]} {
    %c0 = arith.constant 0 : index
    %c0_0 = arith.constant 0 : index
    %c0_1 = arith.constant 0 : index
    %0 = vector.load %arg1[%c0, %c0_0, %c0_1] : memref<8x2x4xf32, #tpu.memory_space<vmem>>, vector<8x2x4xf32>
    %cst = arith.constant 0.000000e+00 : f32
    %1 = vector.broadcast %cst : f32 to vector<8x2x4xf32>
    %2 = arith.subf %1, %0 : vector<8x2x4xf32>
    %cst_2 = arith.constant dense<0xFF800000> : vector<8x4xf32>
    %3 = vector.multi_reduction <maximumf>, %2, %cst_2 [1] : vector<8x2x4xf32> to vector<8x4xf32>
    %4 = vector.shape_cast %3 : vector<8x4xf32> to vector<8x1x4xf32>
    %5 = vector.broadcast %4 : vector<8x1x4xf32> to vector<8x2x4xf32>
    %6 = arith.subf %2, %5 : vector<8x2x4xf32>
    %7 = math.exp %6 : vector<8x2x4xf32>
    %cst_3 = arith.constant dense<0.000000e+00> : vector<8x4xf32>
    %8 = vector.multi_reduction <add>, %7, %cst_3 [1] : vector<8x2x4xf32> to vector<8x4xf32>
    %9 = vector.shape_cast %8 : vector<8x4xf32> to vector<8x1x4xf32>
    %10 = vector.broadcast %9 : vector<8x1x4xf32> to vector<8x2x4xf32>
    %11 = arith.divf %7, %10 : vector<8x2x4xf32>
    %12 = tpu.iota {dimensions = array<i32: 1>} : vector<8x2x4xi32>
    %13 = arith.sitofp %12 : vector<8x2x4xi32> to vector<8x2x4xf32>
    %14 = arith.mulf %13, %11 : vector<8x2x4xf32>
    %cst_4 = arith.constant dense<0.000000e+00> : vector<8x4xf32>
    %15 = vector.multi_reduction <add>, %14, %cst_4 [1] : vector<8x2x4xf32> to vector<8x4xf32>
    %16 = vector.shape_cast %15 : vector<8x4xf32> to vector<8x1x4xf32>
    %c0_5 = arith.constant 0 : index
    %c0_6 = arith.constant 0 : index
    %c0_7 = arith.constant 0 : index
    %17 = vector.load %arg2[%c0_5, %c0_6, %c0_7] : memref<8x1x4xf32, #tpu.memory_space<vmem>>, vector<8x1x4xf32>
    tpu.vector_store %arg2[%c0_5, %c0_6, %c0_7], %16 {strides = array<i32>} : memref<8x1x4xf32, #tpu.memory_space<vmem>>, vector<8x1x4xf32>,
    return
  }
  func.func @transform_0(%arg0: i32) -> (i32, i32, i32) {
    %c0_i32 = arith.constant 0 : i32
    %c0_i32_0 = arith.constant 0 : i32
    %c0_i32_1 = arith.constant 0 : i32
    return %arg0, %c0_i32, %c0_i32_0 : i32, i32, i32
  }
  func.func @transform_1(%arg0: i32) -> (i32, i32, i32) {
    %c0_i32 = arith.constant 0 : i32
    %c0_i32_0 = arith.constant 0 : i32
    %c0_i32_1 = arith.constant 0 : i32
    return %arg0, %c0_i32, %c0_i32_0 : i32, i32, i32
  }
}

module attributes {stable_mosaic.version = 11 : i64} {
  func.func @_mm_bias_kernel(%arg0: i32, %arg1: memref<32x36xbf16, #tpu.memory_space<vmem>>, %arg2: memref<36x128xbf16, #tpu.memory_space<vmem>>, %arg3: memref<32x1xf32, #tpu.memory_space<vmem>>, %arg4: memref<32x128xf32, #tpu.memory_space<vmem>>) attributes {dimension_semantics = [#tpu.dimension_semantics<parallel>], iteration_bounds = array<i64: 1>, scalar_prefetch = 0 : i64, scratch_operands = 0 : i64, tpu.core_type = #tpu.core_type<tc>, window_params = [{pipeline_mode = #tpu.pipeline_mode<synchronous>, transform_indices = @transform_0, window_bounds = array<i64: 32, 36>}, {transform_indices = @transform_1, window_bounds = array<i64: 36, 128>}, {pipeline_mode = #tpu.pipeline_mode<synchronous>, transform_indices = @transform_2, window_bounds = array<i64: 32, 1>}, {transform_indices = @transform_3, window_bounds = array<i64: 32, 128>}]} {
    %c0 = arith.constant 0 : index
    %c0_0 = arith.constant 0 : index
    %0 = vector.load %arg1[%c0, %c0_0] : memref<32x36xbf16, #tpu.memory_space<vmem>>, vector<32x36xbf16>
    %c0_1 = arith.constant 0 : index
    %c0_2 = arith.constant 0 : index
    %1 = vector.load %arg2[%c0_1, %c0_2] : memref<36x128xbf16, #tpu.memory_space<vmem>>, vector<36x128xbf16>
    %cst = arith.constant dense<0.000000e+00> : vector<32x128xf32>
    %2 = tpu.matmul %0, %1, %cst {dimension_numbers = #tpu.dot_dimension_numbers<[1], [0], [0], [1], [0, 0, 1, 1], [], []>} : vector<32x36xbf16>, vector<36x128xbf16>, vector<32x128xf32> -> vector<32x128xf32>
    %c0_3 = arith.constant 0 : index
    %c0_4 = arith.constant 0 : index
    %3 = vector.load %arg3[%c0_3, %c0_4] : memref<32x1xf32, #tpu.memory_space<vmem>>, vector<32x1xf32>
    %4 = vector.broadcast %3 : vector<32x1xf32> to vector<32x128xf32>
    %5 = arith.addf %2, %4 : vector<32x128xf32>
    %c0_5 = arith.constant 0 : index
    %c0_6 = arith.constant 0 : index
    %6 = vector.load %arg4[%c0_5, %c0_6] : memref<32x128xf32, #tpu.memory_space<vmem>>, vector<32x128xf32>
    tpu.vector_store %arg4[%c0_5, %c0_6], %5 {strides = array<i32>} : memref<32x128xf32, #tpu.memory_space<vmem>>, vector<32x128xf32>,
    return
  }
  func.func @transform_0(%arg0: i32) -> (i32, i32) {
    %c0_i32 = arith.constant 0 : i32
    %c0_i32_0 = arith.constant 0 : i32
    %c0_i32_1 = arith.constant 0 : i32
    return %c0_i32, %c0_i32_0 : i32, i32
  }
  func.func @transform_1(%arg0: i32) -> (i32, i32) {
    %c0_i32 = arith.constant 0 : i32
    %c0_i32_0 = arith.constant 0 : i32
    return %c0_i32, %arg0 : i32, i32
  }
  func.func @transform_2(%arg0: i32) -> (i32, i32) {
    %c0_i32 = arith.constant 0 : i32
    %c0_i32_0 = arith.constant 0 : i32
    %c0_i32_1 = arith.constant 0 : i32
    return %c0_i32, %c0_i32_0 : i32, i32
  }
  func.func @transform_3(%arg0: i32) -> (i32, i32) {
    %c0_i32 = arith.constant 0 : i32
    %c0_i32_0 = arith.constant 0 : i32
    return %c0_i32, %arg0 : i32, i32
  }
}

module attributes {stable_mosaic.version = 11 : i64} {
  func.func @_bn_apply_kernel(%arg0: i32, %arg1: memref<32x128xf32, #tpu.memory_space<vmem>>, %arg2: memref<32x1xf32, #tpu.memory_space<vmem>>, %arg3: memref<32x1xf32, #tpu.memory_space<vmem>>, %arg4: memref<32x128xf32, #tpu.memory_space<vmem>>, %arg5: memref<32x128xf32, #tpu.memory_space<vmem>>) attributes {dimension_semantics = [#tpu.dimension_semantics<parallel>], iteration_bounds = array<i64: 1>, scalar_prefetch = 0 : i64, scratch_operands = 0 : i64, tpu.core_type = #tpu.core_type<tc>, window_params = [{transform_indices = @transform_0, window_bounds = array<i64: 32, 128>}, {pipeline_mode = #tpu.pipeline_mode<synchronous>, transform_indices = @transform_1, window_bounds = array<i64: 32, 1>}, {pipeline_mode = #tpu.pipeline_mode<synchronous>, transform_indices = @transform_2, window_bounds = array<i64: 32, 1>}, {transform_indices = @transform_3, window_bounds = array<i64: 32, 128>}, {transform_indices = @transform_4, window_bounds = array<i64: 32, 128>}]} {
    %c0 = arith.constant 0 : index
    %c0_0 = arith.constant 0 : index
    %0 = vector.load %arg1[%c0, %c0_0] : memref<32x128xf32, #tpu.memory_space<vmem>>, vector<32x128xf32>
    %c0_1 = arith.constant 0 : index
    %c0_2 = arith.constant 0 : index
    %1 = vector.load %arg2[%c0_1, %c0_2] : memref<32x1xf32, #tpu.memory_space<vmem>>, vector<32x1xf32>
    %cst = arith.constant 7.812500e-03 : f32
    %2 = vector.broadcast %cst : f32 to vector<32x1xf32>
    %3 = arith.mulf %1, %2 : vector<32x1xf32>
    %c0_3 = arith.constant 0 : index
    %c0_4 = arith.constant 0 : index
    %4 = vector.load %arg3[%c0_3, %c0_4] : memref<32x1xf32, #tpu.memory_space<vmem>>, vector<32x1xf32>
    %cst_5 = arith.constant 7.812500e-03 : f32
    %5 = vector.broadcast %cst_5 : f32 to vector<32x1xf32>
    %6 = arith.mulf %4, %5 : vector<32x1xf32>
    %7 = arith.mulf %3, %3 : vector<32x1xf32>
    %8 = arith.subf %6, %7 : vector<32x1xf32>
    %cst_6 = arith.constant 0.000000e+00 : f32
    %9 = vector.broadcast %cst_6 : f32 to vector<32x1xf32>
    %10 = arith.maximumf %8, %9 : vector<32x1xf32>
    %11 = vector.broadcast %3 : vector<32x1xf32> to vector<32x128xf32>
    %12 = arith.subf %0, %11 : vector<32x128xf32>
    %cst_7 = arith.constant 9.99999974E-6 : f32
    %13 = vector.broadcast %cst_7 : f32 to vector<32x1xf32>
    %14 = arith.addf %10, %13 : vector<32x1xf32>
    %15 = math.rsqrt %14 : vector<32x1xf32>
    %16 = vector.broadcast %15 : vector<32x1xf32> to vector<32x128xf32>
    %17 = arith.mulf %12, %16 : vector<32x128xf32>
    %c0_8 = arith.constant 0 : index
    %c0_9 = arith.constant 0 : index
    %18 = vector.load %arg4[%c0_8, %c0_9] : memref<32x128xf32, #tpu.memory_space<vmem>>, vector<32x128xf32>
    %19 = arith.addf %17, %18 : vector<32x128xf32>
    %cst_10 = arith.constant 0.000000e+00 : f32
    %20 = vector.broadcast %cst_10 : f32 to vector<32x128xf32>
    %21 = arith.cmpf ogt, %19, %20 : vector<32x128xf32>
    %cst_11 = arith.constant 2.000000e-01 : f32
    %22 = vector.broadcast %cst_11 : f32 to vector<32x128xf32>
    %23 = arith.mulf %22, %19 : vector<32x128xf32>
    %24 = arith.select %21, %19, %23 : vector<32x128xi1>, vector<32x128xf32>
    %c0_12 = arith.constant 0 : index
    %c0_13 = arith.constant 0 : index
    %25 = vector.load %arg5[%c0_12, %c0_13] : memref<32x128xf32, #tpu.memory_space<vmem>>, vector<32x128xf32>
    tpu.vector_store %arg5[%c0_12, %c0_13], %24 {strides = array<i32>} : memref<32x128xf32, #tpu.memory_space<vmem>>, vector<32x128xf32>,
    return
  }
  func.func @transform_0(%arg0: i32) -> (i32, i32) {
    %c0_i32 = arith.constant 0 : i32
    %c0_i32_0 = arith.constant 0 : i32
    return %c0_i32, %arg0 : i32, i32
  }
  func.func @transform_1(%arg0: i32) -> (i32, i32) {
    %c0_i32 = arith.constant 0 : i32
    %c0_i32_0 = arith.constant 0 : i32
    %c0_i32_1 = arith.constant 0 : i32
    return %c0_i32, %c0_i32_0 : i32, i32
  }
  func.func @transform_2(%arg0: i32) -> (i32, i32) {
    %c0_i32 = arith.constant 0 : i32
    %c0_i32_0 = arith.constant 0 : i32
    %c0_i32_1 = arith.constant 0 : i32
    return %c0_i32, %c0_i32_0 : i32, i32
  }
  func.func @transform_3(%arg0: i32) -> (i32, i32) {
    %c0_i32 = arith.constant 0 : i32
    %c0_i32_0 = arith.constant 0 : i32
    return %c0_i32, %arg0 : i32, i32
  }
  func.func @transform_4(%arg0: i32) -> (i32, i32) {
    %c0_i32 = arith.constant 0 : i32
    %c0_i32_0 = arith.constant 0 : i32
    return %c0_i32, %arg0 : i32, i32
  }
}

module attributes {stable_mosaic.version = 11 : i64} {
  func.func @_bn_apply_kernel(%arg0: i32, %arg1: memref<32x128xf32, #tpu.memory_space<vmem>>, %arg2: memref<32x1xf32, #tpu.memory_space<vmem>>, %arg3: memref<32x1xf32, #tpu.memory_space<vmem>>, %arg4: memref<32x128xf32, #tpu.memory_space<vmem>>) attributes {dimension_semantics = [#tpu.dimension_semantics<parallel>], iteration_bounds = array<i64: 1>, scalar_prefetch = 0 : i64, scratch_operands = 0 : i64, tpu.core_type = #tpu.core_type<tc>, window_params = [{transform_indices = @transform_0, window_bounds = array<i64: 32, 128>}, {pipeline_mode = #tpu.pipeline_mode<synchronous>, transform_indices = @transform_1, window_bounds = array<i64: 32, 1>}, {pipeline_mode = #tpu.pipeline_mode<synchronous>, transform_indices = @transform_2, window_bounds = array<i64: 32, 1>}, {transform_indices = @transform_3, window_bounds = array<i64: 32, 128>}]} {
    %c0 = arith.constant 0 : index
    %c0_0 = arith.constant 0 : index
    %0 = vector.load %arg1[%c0, %c0_0] : memref<32x128xf32, #tpu.memory_space<vmem>>, vector<32x128xf32>
    %c0_1 = arith.constant 0 : index
    %c0_2 = arith.constant 0 : index
    %1 = vector.load %arg2[%c0_1, %c0_2] : memref<32x1xf32, #tpu.memory_space<vmem>>, vector<32x1xf32>
    %cst = arith.constant 7.812500e-03 : f32
    %2 = vector.broadcast %cst : f32 to vector<32x1xf32>
    %3 = arith.mulf %1, %2 : vector<32x1xf32>
    %c0_3 = arith.constant 0 : index
    %c0_4 = arith.constant 0 : index
    %4 = vector.load %arg3[%c0_3, %c0_4] : memref<32x1xf32, #tpu.memory_space<vmem>>, vector<32x1xf32>
    %cst_5 = arith.constant 7.812500e-03 : f32
    %5 = vector.broadcast %cst_5 : f32 to vector<32x1xf32>
    %6 = arith.mulf %4, %5 : vector<32x1xf32>
    %7 = arith.mulf %3, %3 : vector<32x1xf32>
    %8 = arith.subf %6, %7 : vector<32x1xf32>
    %cst_6 = arith.constant 0.000000e+00 : f32
    %9 = vector.broadcast %cst_6 : f32 to vector<32x1xf32>
    %10 = arith.maximumf %8, %9 : vector<32x1xf32>
    %11 = vector.broadcast %3 : vector<32x1xf32> to vector<32x128xf32>
    %12 = arith.subf %0, %11 : vector<32x128xf32>
    %cst_7 = arith.constant 9.99999974E-6 : f32
    %13 = vector.broadcast %cst_7 : f32 to vector<32x1xf32>
    %14 = arith.addf %10, %13 : vector<32x1xf32>
    %15 = math.rsqrt %14 : vector<32x1xf32>
    %16 = vector.broadcast %15 : vector<32x1xf32> to vector<32x128xf32>
    %17 = arith.mulf %12, %16 : vector<32x128xf32>
    %cst_8 = arith.constant 0.000000e+00 : f32
    %18 = vector.broadcast %cst_8 : f32 to vector<32x128xf32>
    %19 = arith.cmpf ogt, %17, %18 : vector<32x128xf32>
    %cst_9 = arith.constant 2.000000e-01 : f32
    %20 = vector.broadcast %cst_9 : f32 to vector<32x128xf32>
    %21 = arith.mulf %20, %17 : vector<32x128xf32>
    %22 = arith.select %19, %17, %21 : vector<32x128xi1>, vector<32x128xf32>
    %c0_10 = arith.constant 0 : index
    %c0_11 = arith.constant 0 : index
    %23 = vector.load %arg4[%c0_10, %c0_11] : memref<32x128xf32, #tpu.memory_space<vmem>>, vector<32x128xf32>
    tpu.vector_store %arg4[%c0_10, %c0_11], %22 {strides = array<i32>} : memref<32x128xf32, #tpu.memory_space<vmem>>, vector<32x128xf32>,
    return
  }
  func.func @transform_0(%arg0: i32) -> (i32, i32) {
    %c0_i32 = arith.constant 0 : i32
    %c0_i32_0 = arith.constant 0 : i32
    return %c0_i32, %arg0 : i32, i32
  }
  func.func @transform_1(%arg0: i32) -> (i32, i32) {
    %c0_i32 = arith.constant 0 : i32
    %c0_i32_0 = arith.constant 0 : i32
    %c0_i32_1 = arith.constant 0 : i32
    return %c0_i32, %c0_i32_0 : i32, i32
  }
  func.func @transform_2(%arg0: i32) -> (i32, i32) {
    %c0_i32 = arith.constant 0 : i32
    %c0_i32_0 = arith.constant 0 : i32
    %c0_i32_1 = arith.constant 0 : i32
    return %c0_i32, %c0_i32_0 : i32, i32
  }
  func.func @transform_3(%arg0: i32) -> (i32, i32) {
    %c0_i32 = arith.constant 0 : i32
    %c0_i32_0 = arith.constant 0 : i32
    return %c0_i32, %arg0 : i32, i32
  }
}

module attributes {stable_mosaic.version = 11 : i64} {
  func.func @_mm_bias_kernel(%arg0: i32, %arg1: memref<8x288xbf16, #tpu.memory_space<vmem>>, %arg2: memref<288x128xbf16, #tpu.memory_space<vmem>>, %arg3: memref<8x1xf32, #tpu.memory_space<vmem>>, %arg4: memref<8x128xf32, #tpu.memory_space<vmem>>) attributes {dimension_semantics = [#tpu.dimension_semantics<parallel>], iteration_bounds = array<i64: 1>, scalar_prefetch = 0 : i64, scratch_operands = 0 : i64, tpu.core_type = #tpu.core_type<tc>, window_params = [{pipeline_mode = #tpu.pipeline_mode<synchronous>, transform_indices = @transform_0, window_bounds = array<i64: 8, 288>}, {transform_indices = @transform_1, window_bounds = array<i64: 288, 128>}, {pipeline_mode = #tpu.pipeline_mode<synchronous>, transform_indices = @transform_2, window_bounds = array<i64: 8, 1>}, {transform_indices = @transform_3, window_bounds = array<i64: 8, 128>}]} {
    %c0 = arith.constant 0 : index
    %c0_0 = arith.constant 0 : index
    %0 = vector.load %arg1[%c0, %c0_0] : memref<8x288xbf16, #tpu.memory_space<vmem>>, vector<8x288xbf16>
    %c0_1 = arith.constant 0 : index
    %c0_2 = arith.constant 0 : index
    %1 = vector.load %arg2[%c0_1, %c0_2] : memref<288x128xbf16, #tpu.memory_space<vmem>>, vector<288x128xbf16>
    %cst = arith.constant dense<0.000000e+00> : vector<8x128xf32>
    %2 = tpu.matmul %0, %1, %cst {dimension_numbers = #tpu.dot_dimension_numbers<[1], [0], [0], [1], [0, 0, 1, 1], [], []>} : vector<8x288xbf16>, vector<288x128xbf16>, vector<8x128xf32> -> vector<8x128xf32>
    %c0_3 = arith.constant 0 : index
    %c0_4 = arith.constant 0 : index
    %3 = vector.load %arg3[%c0_3, %c0_4] : memref<8x1xf32, #tpu.memory_space<vmem>>, vector<8x1xf32>
    %4 = vector.broadcast %3 : vector<8x1xf32> to vector<8x128xf32>
    %5 = arith.addf %2, %4 : vector<8x128xf32>
    %c0_5 = arith.constant 0 : index
    %c0_6 = arith.constant 0 : index
    %6 = vector.load %arg4[%c0_5, %c0_6] : memref<8x128xf32, #tpu.memory_space<vmem>>, vector<8x128xf32>
    tpu.vector_store %arg4[%c0_5, %c0_6], %5 {strides = array<i32>} : memref<8x128xf32, #tpu.memory_space<vmem>>, vector<8x128xf32>,
    return
  }
  func.func @transform_0(%arg0: i32) -> (i32, i32) {
    %c0_i32 = arith.constant 0 : i32
    %c0_i32_0 = arith.constant 0 : i32
    %c0_i32_1 = arith.constant 0 : i32
    return %c0_i32, %c0_i32_0 : i32, i32
  }
  func.func @transform_1(%arg0: i32) -> (i32, i32) {
    %c0_i32 = arith.constant 0 : i32
    %c0_i32_0 = arith.constant 0 : i32
    return %c0_i32, %arg0 : i32, i32
  }
  func.func @transform_2(%arg0: i32) -> (i32, i32) {
    %c0_i32 = arith.constant 0 : i32
    %c0_i32_0 = arith.constant 0 : i32
    %c0_i32_1 = arith.constant 0 : i32
    return %c0_i32, %c0_i32_0 : i32, i32
  }
  func.func @transform_3(%arg0: i32) -> (i32, i32) {
    %c0_i32 = arith.constant 0 : i32
    %c0_i32_0 = arith.constant 0 : i32
    return %c0_i32, %arg0 : i32, i32
  }
}

</mosaic_0001>

<llo_original>
// kernel: _lambda_.169
$region0: #{_lambda_.169}
  #allocation0 [shape = 'u32[]', space=smem, size = 0x4, offset = 0x4, fixed_abs, tag = 'smem constant byte address 0x4 - core index']
  #allocation1 [shape = 'u32[72,128]{1,0:T(1,128)}', space=vmem, size = 0x9000, scoped, tag = 'internal scratch']
  %s0 = inlined_call_operand.vmem [shape: bf16[32,75], index: 0, kind: input, shape index: {}]
  %s1 = inlined_call_operand.vmem [shape: bf16[75,128], index: 1, kind: input, shape index: {}]
  %s2 = inlined_call_operand.vmem [shape: f32[32,1], index: 2, kind: input, shape index: {}]
  %s3 = inlined_call_operand.vmem [shape: f32[32,128], index: 3, kind: output, shape index: {}]
  %s4 = sld [smem:[#allocation0]]
  $region22: #{_lambda_.169} parent=0
    _
  %s6 = ssub.s32 1, %s4
  %s7 = scalar_select 0, %s6, %s4
  // Predicated region
  $region2: #{_lambda_.169} parent=0 // pred_check
    _
  $region3: #{_lambda_.169} parent=0 // pred_check_branch
    %9 = sbr.rel (0) target = $region5
  $region4: #{_lambda_.169} parent=0 // pred_region
    _
  $region5: #{_lambda_.169} parent=0 // pred_fallthru
    _
  // Predicated region
  $region6: #{_lambda_.169} parent=0 // pred_check
    _
  $region7: #{_lambda_.169} parent=0 // pred_check_branch
    %11 = sbr.rel (0) target = $region9
  $region8: #{_lambda_.169} parent=0 // pred_region
    _
  $region9: #{_lambda_.169} parent=0 // pred_fallthru
    _
  // Predicated region
  $region10: #{_lambda_.169} parent=0 // pred_check
    _
  $region11: #{_lambda_.169} parent=0 // pred_check_branch
    %13 = sbr.rel (0) target = $region13
  $region12: #{_lambda_.169} parent=0 // pred_region
    _
  $region13: #{_lambda_.169} parent=0 // pred_fallthru
    _
  %v15 = vld [vmem:[%s0] sm:$0xf]
  %v16 = vld [vmem:[%s0 + $0x4] sm:$0xf]
  %v17 = vld [vmem:[%s0 + $0x8] sm:$0xf]
  %v18 = vld [vmem:[%s0 + $0xc] sm:$0xf]
  %v19 = vld [vmem:[%s1] sm:$0xf]
  %v20 = vld [vmem:[%s1 + $0x4] sm:$0xf]
  %v21 = vld [vmem:[%s1 + $0x8] sm:$0xf]
  %v22 = vld [vmem:[%s1 + $0xc] sm:$0xf]
  %v23 = vld [vmem:[%s1 + $0x10] sm:$0xf]
  %v24 = vld [vmem:[%s1 + $0x14] sm:$0xf]
  %v25 = vld [vmem:[%s1 + $0x18] sm:$0xf]
  %v26 = vld [vmem:[%s1 + $0x1c] sm:$0xf]
  %v27 = vld [vmem:[%s1 + $0x20] sm:$0xf]
  %v28 = vld [vmem:[%s1 + $0x24] sm:$0x3]
  %v29 = vld [vmem:[%s2] sm:$0xff]
  %v30 = vld [vmem:[%s2 + $0x8] sm:$0xff]
  %v31 = vld [vmem:[%s2 + $0x10] sm:$0xff]
  %v32 = vld [vmem:[%s2 + $0x18] sm:$0xff]
  %34 = vset.pattern.permute.xlu0 0
  %35 = vperm.xlu0 %34, %v29
  %v36 = vpop.permute.xlu0 %35
  %39 = vset.pattern.permute.xlu0 0
  %40 = vperm.xlu0 %39, %v30
  %v41 = vpop.permute.xlu0 %40
  %44 = vset.pattern.permute.xlu0 0
  %45 = vperm.xlu0 %44, %v31
  %v46 = vpop.permute.xlu0 %45
  %49 = vset.pattern.permute.xlu0 0
  %50 = vperm.xlu0 %49, %v32
  %v51 = vpop.permute.xlu0 %50
  %v57 = vunpack.c.l.b16 %v15
  %v58 = vunpack.c.l.b16 %v16
  %v59 = vunpack.c.l.b16 %v17
  %v60 = vunpack.c.l.b16 %v18
  %v61 = vpack.c.b16 %v58, %v57
  %v62 = vpack.c.b16 %v60, %v59
  %v73 = vunpack.c.l.b16 %v19
  %v74 = vunpack.c.l.b16 %v20
  %v75 = vunpack.c.l.b16 %v21
  %v76 = vunpack.c.l.b16 %v22
  %v77 = vunpack.c.l.b16 %v23
  %v78 = vunpack.c.l.b16 %v24
  %v79 = vunpack.c.l.b16 %v25
  %v80 = vunpack.c.l.b16 %v26
  %v81 = vunpack.c.l.b16 %v27
  %v82 = vunpack.c.l.b16 %v28
  %v83 = vpack.c.b16 %v74, %v73
  %v84 = vpack.c.b16 %v76, %v75
  %v85 = vpack.c.b16 %v78, %v77
  %v86 = vpack.c.b16 %v80, %v79
  %v87 = vpack.c.b16 %v82, %v81
  %vm92 = vcmask 613376
  %v94 = vsel %vm92, %v61, 0
  %v97 = vsel %vm92, %v62, 0
  %vm99 = vcmask 1044480
  %vm100 = vcmask 1045504
  %v101 = vsel %vm99, 4294967295, 65535
  %v102 = vsel %vm100, %v101, 0
  %v104 = vand.u32 %v87, %v102
  %106 = vmatpush.bf16.msra.mxu0 0
  %107 = vmatpush.bf16.msra.mxu0 0
  %108 = vmatpush.bf16.msra.mxu0 0
  %109 = vmatpush.bf16.msra.mxu0 %v104
  %110 = vmatpush.bf16.msra.mxu0 %v86
  %111 = vmatpush.bf16.msra.mxu0 %v85
  %112 = vmatpush.bf16.msra.mxu0 %v84
  %113 = vmatpush.bf16.msra.mxu0 %v83
  %114 = vmatmul.bf16.gmra.mxu0 %v94
  %v115 = vpop.f32.mrf.mxu0
  %v116 = vadd.f32 %v36, %v115
  %v117 = vpop.f32.mrf.mxu0
  %v118 = vadd.f32 %v41, %v117
  %119 = vmatmul.bf16.gmra.mxu0 %v97
  %v120 = vpop.f32.mrf.mxu0
  %v121 = vadd.f32 %v46, %v120
  %v122 = vpop.f32.mrf.mxu0
  %v123 = vadd.f32 %v51, %v122
  %124 = vdwg.mxu0
  %125 = vst [vmem:[%s3] sm:$0xff] %v116
  %126 = vst [vmem:[%s3 + $0x8] sm:$0xff] %v118
  %127 = vst [vmem:[%s3 + $0x10] sm:$0xff] %v121
  %128 = vst [vmem:[%s3 + $0x18] sm:$0xff] %v123
  // Predicated region
  $region14: #{_lambda_.169} parent=0 // pred_check
    _
  $region15: #{_lambda_.169} parent=0 // pred_check_branch
    %130 = sbr.rel (0) target = $region17
  $region16: #{_lambda_.169} parent=0 // pred_region
    _
  $region17: #{_lambda_.169} parent=0 // pred_fallthru
    _
  // Predicated region
  $region18: #{_lambda_.169} parent=0 // pred_check
    _
  $region19: #{_lambda_.169} parent=0 // pred_check_branch
    %132 = sbr.rel (0) target = $region21
  $region20: #{_lambda_.169} parent=0 // pred_region
    _
  $region21: #{_lambda_.169} parent=0 // pred_fallthru
    _

// kernel: _lambda_.170
$region0: #{_lambda_.170}
  #allocation0 [shape = 'u32[]', space=smem, size = 0x4, offset = 0x4, fixed_abs, tag = 'smem constant byte address 0x4 - core index']
  #allocation1 [shape = 'u32[72,128]{1,0:T(1,128)}', space=vmem, size = 0x9000, scoped, tag = 'internal scratch']
  %s0 = inlined_call_operand.vmem [shape: bf16[32,800], index: 0, kind: input, shape index: {}]
  %s1 = inlined_call_operand.vmem [shape: bf16[800,128], index: 1, kind: input, shape index: {}]
  %s2 = inlined_call_operand.vmem [shape: f32[32,1], index: 2, kind: input, shape index: {}]
  %s3 = inlined_call_operand.vmem [shape: f32[32,128], index: 3, kind: output, shape index: {}]
  %s4 = sld [smem:[#allocation0]]
  $region22: #{_lambda_.170} parent=0
    _
  %s6 = ssub.s32 1, %s4
  %s7 = scalar_select 0, %s6, %s4
  // Predicated region
  $region2: #{_lambda_.170} parent=0 // pred_check
    _
  $region3: #{_lambda_.170} parent=0 // pred_check_branch
    %9 = sbr.rel (0) target = $region5
  $region4: #{_lambda_.170} parent=0 // pred_region
    _
  $region5: #{_lambda_.170} parent=0 // pred_fallthru
    _
  // Predicated region
  $region6: #{_lambda_.170} parent=0 // pred_check
    _
  $region7: #{_lambda_.170} parent=0 // pred_check_branch
    %11 = sbr.rel (0) target = $region9
  $region8: #{_lambda_.170} parent=0 // pred_region
    _
  $region9: #{_lambda_.170} parent=0 // pred_fallthru
    _
  // Predicated region
  $region10: #{_lambda_.170} parent=0 // pred_check
    _
  $region11: #{_lambda_.170} parent=0 // pred_check_branch
    %13 = sbr.rel (0) target = $region13
  $region12: #{_lambda_.170} parent=0 // pred_region
    _
  $region13: #{_lambda_.170} parent=0 // pred_fallthru
    _
  %v15 = vld [vmem:[%s0] sm:$0xff]
  %v16 = vld [vmem:[%s0 + $0x8] sm:$0xff]
  %v17 = vld [vmem:[%s0 + $0x10] sm:$0xff]
  %v18 = vld [vmem:[%s0 + $0x18] sm:$0xf]
  %v19 = vld [vmem:[%s0 + $0x1c] sm:$0xff]
  %v20 = vld [vmem:[%s0 + $0x24] sm:$0xff]
  %v21 = vld [vmem:[%s0 + $0x2c] sm:$0xff]
  %v22 = vld [vmem:[%s0 + $0x34] sm:$0xf]
  %v23 = vld [vmem:[%s0 + $0x38] sm:$0xff]
  %v24 = vld [vmem:[%s0 + $0x40] sm:$0xff]
  %v25 = vld [vmem:[%s0 + $0x48] sm:$0xff]
  %v26 = vld [vmem:[%s0 + $0x50] sm:$0xf]
  %v27 = vld [vmem:[%s0 + $0x54] sm:$0xff]
  %v28 = vld [vmem:[%s0 + $0x5c] sm:$0xff]
  %v29 = vld [vmem:[%s0 + $0x64] sm:$0xff]
  %v30 = vld [vmem:[%s0 + $0x6c] sm:$0xf]
  %v31 = vld [vmem:[%s1] sm:$0xf]
  %v32 = vld [vmem:[%s1 + $0x4] sm:$0xf]
  %v33 = vld [vmem:[%s1 + $0x8] sm:$0xf]
  %v34 = vld [vmem:[%s1 + $0xc] sm:$0xf]
  %v35 = vld [vmem:[%s1 + $0x10] sm:$0xf]
  %v36 = vld [vmem:[%s1 + $0x14] sm:$0xf]
  %v37 = vld [vmem:[%s1 + $0x18] sm:$0xf]
  %v38 = vld [vmem:[%s1 + $0x1c] sm:$0xf]
  %v39 = vld [vmem:[%s1 + $0x20] sm:$0xf]
  %v40 = vld [vmem:[%s1 + $0x24] sm:$0xf]
  %v41 = vld [vmem:[%s1 + $0x28] sm:$0xf]
  %v42 = vld [vmem:[%s1 + $0x2c] sm:$0xf]
  %v43 = vld [vmem:[%s1 + $0x30] sm:$0xf]
  %v44 = vld [vmem:[%s1 + $0x34] sm:$0xf]
  %v45 = vld [vmem:[%s1 + $0x38] sm:$0xf]
  %v46 = vld [vmem:[%s1 + $0x3c] sm:$0xf]
  %v47 = vld [vmem:[%s1 + $0x40] sm:$0xf]
  %v48 = vld [vmem:[%s1 + $0x44] sm:$0xf]
  %v49 = vld [vmem:[%s1 + $0x48] sm:$0xf]
  %v50 = vld [vmem:[%s1 + $0x4c] sm:$0xf]
  %v51 = vld [vmem:[%s1 + $0x50] sm:$0xf]
  %v52 = vld [vmem:[%s1 + $0x54] sm:$0xf]
  %v53 = vld [vmem:[%s1 + $0x58] sm:$0xf]
  %v54 = vld [vmem:[%s1 + $0x5c] sm:$0xf]
  %v55 = vld [vmem:[%s1 + $0x60] sm:$0xf]
  %v56 = vld [vmem:[%s1 + $0x64] sm:$0xf]
  %v57 = vld [vmem:[%s1 + $0x68] sm:$0xf]
  %v58 = vld [vmem:[%s1 + $0x6c] sm:$0xf]
  %v59 = vld [vmem:[%s1 + $0x70] sm:$0xf]
  %v60 = vld [vmem:[%s1 + $0x74] sm:$0xf]
  %v61 = vld [vmem:[%s1 + $0x78] sm:$0xf]
  %v62 = vld [vmem:[%s1 + $0x7c] sm:$0xf]
  %v63 = vld [vmem:[%s1 + $0x80] sm:$0xf]
  %v64 = vld [vmem:[%s1 + $0x84] sm:$0xf]
  %v65 = vld [vmem:[%s1 + $0x88] sm:$0xf]
  %v66 = vld [vmem:[%s1 + $0x8c] sm:$0xf]
  %v67 = vld [vmem:[%s1 + $0x90] sm:$0xf]
  %v68 = vld [vmem:[%s1 + $0x94] sm:$0xf]
  %v69 = vld [vmem:[%s1 + $0x98] sm:$0xf]
  %v70 = vld [vmem:[%s1 + $0x9c] sm:$0xf]
  %v71 = vld [vmem:[%s1 + $0xa0] sm:$0xf]
  %v72 = vld [vmem:[%s1 + $0xa4] sm:$0xf]
  %v73 = vld [vmem:[%s1 + $0xa8] sm:$0xf]
  %v74 = vld [vmem:[%s1 + $0xac] sm:$0xf]
  %v75 = vld [vmem:[%s1 + $0xb0] sm:$0xf]
  %v76 = vld [vmem:[%s1 + $0xb4] sm:$0xf]
  %v77 = vld [vmem:[%s1 + $0xb8] sm:$0xf]
  %v78 = vld [vmem:[%s1 + $0xbc] sm:$0xf]
  %v79 = vld [vmem:[%s1 + $0xc0] sm:$0xf]
  %v80 = vld [vmem:[%s1 + $0xc4] sm:$0xf]
  %v81 = vld [vmem:[%s1 + $0xc8] sm:$0xf]
  %v82 = vld [vmem:[%s1 + $0xcc] sm:$0xf]
  %v83 = vld [vmem:[%s1 + $0xd0] sm:$0xf]
  %v84 = vld [vmem:[%s1 + $0xd4] sm:$0xf]
  %v85 = vld [vmem:[%s1 + $0xd8] sm:$0xf]
  %v86 = vld [vmem:[%s1 + $0xdc] sm:$0xf]
  %v87 = vld [vmem:[%s1 + $0xe0] sm:$0xf]
  %v88 = vld [vmem:[%s1 + $0xe4] sm:$0xf]
  %v89 = vld [vmem:[%s1 + $0xe8] sm:$0xf]
  %v90 = vld [vmem:[%s1 + $0xec] sm:$0xf]
  %v91 = vld [vmem:[%s1 + $0xf0] sm:$0xf]
  %v92 = vld [vmem:[%s1 + $0xf4] sm:$0xf]
  %v93 = vld [vmem:[%s1 + $0xf8] sm:$0xf]
  %v94 = vld [vmem:[%s1 + $0xfc] sm:$0xf]
  %v95 = vld [vmem:[%s1 + $0x100] sm:$0xf]
  %v96 = vld [vmem:[%s1 + $0x104] sm:$0xf]
  %v97 = vld [vmem:[%s1 + $0x108] sm:$0xf]
  %v98 = vld [vmem:[%s1 + $0x10c] sm:$0xf]
  %v99 = vld [vmem:[%s1 + $0x110] sm:$0xf]
  %v100 = vld [vmem:[%s1 + $0x114] sm:$0xf]
  %v101 = vld [vmem:[%s1 + $0x118] sm:$0xf]
  %v102 = vld [vmem:[%s1 + $0x11c] sm:$0xf]
  %v103 = vld [vmem:[%s1 + $0x120] sm:$0xf]
  %v104 = vld [vmem:[%s1 + $0x124] sm:$0xf]
  %v105 = vld [vmem:[%s1 + $0x128] sm:$0xf]
  %v106 = vld [vmem:[%s1 + $0x12c] sm:$0xf]
  %v107 = vld [vmem:[%s1 + $0x130] sm:$0xf]
  %v108 = vld [vmem:[%s1 + $0x134] sm:$0xf]
  %v109 = vld [vmem:[%s1 + $0x138] sm:$0xf]
  %v110 = vld [vmem:[%s1 + $0x13c] sm:$0xf]
  %v111 = vld [vmem:[%s1 + $0x140] sm:$0xf]
  %v112 = vld [vmem:[%s1 + $0x144] sm:$0xf]
  %v113 = vld [vmem:[%s1 + $0x148] sm:$0xf]
  %v114 = vld [vmem:[%s1 + $0x14c] sm:$0xf]
  %v115 = vld [vmem:[%s1 + $0x150] sm:$0xf]
  %v116 = vld [vmem:[%s1 + $0x154] sm:$0xf]
  %v117 = vld [vmem:[%s1 + $0x158] sm:$0xf]
  %v118 = vld [vmem:[%s1 + $0x15c] sm:$0xf]
  %v119 = vld [vmem:[%s1 + $0x160] sm:$0xf]
  %v120 = vld [vmem:[%s1 + $0x164] sm:$0xf]
  %v121 = vld [vmem:[%s1 + $0x168] sm:$0xf]
  %v122 = vld [vmem:[%s1 + $0x16c] sm:$0xf]
  %v123 = vld [vmem:[%s1 + $0x170] sm:$0xf]
  %v124 = vld [vmem:[%s1 + $0x174] sm:$0xf]
  %v125 = vld [vmem:[%s1 + $0x178] sm:$0xf]
  %v126 = vld [vmem:[%s1 + $0x17c] sm:$0xf]
  %v127 = vld [vmem:[%s1 + $0x180] sm:$0xf]
  %v128 = vld [vmem:[%s1 + $0x184] sm:$0xf]
  %v129 = vld [vmem:[%s1 + $0x188] sm:$0xf]
  %v130 = vld [vmem:[%s1 + $0x18c] sm:$0xf]
  %v131 = vld [vmem:[%s2] sm:$0xff]
  %v132 = vld [vmem:[%s2 + $0x8] sm:$0xff]
  %v133 = vld [vmem:[%s2 + $0x10] sm:$0xff]
  %v134 = vld [vmem:[%s2 + $0x18] sm:$0xff]
  %136 = vset.pattern.permute.xlu0 0
  %137 = vperm.xlu0 %136, %v131
  %v138 = vpop.permute.xlu0 %137
  %141 = vset.pattern.permute.xlu0 0
  %142 = vperm.xlu0 %141, %v132
  %v143 = vpop.permute.xlu0 %142
  %146 = vset.pattern.permute.xlu0 0
  %147 = vperm.xlu0 %146, %v133
  %v148 = vpop.permute.xlu0 %147
  %151 = vset.pattern.permute.xlu0 0
  %152 = vperm.xlu0 %151, %v134
  %v153 = vpop.permute.xlu0 %152
  %v171 = vunpack.c.l.b16 %v15
  %v172 = vunpack.c.h.b16 %v15
  %v173 = vunpack.c.l.b16 %v16
  %v174 = vunpack.c.h.b16 %v16
  %v175 = vunpack.c.l.b16 %v17
  %v176 = vunpack.c.h.b16 %v17
  %v177 = vunpack.c.l.b16 %v18
  %v178 = vunpack.c.l.b16 %v19
  %v179 = vunpack.c.h.b16 %v19
  %v180 = vunpack.c.l.b16 %v20
  %v181 = vunpack.c.h.b16 %v20
  %v182 = vunpack.c.l.b16 %v21
  %v183 = vunpack.c.h.b16 %v21
  %v184 = vunpack.c.l.b16 %v22
  %v185 = vunpack.c.l.b16 %v23
  %v186 = vunpack.c.h.b16 %v23
  %v187 = vunpack.c.l.b16 %v24
  %v188 = vunpack.c.h.b16 %v24
  %v189 = vunpack.c.l.b16 %v25
  %v190 = vunpack.c.h.b16 %v25
  %v191 = vunpack.c.l.b16 %v26
  %v192 = vunpack.c.l.b16 %v27
  %v193 = vunpack.c.h.b16 %v27
  %v194 = vunpack.c.l.b16 %v28
  %v195 = vunpack.c.h.b16 %v28
  %v196 = vunpack.c.l.b16 %v29
  %v197 = vunpack.c.h.b16 %v29
  %v198 = vunpack.c.l.b16 %v30
  %v199 = vpack.c.b16 %v178, %v171
  %v200 = vpack.c.b16 %v179, %v172
  %v201 = vpack.c.b16 %v180, %v173
  %v202 = vpack.c.b16 %v181, %v174
  %v203 = vpack.c.b16 %v182, %v175
  %v204 = vpack.c.b16 %v183, %v176
  %v205 = vpack.c.b16 %v184, %v177
  %v206 = vpack.c.b16 %v192, %v185
  %v207 = vpack.c.b16 %v193, %v186
  %v208 = vpack.c.b16 %v194, %v187
  %v209 = vpack.c.b16 %v195, %v188
  %v210 = vpack.c.b16 %v196, %v189
  %v211 = vpack.c.b16 %v197, %v190
  %v212 = vpack.c.b16 %v198, %v191
  %v325 = vunpack.c.l.b16 %v31
  %v326 = vunpack.c.l.b16 %v32
  %v327 = vunpack.c.l.b16 %v33
  %v328 = vunpack.c.l.b16 %v34
  %v329 = vunpack.c.l.b16 %v35
  %v330 = vunpack.c.l.b16 %v36
  %v331 = vunpack.c.l.b16 %v37
  %v332 = vunpack.c.l.b16 %v38
  %v333 = vunpack.c.l.b16 %v39
  %v334 = vunpack.c.l.b16 %v40
  %v335 = vunpack.c.l.b16 %v41
  %v336 = vunpack.c.l.b16 %v42
  %v337 = vunpack.c.l.b16 %v43
  %v338 = vunpack.c.l.b16 %v44
  %v339 = vunpack.c.l.b16 %v45
  %v340 = vunpack.c.l.b16 %v46
  %v341 = vunpack.c.l.b16 %v47
  %v342 = vunpack.c.l.b16 %v48
  %v343 = vunpack.c.l.b16 %v49
  %v344 = vunpack.c.l.b16 %v50
  %v345 = vunpack.c.l.b16 %v51
  %v346 = vunpack.c.l.b16 %v52
  %v347 = vunpack.c.l.b16 %v53
  %v348 = vunpack.c.l.b16 %v54
  %v349 = vunpack.c.l.b16 %v55
  %v350 = vunpack.c.l.b16 %v56
  %v351 = vunpack.c.l.b16 %v57
  %v352 = vunpack.c.l.b16 %v58
  %v353 = vunpack.c.l.b16 %v59
  %v354 = vunpack.c.l.b16 %v60
  %v355 = vunpack.c.l.b16 %v61
  %v356 = vunpack.c.l.b16 %v62
  %v357 = vunpack.c.l.b16 %v63
  %v358 = vunpack.c.l.b16 %v64
  %v359 = vunpack.c.l.b16 %v65
  %v360 = vunpack.c.l.b16 %v66
  %v361 = vunpack.c.l.b16 %v67
  %v362 = vunpack.c.l.b16 %v68
  %v363 = vunpack.c.l.b16 %v69
  %v364 = vunpack.c.l.b16 %v70
  %v365 = vunpack.c.l.b16 %v71
  %v366 = vunpack.c.l.b16 %v72
  %v367 = vunpack.c.l.b16 %v73
  %v368 = vunpack.c.l.b16 %v74
  %v369 = vunpack.c.l.b16 %v75
  %v370 = vunpack.c.l.b16 %v76
  %v371 = vunpack.c.l.b16 %v77
  %v372 = vunpack.c.l.b16 %v78
  %v373 = vunpack.c.l.b16 %v79
  %v374 = vunpack.c.l.b16 %v80
  %v375 = vunpack.c.l.b16 %v81
  %v376 = vunpack.c.l.b16 %v82
  %v377 = vunpack.c.l.b16 %v83
  %v378 = vunpack.c.l.b16 %v84
  %v379 = vunpack.c.l.b16 %v85
  %v380 = vunpack.c.l.b16 %v86
  %v381 = vunpack.c.l.b16 %v87
  %v382 = vunpack.c.l.b16 %v88
  %v383 = vunpack.c.l.b16 %v89
  %v384 = vunpack.c.l.b16 %v90
  %v385 = vunpack.c.l.b16 %v91
  %v386 = vunpack.c.l.b16 %v92
  %v387 = vunpack.c.l.b16 %v93
  %v388 = vunpack.c.l.b16 %v94
  %v389 = vunpack.c.l.b16 %v95
  %v390 = vunpack.c.l.b16 %v96
  %v391 = vunpack.c.l.b16 %v97
  %v392 = vunpack.c.l.b16 %v98
  %v393 = vunpack.c.l.b16 %v99
  %v394 = vunpack.c.l.b16 %v100
  %v395 = vunpack.c.l.b16 %v101
  %v396 = vunpack.c.l.b16 %v102
  %v397 = vunpack.c.l.b16 %v103
  %v398 = vunpack.c.l.b16 %v104
  %v399 = vunpack.c.l.b16 %v105
  %v400 = vunpack.c.l.b16 %v106
  %v401 = vunpack.c.l.b16 %v107
  %v402 = vunpack.c.l.b16 %v108
  %v403 = vunpack.c.l.b16 %v109
  %v404 = vunpack.c.l.b16 %v110
  %v405 = vunpack.c.l.b16 %v111
  %v406 = vunpack.c.l.b16 %v112
  %v407 = vunpack.c.l.b16 %v113
  %v408 = vunpack.c.l.b16 %v114
  %v409 = vunpack.c.l.b16 %v115
  %v410 = vunpack.c.l.b16 %v116
  %v411 = vunpack.c.l.b16 %v117
  %v412 = vunpack.c.l.b16 %v118
  %v413 = vunpack.c.l.b16 %v119
  %v414 = vunpack.c.l.b16 %v120
  %v415 = vunpack.c.l.b16 %v121
  %v416 = vunpack.c.l.b16 %v122
  %v417 = vunpack.c.l.b16 %v123
  %v418 = vunpack.c.l.b16 %v124
  %v419 = vunpack.c.l.b16 %v125
  %v420 = vunpack.c.l.b16 %v126
  %v421 = vunpack.c.l.b16 %v127
  %v422 = vunpack.c.l.b16 %v128
  %v423 = vunpack.c.l.b16 %v129
  %v424 = vunpack.c.l.b16 %v130
  %v425 = vpack.c.b16 %v326, %v325
  %v426 = vpack.c.b16 %v328, %v327
  %v427 = vpack.c.b16 %v330, %v329
  %v428 = vpack.c.b16 %v332, %v331
  %v429 = vpack.c.b16 %v334, %v333
  %v430 = vpack.c.b16 %v336, %v335
  %v431 = vpack.c.b16 %v338, %v337
  %v432 = vpack.c.b16 %v340, %v339
  %v433 = vpack.c.b16 %v342, %v341
  %v434 = vpack.c.b16 %v344, %v343
  %v435 = vpack.c.b16 %v346, %v345
  %v436 = vpack.c.b16 %v348, %v347
  %v437 = vpack.c.b16 %v350, %v349
  %v438 = vpack.c.b16 %v352, %v351
  %v439 = vpack.c.b16 %v354, %v353
  %v440 = vpack.c.b16 %v356, %v355
  %v441 = vpack.c.b16 %v358, %v357
  %v442 = vpack.c.b16 %v360, %v359
  %v443 = vpack.c.b16 %v362, %v361
  %v444 = vpack.c.b16 %v364, %v363
  %v445 = vpack.c.b16 %v366, %v365
  %v446 = vpack.c.b16 %v368, %v367
  %v447 = vpack.c.b16 %v370, %v369
  %v448 = vpack.c.b16 %v372, %v371
  %v449 = vpack.c.b16 %v374, %v373
  %v450 = vpack.c.b16 %v376, %v375
  %v451 = vpack.c.b16 %v378, %v377
  %v452 = vpack.c.b16 %v380, %v379
  %v453 = vpack.c.b16 %v382, %v381
  %v454 = vpack.c.b16 %v384, %v383
  %v455 = vpack.c.b16 %v386, %v385
  %v456 = vpack.c.b16 %v388, %v387
  %v457 = vpack.c.b16 %v390, %v389
  %v458 = vpack.c.b16 %v392, %v391
  %v459 = vpack.c.b16 %v394, %v393
  %v460 = vpack.c.b16 %v396, %v395
  %v461 = vpack.c.b16 %v398, %v397
  %v462 = vpack.c.b16 %v400, %v399
  %v463 = vpack.c.b16 %v402, %v401
  %v464 = vpack.c.b16 %v404, %v403
  %v465 = vpack.c.b16 %v406, %v405
  %v466 = vpack.c.b16 %v408, %v407
  %v467 = vpack.c.b16 %v410, %v409
  %v468 = vpack.c.b16 %v412, %v411
  %v469 = vpack.c.b16 %v414, %v413
  %v470 = vpack.c.b16 %v416, %v415
  %v471 = vpack.c.b16 %v418, %v417
  %v472 = vpack.c.b16 %v420, %v419
  %v473 = vpack.c.b16 %v422, %v421
  %v474 = vpack.c.b16 %v424, %v423
  %vm525 = vcmask 261120
  %v527 = vsel %vm525, %v205, 0
  %v530 = vsel %vm525, %v212, 0
  %532 = vmatpush.bf16.msra.mxu0 %v432
  %533 = vmatpush.bf16.msra.mxu0 %v431
  %534 = vmatpush.bf16.msra.mxu0 %v430
  %535 = vmatpush.bf16.msra.mxu0 %v429
  %536 = vmatpush.bf16.msra.mxu0 %v428
  %537 = vmatpush.bf16.msra.mxu0 %v427
  %538 = vmatpush.bf16.msra.mxu0 %v426
  %539 = vmatpush.bf16.msra.mxu0 %v425
  %540 = vmatmul.bf16.gmra.mxu0 %v199
  %v541 = vpop.f32.mrf.mxu0
  %v542 = vadd.f32 %v138, %v541
  %v543 = vpop.f32.mrf.mxu0
  %v544 = vadd.f32 %v143, %v543
  %545 = vmatmul.bf16.gmra.mxu0 %v206
  %v546 = vpop.f32.mrf.mxu0
  %v547 = vadd.f32 %v148, %v546
  %v548 = vpop.f32.mrf.mxu0
  %v549 = vadd.f32 %v153, %v548
  %550 = vdwg.mxu0
  %551 = vmatpush.bf16.msra.mxu0 %v440
  %552 = vmatpush.bf16.msra.mxu0 %v439
  %553 = vmatpush.bf16.msra.mxu0 %v438
  %554 = vmatpush.bf16.msra.mxu0 %v437
  %555 = vmatpush.bf16.msra.mxu0 %v436
  %556 = vmatpush.bf16.msra.mxu0 %v435
  %557 = vmatpush.bf16.msra.mxu0 %v434
  %558 = vmatpush.bf16.msra.mxu0 %v433
  %559 = vmatmul.bf16.gmra.mxu0 %v200
  %v560 = vpop.f32.mrf.mxu0
  %v561 = vadd.f32 %v542, %v560
  %v562 = vpop.f32.mrf.mxu0
  %v563 = vadd.f32 %v544, %v562
  %564 = vmatmul.bf16.gmra.mxu0 %v207
  %v565 = vpop.f32.mrf.mxu0
  %v566 = vadd.f32 %v547, %v565
  %v567 = vpop.f32.mrf.mxu0
  %v568 = vadd.f32 %v549, %v567
  %569 = vdwg.mxu0
  %570 = vmatpush.bf16.msra.mxu0 %v448
  %571 = vmatpush.bf16.msra.mxu0 %v447
  %572 = vmatpush.bf16.msra.mxu0 %v446
  %573 = vmatpush.bf16.msra.mxu0 %v445
  %574 = vmatpush.bf16.msra.mxu0 %v444
  %575 = vmatpush.bf16.msra.mxu0 %v443
  %576 = vmatpush.bf16.msra.mxu0 %v442
  %577 = vmatpush.bf16.msra.mxu0 %v441
  %578 = vmatmul.bf16.gmra.mxu0 %v201
  %v579 = vpop.f32.mrf.mxu0
  %v580 = vadd.f32 %v561, %v579
  %v581 = vpop.f32.mrf.mxu0
  %v582 = vadd.f32 %v563, %v581
  %583 = vmatmul.bf16.gmra.mxu0 %v208
  %v584 = vpop.f32.mrf.mxu0
  %v585 = vadd.f32 %v566, %v584
  %v586 = vpop.f32.mrf.mxu0
  %v587 = vadd.f32 %v568, %v586
  %588 = vdwg.mxu0
  %589 = vmatpush.bf16.msra.mxu0 %v456
  %590 = vmatpush.bf16.msra.mxu0 %v455
  %591 = vmatpush.bf16.msra.mxu0 %v454
  %592 = vmatpush.bf16.msra.mxu0 %v453
  %593 = vmatpush.bf16.msra.mxu0 %v452
  %594 = vmatpush.bf16.msra.mxu0 %v451
  %595 = vmatpush.bf16.msra.mxu0 %v450
  %596 = vmatpush.bf16.msra.mxu0 %v449
  %597 = vmatmul.bf16.gmra.mxu0 %v202
  %v598 = vpop.f32.mrf.mxu0
  %v599 = vadd.f32 %v580, %v598
  %v600 = vpop.f32.mrf.mxu0
  %v601 = vadd.f32 %v582, %v600
  %602 = vmatmul.bf16.gmra.mxu0 %v209
  %v603 = vpop.f32.mrf.mxu0
  %v604 = vadd.f32 %v585, %v603
  %v605 = vpop.f32.mrf.mxu0
  %v606 = vadd.f32 %v587, %v605
  %607 = vdwg.mxu0
  %608 = vmatpush.bf16.msra.mxu0 %v464
  %609 = vmatpush.bf16.msra.mxu0 %v463
  %610 = vmatpush.bf16.msra.mxu0 %v462
  %611 = vmatpush.bf16.msra.mxu0 %v461
  %612 = vmatpush.bf16.msra.mxu0 %v460
  %613 = vmatpush.bf16.msra.mxu0 %v459
  %614 = vmatpush.bf16.msra.mxu0 %v458
  %615 = vmatpush.bf16.msra.mxu0 %v457
  %616 = vmatmul.bf16.gmra.mxu0 %v203
  %v617 = vpop.f32.mrf.mxu0
  %v618 = vadd.f32 %v599, %v617
  %v619 = vpop.f32.mrf.mxu0
  %v620 = vadd.f32 %v601, %v619
  %621 = vmatmul.bf16.gmra.mxu0 %v210
  %v622 = vpop.f32.mrf.mxu0
  %v623 = vadd.f32 %v604, %v622
  %v624 = vpop.f32.mrf.mxu0
  %v625 = vadd.f32 %v606, %v624
  %626 = vdwg.mxu0
  %627 = vmatpush.bf16.msra.mxu0 %v472
  %628 = vmatpush.bf16.msra.mxu0 %v471
  %629 = vmatpush.bf16.msra.mxu0 %v470
  %630 = vmatpush.bf16.msra.mxu0 %v469
  %631 = vmatpush.bf16.msra.mxu0 %v468
  %632 = vmatpush.bf16.msra.mxu0 %v467
  %633 = vmatpush.bf16.msra.mxu0 %v466
  %634 = vmatpush.bf16.msra.mxu0 %v465
  %635 = vmatmul.bf16.gmra.mxu0 %v204
  %v636 = vpop.f32.mrf.mxu0
  %v637 = vadd.f32 %v618, %v636
  %v638 = vpop.f32.mrf.mxu0
  %v639 = vadd.f32 %v620, %v638
  %640 = vmatmul.bf16.gmra.mxu0 %v211
  %v641 = vpop.f32.mrf.mxu0
  %v642 = vadd.f32 %v623, %v641
  %v643 = vpop.f32.mrf.mxu0
  %v644 = vadd.f32 %v625, %v643
  %645 = vdwg.mxu0
  %646 = vmatpush.bf16.msra.mxu0 0
  %647 = vmatpush.bf16.msra.mxu0 0
  %648 = vmatpush.bf16.msra.mxu0 0
  %649 = vmatpush.bf16.msra.mxu0 0
  %650 = vmatpush.bf16.msra.mxu0 0
  %651 = vmatpush.bf16.msra.mxu0 0
  %652 = vmatpush.bf16.msra.mxu0 %v474
  %653 = vmatpush.bf16.msra.mxu0 %v473
  %654 = vmatmul.bf16.gmra.mxu0 %v527
  %v655 = vpop.f32.mrf.mxu0
  %v656 = vadd.f32 %v637, %v655
  %v657 = vpop.f32.mrf.mxu0
  %v658 = vadd.f32 %v639, %v657
  %659 = vmatmul.bf16.gmra.mxu0 %v530
  %v660 = vpop.f32.mrf.mxu0
  %v661 = vadd.f32 %v642, %v660
  %v662 = vpop.f32.mrf.mxu0
  %v663 = vadd.f32 %v644, %v662
  %664 = vdwg.mxu0
  %665 = vst [vmem:[%s3] sm:$0xff] %v656
  %666 = vst [vmem:[%s3 + $0x8] sm:$0xff] %v658
  %667 = vst [vmem:[%s3 + $0x10] sm:$0xff] %v661
  %668 = vst [vmem:[%s3 + $0x18] sm:$0xff] %v663
  // Predicated region
  $region14: #{_lambda_.170} parent=0 // pred_check
    _
  $region15: #{_lambda_.170} parent=0 // pred_check_branch
    %670 = sbr.rel (0) target = $region17
  $region16: #{_lambda_.170} parent=0 // pred_region
    _
  $region17: #{_lambda_.170} parent=0 // pred_fallthru
    _
  // Predicated region
  $region18: #{_lambda_.170} parent=0 // pred_check
    _
  $region19: #{_lambda_.170} parent=0 // pred_check_branch
    %672 = sbr.rel (0) target = $region21
  $region20: #{_lambda_.170} parent=0 // pred_region
    _
  $region21: #{_lambda_.170} parent=0 // pred_fallthru
    _

// kernel: _lambda_.172
$region0: #{_lambda_.172}
  #allocation0 [shape = 'u32[]', space=smem, size = 0x4, offset = 0x4, fixed_abs, tag = 'smem constant byte address 0x4 - core index']
  #allocation1 [shape = 'u32[72,128]{1,0:T(1,128)}', space=vmem, size = 0x9000, scoped, tag = 'internal scratch']
  %s0 = inlined_call_operand.vmem [shape: f32[32,128], index: 0, kind: input, shape index: {}]
  %s1 = inlined_call_operand.vmem [shape: f32[32,1], index: 1, kind: output, shape index: {0}]
  %s2 = inlined_call_operand.vmem [shape: f32[32,1], index: 2, kind: output, shape index: {1}]
  %3 = xla_tuple %s1, %s2
  %s4 = sld [smem:[#allocation0]]
  $region26: #{_lambda_.172} parent=0
    _
  %s6 = ssub.s32 1, %s4
  %s7 = scalar_select 0, %s6, %s4
  // Predicated region
  $region2: #{_lambda_.172} parent=0 // pred_check
    _
  $region3: #{_lambda_.172} parent=0 // pred_check_branch
    %9 = sbr.rel (0) target = $region5
  $region4: #{_lambda_.172} parent=0 // pred_region
    _
  $region5: #{_lambda_.172} parent=0 // pred_fallthru
    _
  %p10 = scmp.eq.s32.totalorder 0, 0
  // Predicated region
  $region6: #{_lambda_.172} parent=0 // pred_check
    %p11 = pneg %p10
  $region7: #{_lambda_.172} parent=0 // pred_check_branch
    %13 = sbr.rel (%p11) target = $region9
  $region8: #{_lambda_.172} parent=0 // pred_region
    %vm14 = vcmask 7168
    %15 = vst.msk [vmem:[%s1] sm:$0xff] %vm14, 0.0
    %16 = vst.msk [vmem:[%s1 + $0x8] sm:$0xff] %vm14, 0.0
    %17 = vst.msk [vmem:[%s1 + $0x10] sm:$0xff] %vm14, 0.0
    %18 = vst.msk [vmem:[%s1 + $0x18] sm:$0xff] %vm14, 0.0
    %19 = vst.msk [vmem:[%s2] sm:$0xff] %vm14, 0.0
    %20 = vst.msk [vmem:[%s2 + $0x8] sm:$0xff] %vm14, 0.0
    %21 = vst.msk [vmem:[%s2 + $0x10] sm:$0xff] %vm14, 0.0
    %22 = vst.msk [vmem:[%s2 + $0x18] sm:$0xff] %vm14, 0.0
  $region9: #{_lambda_.172} parent=0 // pred_fallthru
    _
  %v23 = vld [vmem:[%s0] sm:$0xff]
  %v24 = vld [vmem:[%s0 + $0x8] sm:$0xff]
  %v25 = vld [vmem:[%s0 + $0x10] sm:$0xff]
  %v26 = vld [vmem:[%s0 + $0x18] sm:$0xff]
  %v27 = vld [vmem:[%s1] sm:$0xff]
  %v28 = vld [vmem:[%s1 + $0x8] sm:$0xff]
  %v29 = vld [vmem:[%s1 + $0x10] sm:$0xff]
  %v30 = vld [vmem:[%s1 + $0x18] sm:$0xff]
  %31 = vadd.xlane.f32.xlu0 %v23
  %v32 = vpop.xlane.xlu0 %31
  %33 = vadd.xlane.f32.xlu0 %v24
  %v34 = vpop.xlane.xlu0 %33
  %35 = vadd.xlane.f32.xlu0 %v25
  %v36 = vpop.xlane.xlu0 %35
  %37 = vadd.xlane.f32.xlu0 %v26
  %v38 = vpop.xlane.xlu0 %37
  %v39 = vadd.f32 %v27, %v32
  %v40 = vadd.f32 %v28, %v34
  %v41 = vadd.f32 %v29, %v36
  %v42 = vadd.f32 %v30, %v38
  %vm43 = vcmask 7168
  %44 = vst.msk [vmem:[%s1] sm:$0xff] %vm43, %v39
  %45 = vst.msk [vmem:[%s1 + $0x8] sm:$0xff] %vm43, %v40
  %46 = vst.msk [vmem:[%s1 + $0x10] sm:$0xff] %vm43, %v41
  %47 = vst.msk [vmem:[%s1 + $0x18] sm:$0xff] %vm43, %v42
  %v48 = vld [vmem:[%s2] sm:$0xff]
  %v49 = vld [vmem:[%s2 + $0x8] sm:$0xff]
  %v50 = vld [vmem:[%s2 + $0x10] sm:$0xff]
  %v51 = vld [vmem:[%s2 + $0x18] sm:$0xff]
  %v52 = vmul.f32 %v23, %v23
  %v53 = vmul.f32 %v24, %v24
  %v54 = vmul.f32 %v25, %v25
  %v55 = vmul.f32 %v26, %v26
  %56 = vadd.xlane.f32.xlu0 %v52
  %v57 = vpop.xlane.xlu0 %56
  %58 = vadd.xlane.f32.xlu0 %v53
  %v59 = vpop.xlane.xlu0 %58
  %60 = vadd.xlane.f32.xlu0 %v54
  %v61 = vpop.xlane.xlu0 %60
  %62 = vadd.xlane.f32.xlu0 %v55
  %v63 = vpop.xlane.xlu0 %62
  %v64 = vadd.f32 %v48, %v57
  %v65 = vadd.f32 %v49, %v59
  %v66 = vadd.f32 %v50, %v61
  %v67 = vadd.f32 %v51, %v63
  %68 = vst.msk [vmem:[%s2] sm:$0xff] %vm43, %v64
  %69 = vst.msk [vmem:[%s2 + $0x8] sm:$0xff] %vm43, %v65
  %70 = vst.msk [vmem:[%s2 + $0x10] sm:$0xff] %vm43, %v66
  %71 = vst.msk [vmem:[%s2 + $0x18] sm:$0xff] %vm43, %v67
  // Predicated region
  $region10: #{_lambda_.172} parent=0 // pred_check
    _
  $region11: #{_lambda_.172} parent=0 // pred_check_branch
    %73 = sbr.rel (0) target = $region13
  $region12: #{_lambda_.172} parent=0 // pred_region
    _
  $region13: #{_lambda_.172} parent=0 // pred_fallthru
    _
  // Predicated region
  $region14: #{_lambda_.172} parent=0 // pred_check
    _
  $region15: #{_lambda_.172} parent=0 // pred_check_branch
    %75 = sbr.rel (0) target = $region17
  $region16: #{_lambda_.172} parent=0 // pred_region
    _
  $region17: #{_lambda_.172} parent=0 // pred_fallthru
    _
  // Predicated region
  $region18: #{_lambda_.172} parent=0 // pred_check
    _
  $region19: #{_lambda_.172} parent=0 // pred_check_branch
    %77 = sbr.rel (0) target = $region21
  $region20: #{_lambda_.172} parent=0 // pred_region
    _
  $region21: #{_lambda_.172} parent=0 // pred_fallthru
    _
  // Predicated region
  $region22: #{_lambda_.172} parent=0 // pred_check
    _
  $region23: #{_lambda_.172} parent=0 // pred_check_branch
    %79 = sbr.rel (0) target = $region25
  $region24: #{_lambda_.172} parent=0 // pred_region
    _
  $region25: #{_lambda_.172} parent=0 // pred_fallthru
    _

// kernel: _lambda_.173
$region0: #{_lambda_.173}
  #allocation0 [shape = 'u32[]', space=smem, size = 0x4, offset = 0x4, fixed_abs, tag = 'smem constant byte address 0x4 - core index']
  #allocation1 [shape = 'u32[72,128]{1,0:T(1,128)}', space=vmem, size = 0x9000, scoped, tag = 'internal scratch']
  %s0 = inlined_call_operand.vmem [shape: f32[32,128], index: 0, kind: input, shape index: {}]
  %s1 = inlined_call_operand.vmem [shape: f32[32,1], index: 1, kind: input, shape index: {}]
  %s2 = inlined_call_operand.vmem [shape: f32[32,1], index: 2, kind: input, shape index: {}]
  %s3 = inlined_call_operand.vmem [shape: f32[32,128], index: 3, kind: output, shape index: {}]
  %s4 = sld [smem:[#allocation0]]
  $region22: #{_lambda_.173} parent=0
    _
  %s6 = ssub.s32 1, %s4
  %s7 = scalar_select 0, %s6, %s4
  // Predicated region
  $region2: #{_lambda_.173} parent=0 // pred_check
    _
  $region3: #{_lambda_.173} parent=0 // pred_check_branch
    %9 = sbr.rel (0) target = $region5
  $region4: #{_lambda_.173} parent=0 // pred_region
    _
  $region5: #{_lambda_.173} parent=0 // pred_fallthru
    _
  // Predicated region
  $region6: #{_lambda_.173} parent=0 // pred_check
    _
  $region7: #{_lambda_.173} parent=0 // pred_check_branch
    %11 = sbr.rel (0) target = $region9
  $region8: #{_lambda_.173} parent=0 // pred_region
    _
  $region9: #{_lambda_.173} parent=0 // pred_fallthru
    _
  // Predicated region
  $region10: #{_lambda_.173} parent=0 // pred_check
    _
  $region11: #{_lambda_.173} parent=0 // pred_check_branch
    %13 = sbr.rel (0) target = $region13
  $region12: #{_lambda_.173} parent=0 // pred_region
    _
  $region13: #{_lambda_.173} parent=0 // pred_fallthru
    _
  %v14 = vld [vmem:[%s0] sm:$0xff]
  %v15 = vld [vmem:[%s0 + $0x8] sm:$0xff]
  %v16 = vld [vmem:[%s0 + $0x10] sm:$0xff]
  %v17 = vld [vmem:[%s0 + $0x18] sm:$0xff]
  %v18 = vld [vmem:[%s1] sm:$0xff]
  %v19 = vld [vmem:[%s1 + $0x8] sm:$0xff]
  %v20 = vld [vmem:[%s1 + $0x10] sm:$0xff]
  %v21 = vld [vmem:[%s1 + $0x18] sm:$0xff]
  %v22 = vmul.f32 %v18, 0.03125
  %v23 = vmul.f32 %v19, 0.03125
  %v24 = vmul.f32 %v20, 0.03125
  %v25 = vmul.f32 %v21, 0.03125
  %v26 = vld [vmem:[%s2] sm:$0xff]
  %v27 = vld [vmem:[%s2 + $0x8] sm:$0xff]
  %v28 = vld [vmem:[%s2 + $0x10] sm:$0xff]
  %v29 = vld [vmem:[%s2 + $0x18] sm:$0xff]
  %v30 = vmul.f32 %v26, 0.03125
  %v31 = vmul.f32 %v27, 0.03125
  %v32 = vmul.f32 %v28, 0.03125
  %v33 = vmul.f32 %v29, 0.03125
  %v34 = vmul.f32 %v22, %v22
  %v35 = vmul.f32 %v23, %v23
  %v36 = vmul.f32 %v24, %v24
  %v37 = vmul.f32 %v25, %v25
  %v38 = vsub.f32 %v30, %v34
  %v39 = vsub.f32 %v31, %v35
  %v40 = vsub.f32 %v32, %v36
  %v41 = vsub.f32 %v33, %v37
  %v42 = vmax.f32 %v38, 0.0
  %v43 = vmax.f32 %v39, 0.0
  %v44 = vmax.f32 %v40, 0.0
  %v45 = vmax.f32 %v41, 0.0
  %47 = vset.pattern.permute.xlu0 0
  %48 = vperm.xlu0 %47, %v22
  %v49 = vpop.permute.xlu0 %48
  %52 = vset.pattern.permute.xlu0 0
  %53 = vperm.xlu0 %52, %v23
  %v54 = vpop.permute.xlu0 %53
  %57 = vset.pattern.permute.xlu0 0
  %58 = vperm.xlu0 %57, %v24
  %v59 = vpop.permute.xlu0 %58
  %62 = vset.pattern.permute.xlu0 0
  %63 = vperm.xlu0 %62, %v25
  %v64 = vpop.permute.xlu0 %63
  %v66 = vsub.f32 %v14, %v49
  %v67 = vsub.f32 %v15, %v54
  %v68 = vsub.f32 %v16, %v59
  %v69 = vsub.f32 %v17, %v64
  %v70 = vadd.f32 %v42, 1e-05
  %v71 = vadd.f32 %v43, 1e-05
  %v72 = vadd.f32 %v44, 1e-05
  %v73 = vadd.f32 %v45, 1e-05
  %v74 = vrsqrt.pop %v70
  %v75 = vmul.f32 %v74, %v70
  %v76 = vmul.f32 %v75, %v74
  %v77 = vmul.f32 0.5, %v76
  %v78 = vsub.f32 1.5, %v77
  %v79 = vmul.f32 %v74, %v78
  %vm80 = vweird.f32 %v70
  %vm81 = vweird.f32 %v74
  %vm82 = vmor %vm80, %vm81
  %v83 = vsel %vm82, %v74, %v79
  %v84 = vrsqrt.pop %v71
  %v85 = vmul.f32 %v84, %v71
  %v86 = vmul.f32 %v85, %v84
  %v87 = vmul.f32 0.5, %v86
  %v88 = vsub.f32 1.5, %v87
  %v89 = vmul.f32 %v84, %v88
  %vm90 = vweird.f32 %v71
  %vm91 = vweird.f32 %v84
  %vm92 = vmor %vm90, %vm91
  %v93 = vsel %vm92, %v84, %v89
  %v94 = vrsqrt.pop %v72
  %v95 = vmul.f32 %v94, %v72
  %v96 = vmul.f32 %v95, %v94
  %v97 = vmul.f32 0.5, %v96
  %v98 = vsub.f32 1.5, %v97
  %v99 = vmul.f32 %v94, %v98
  %vm100 = vweird.f32 %v72
  %vm101 = vweird.f32 %v94
  %vm102 = vmor %vm100, %vm101
  %v103 = vsel %vm102, %v94, %v99
  %v104 = vrsqrt.pop %v73
  %v105 = vmul.f32 %v104, %v73
  %v106 = vmul.f32 %v105, %v104
  %v107 = vmul.f32 0.5, %v106
  %v108 = vsub.f32 1.5, %v107
  %v109 = vmul.f32 %v104, %v108
  %vm110 = vweird.f32 %v73
  %vm111 = vweird.f32 %v104
  %vm112 = vmor %vm110, %vm111
  %v113 = vsel %vm112, %v104, %v109
  %115 = vset.pattern.permute.xlu0 0
  %116 = vperm.xlu0 %115, %v83
  %v117 = vpop.permute.xlu0 %116
  %120 = vset.pattern.permute.xlu0 0
  %121 = vperm.xlu0 %120, %v93
  %v122 = vpop.permute.xlu0 %121
  %125 = vset.pattern.permute.xlu0 0
  %126 = vperm.xlu0 %125, %v103
  %v127 = vpop.permute.xlu0 %126
  %130 = vset.pattern.permute.xlu0 0
  %131 = vperm.xlu0 %130, %v113
  %v132 = vpop.permute.xlu0 %131
  %v134 = vmul.f32 %v66, %v117
  %v135 = vmul.f32 %v67, %v122
  %v136 = vmul.f32 %v68, %v127
  %v137 = vmul.f32 %v69, %v132
  %vm138 = vcmp.gt.f32.partialorder %v134, 0.0
  %vm139 = vcmp.gt.f32.partialorder %v135, 0.0
  %vm140 = vcmp.gt.f32.partialorder %v136, 0.0
  %vm141 = vcmp.gt.f32.partialorder %v137, 0.0
  %v142 = vmul.f32 %v134, 0.2
  %v143 = vmul.f32 %v135, 0.2
  %v144 = vmul.f32 %v136, 0.2
  %v145 = vmul.f32 %v137, 0.2
  %v146 = vsel %vm138, %v134, %v142
  %v147 = vsel %vm139, %v135, %v143
  %v148 = vsel %vm140, %v136, %v144
  %v149 = vsel %vm141, %v137, %v145
  %150 = vst [vmem:[%s3] sm:$0xff] %v146
  %151 = vst [vmem:[%s3 + $0x8] sm:$0xff] %v147
  %152 = vst [vmem:[%s3 + $0x10] sm:$0xff] %v148
  %153 = vst [vmem:[%s3 + $0x18] sm:$0xff] %v149
  // Predicated region
  $region14: #{_lambda_.173} parent=0 // pred_check
    _
  $region15: #{_lambda_.173} parent=0 // pred_check_branch
    %155 = sbr.rel (0) target = $region17
  $region16: #{_lambda_.173} parent=0 // pred_region
    _
  $region17: #{_lambda_.173} parent=0 // pred_fallthru
    _
  // Predicated region
  $region18: #{_lambda_.173} parent=0 // pred_check
    _
  $region19: #{_lambda_.173} parent=0 // pred_check_branch
    %157 = sbr.rel (0) target = $region21
  $region20: #{_lambda_.173} parent=0 // pred_region
    _
  $region21: #{_lambda_.173} parent=0 // pred_fallthru
    _

// kernel: _lambda_.171
$region0: #{_lambda_.171}
  #allocation0 [shape = 'u32[]', space=smem, size = 0x4, offset = 0x4, fixed_abs, tag = 'smem constant byte address 0x4 - core index']
  #allocation1 [shape = 'u32[72,128]{1,0:T(1,128)}', space=vmem, size = 0x9000, scoped, tag = 'internal scratch']
  %s0 = inlined_call_operand.vmem [shape: bf16[32,288], index: 0, kind: input, shape index: {}]
  %s1 = inlined_call_operand.vmem [shape: bf16[288,128], index: 1, kind: input, shape index: {}]
  %s2 = inlined_call_operand.vmem [shape: f32[32,1], index: 2, kind: input, shape index: {}]
  %s3 = inlined_call_operand.vmem [shape: f32[32,128], index: 3, kind: output, shape index: {}]
  %s4 = sld [smem:[#allocation0]]
  $region22: #{_lambda_.171} parent=0
    _
  %s6 = ssub.s32 1, %s4
  %s7 = scalar_select 0, %s6, %s4
  // Predicated region
  $region2: #{_lambda_.171} parent=0 // pred_check
    _
  $region3: #{_lambda_.171} parent=0 // pred_check_branch
    %9 = sbr.rel (0) target = $region5
  $region4: #{_lambda_.171} parent=0 // pred_region
    _
  $region5: #{_lambda_.171} parent=0 // pred_fallthru
    _
  // Predicated region
  $region6: #{_lambda_.171} parent=0 // pred_check
    _
  $region7: #{_lambda_.171} parent=0 // pred_check_branch
    %11 = sbr.rel (0) target = $region9
  $region8: #{_lambda_.171} parent=0 // pred_region
    _
  $region9: #{_lambda_.171} parent=0 // pred_fallthru
    _
  // Predicated region
  $region10: #{_lambda_.171} parent=0 // pred_check
    _
  $region11: #{_lambda_.171} parent=0 // pred_check_branch
    %13 = sbr.rel (0) target = $region13
  $region12: #{_lambda_.171} parent=0 // pred_region
    _
  $region13: #{_lambda_.171} parent=0 // pred_fallthru
    _
  %v15 = vld [vmem:[%s0] sm:$0xff]
  %v16 = vld [vmem:[%s0 + $0x8] sm:$0xf]
  %v17 = vld [vmem:[%s0 + $0xc] sm:$0xff]
  %v18 = vld [vmem:[%s0 + $0x14] sm:$0xf]
  %v19 = vld [vmem:[%s0 + $0x18] sm:$0xff]
  %v20 = vld [vmem:[%s0 + $0x20] sm:$0xf]
  %v21 = vld [vmem:[%s0 + $0x24] sm:$0xff]
  %v22 = vld [vmem:[%s0 + $0x2c] sm:$0xf]
  %v23 = vld [vmem:[%s1] sm:$0xf]
  %v24 = vld [vmem:[%s1 + $0x4] sm:$0xf]
  %v25 = vld [vmem:[%s1 + $0x8] sm:$0xf]
  %v26 = vld [vmem:[%s1 + $0xc] sm:$0xf]
  %v27 = vld [vmem:[%s1 + $0x10] sm:$0xf]
  %v28 = vld [vmem:[%s1 + $0x14] sm:$0xf]
  %v29 = vld [vmem:[%s1 + $0x18] sm:$0xf]
  %v30 = vld [vmem:[%s1 + $0x1c] sm:$0xf]
  %v31 = vld [vmem:[%s1 + $0x20] sm:$0xf]
  %v32 = vld [vmem:[%s1 + $0x24] sm:$0xf]
  %v33 = vld [vmem:[%s1 + $0x28] sm:$0xf]
  %v34 = vld [vmem:[%s1 + $0x2c] sm:$0xf]
  %v35 = vld [vmem:[%s1 + $0x30] sm:$0xf]
  %v36 = vld [vmem:[%s1 + $0x34] sm:$0xf]
  %v37 = vld [vmem:[%s1 + $0x38] sm:$0xf]
  %v38 = vld [vmem:[%s1 + $0x3c] sm:$0xf]
  %v39 = vld [vmem:[%s1 + $0x40] sm:$0xf]
  %v40 = vld [vmem:[%s1 + $0x44] sm:$0xf]
  %v41 = vld [vmem:[%s1 + $0x48] sm:$0xf]
  %v42 = vld [vmem:[%s1 + $0x4c] sm:$0xf]
  %v43 = vld [vmem:[%s1 + $0x50] sm:$0xf]
  %v44 = vld [vmem:[%s1 + $0x54] sm:$0xf]
  %v45 = vld [vmem:[%s1 + $0x58] sm:$0xf]
  %v46 = vld [vmem:[%s1 + $0x5c] sm:$0xf]
  %v47 = vld [vmem:[%s1 + $0x60] sm:$0xf]
  %v48 = vld [vmem:[%s1 + $0x64] sm:$0xf]
  %v49 = vld [vmem:[%s1 + $0x68] sm:$0xf]
  %v50 = vld [vmem:[%s1 + $0x6c] sm:$0xf]
  %v51 = vld [vmem:[%s1 + $0x70] sm:$0xf]
  %v52 = vld [vmem:[%s1 + $0x74] sm:$0xf]
  %v53 = vld [vmem:[%s1 + $0x78] sm:$0xf]
  %v54 = vld [vmem:[%s1 + $0x7c] sm:$0xf]
  %v55 = vld [vmem:[%s1 + $0x80] sm:$0xf]
  %v56 = vld [vmem:[%s1 + $0x84] sm:$0xf]
  %v57 = vld [vmem:[%s1 + $0x88] sm:$0xf]
  %v58 = vld [vmem:[%s1 + $0x8c] sm:$0xf]
  %v59 = vld [vmem:[%s2] sm:$0xff]
  %v60 = vld [vmem:[%s2 + $0x8] sm:$0xff]
  %v61 = vld [vmem:[%s2 + $0x10] sm:$0xff]
  %v62 = vld [vmem:[%s2 + $0x18] sm:$0xff]
  %64 = vset.pattern.permute.xlu0 0
  %65 = vperm.xlu0 %64, %v59
  %v66 = vpop.permute.xlu0 %65
  %69 = vset.pattern.permute.xlu0 0
  %70 = vperm.xlu0 %69, %v60
  %v71 = vpop.permute.xlu0 %70
  %74 = vset.pattern.permute.xlu0 0
  %75 = vperm.xlu0 %74, %v61
  %v76 = vpop.permute.xlu0 %75
  %79 = vset.pattern.permute.xlu0 0
  %80 = vperm.xlu0 %79, %v62
  %v81 = vpop.permute.xlu0 %80
  %v91 = vunpack.c.l.b16 %v15
  %v92 = vunpack.c.h.b16 %v15
  %v93 = vunpack.c.l.b16 %v16
  %v94 = vunpack.c.l.b16 %v17
  %v95 = vunpack.c.h.b16 %v17
  %v96 = vunpack.c.l.b16 %v18
  %v97 = vunpack.c.l.b16 %v19
  %v98 = vunpack.c.h.b16 %v19
  %v99 = vunpack.c.l.b16 %v20
  %v100 = vunpack.c.l.b16 %v21
  %v101 = vunpack.c.h.b16 %v21
  %v102 = vunpack.c.l.b16 %v22
  %v103 = vpack.c.b16 %v94, %v91
  %v104 = vpack.c.b16 %v95, %v92
  %v105 = vpack.c.b16 %v96, %v93
  %v106 = vpack.c.b16 %v100, %v97
  %v107 = vpack.c.b16 %v101, %v98
  %v108 = vpack.c.b16 %v102, %v99
  %v149 = vunpack.c.l.b16 %v23
  %v150 = vunpack.c.l.b16 %v24
  %v151 = vunpack.c.l.b16 %v25
  %v152 = vunpack.c.l.b16 %v26
  %v153 = vunpack.c.l.b16 %v27
  %v154 = vunpack.c.l.b16 %v28
  %v155 = vunpack.c.l.b16 %v29
  %v156 = vunpack.c.l.b16 %v30
  %v157 = vunpack.c.l.b16 %v31
  %v158 = vunpack.c.l.b16 %v32
  %v159 = vunpack.c.l.b16 %v33
  %v160 = vunpack.c.l.b16 %v34
  %v161 = vunpack.c.l.b16 %v35
  %v162 = vunpack.c.l.b16 %v36
  %v163 = vunpack.c.l.b16 %v37
  %v164 = vunpack.c.l.b16 %v38
  %v165 = vunpack.c.l.b16 %v39
  %v166 = vunpack.c.l.b16 %v40
  %v167 = vunpack.c.l.b16 %v41
  %v168 = vunpack.c.l.b16 %v42
  %v169 = vunpack.c.l.b16 %v43
  %v170 = vunpack.c.l.b16 %v44
  %v171 = vunpack.c.l.b16 %v45
  %v172 = vunpack.c.l.b16 %v46
  %v173 = vunpack.c.l.b16 %v47
  %v174 = vunpack.c.l.b16 %v48
  %v175 = vunpack.c.l.b16 %v49
  %v176 = vunpack.c.l.b16 %v50
  %v177 = vunpack.c.l.b16 %v51
  %v178 = vunpack.c.l.b16 %v52
  %v179 = vunpack.c.l.b16 %v53
  %v180 = vunpack.c.l.b16 %v54
  %v181 = vunpack.c.l.b16 %v55
  %v182 = vunpack.c.l.b16 %v56
  %v183 = vunpack.c.l.b16 %v57
  %v184 = vunpack.c.l.b16 %v58
  %v185 = vpack.c.b16 %v150, %v149
  %v186 = vpack.c.b16 %v152, %v151
  %v187 = vpack.c.b16 %v154, %v153
  %v188 = vpack.c.b16 %v156, %v155
  %v189 = vpack.c.b16 %v158, %v157
  %v190 = vpack.c.b16 %v160, %v159
  %v191 = vpack.c.b16 %v162, %v161
  %v192 = vpack.c.b16 %v164, %v163
  %v193 = vpack.c.b16 %v166, %v165
  %v194 = vpack.c.b16 %v168, %v167
  %v195 = vpack.c.b16 %v170, %v169
  %v196 = vpack.c.b16 %v172, %v171
  %v197 = vpack.c.b16 %v174, %v173
  %v198 = vpack.c.b16 %v176, %v175
  %v199 = vpack.c.b16 %v178, %v177
  %v200 = vpack.c.b16 %v180, %v179
  %v201 = vpack.c.b16 %v182, %v181
  %v202 = vpack.c.b16 %v184, %v183
  %vm221 = vcmask 261120
  %v223 = vsel %vm221, %v105, 0
  %v226 = vsel %vm221, %v108, 0
  %228 = vmatpush.bf16.msra.mxu0 %v192
  %229 = vmatpush.bf16.msra.mxu0 %v191
  %230 = vmatpush.bf16.msra.mxu0 %v190
  %231 = vmatpush.bf16.msra.mxu0 %v189
  %232 = vmatpush.bf16.msra.mxu0 %v188
  %233 = vmatpush.bf16.msra.mxu0 %v187
  %234 = vmatpush.bf16.msra.mxu0 %v186
  %235 = vmatpush.bf16.msra.mxu0 %v185
  %236 = vmatmul.bf16.gmra.mxu0 %v103
  %v237 = vpop.f32.mrf.mxu0
  %v238 = vadd.f32 %v66, %v237
  %v239 = vpop.f32.mrf.mxu0
  %v240 = vadd.f32 %v71, %v239
  %241 = vmatmul.bf16.gmra.mxu0 %v106
  %v242 = vpop.f32.mrf.mxu0
  %v243 = vadd.f32 %v76, %v242
  %v244 = vpop.f32.mrf.mxu0
  %v245 = vadd.f32 %v81, %v244
  %246 = vdwg.mxu0
  %247 = vmatpush.bf16.msra.mxu0 %v200
  %248 = vmatpush.bf16.msra.mxu0 %v199
  %249 = vmatpush.bf16.msra.mxu0 %v198
  %250 = vmatpush.bf16.msra.mxu0 %v197
  %251 = vmatpush.bf16.msra.mxu0 %v196
  %252 = vmatpush.bf16.msra.mxu0 %v195
  %253 = vmatpush.bf16.msra.mxu0 %v194
  %254 = vmatpush.bf16.msra.mxu0 %v193
  %255 = vmatmul.bf16.gmra.mxu0 %v104
  %v256 = vpop.f32.mrf.mxu0
  %v257 = vadd.f32 %v238, %v256
  %v258 = vpop.f32.mrf.mxu0
  %v259 = vadd.f32 %v240, %v258
  %260 = vmatmul.bf16.gmra.mxu0 %v107
  %v261 = vpop.f32.mrf.mxu0
  %v262 = vadd.f32 %v243, %v261
  %v263 = vpop.f32.mrf.mxu0
  %v264 = vadd.f32 %v245, %v263
  %265 = vdwg.mxu0
  %266 = vmatpush.bf16.msra.mxu0 0
  %267 = vmatpush.bf16.msra.mxu0 0
  %268 = vmatpush.bf16.msra.mxu0 0
  %269 = vmatpush.bf16.msra.mxu0 0
  %270 = vmatpush.bf16.msra.mxu0 0
  %271 = vmatpush.bf16.msra.mxu0 0
  %272 = vmatpush.bf16.msra.mxu0 %v202
  %273 = vmatpush.bf16.msra.mxu0 %v201
  %274 = vmatmul.bf16.gmra.mxu0 %v223
  %v275 = vpop.f32.mrf.mxu0
  %v276 = vadd.f32 %v257, %v275
  %v277 = vpop.f32.mrf.mxu0
  %v278 = vadd.f32 %v259, %v277
  %279 = vmatmul.bf16.gmra.mxu0 %v226
  %v280 = vpop.f32.mrf.mxu0
  %v281 = vadd.f32 %v262, %v280
  %v282 = vpop.f32.mrf.mxu0
  %v283 = vadd.f32 %v264, %v282
  %284 = vdwg.mxu0
  %285 = vst [vmem:[%s3] sm:$0xff] %v276
  %286 = vst [vmem:[%s3 + $0x8] sm:$0xff] %v278
  %287 = vst [vmem:[%s3 + $0x10] sm:$0xff] %v281
  %288 = vst [vmem:[%s3 + $0x18] sm:$0xff] %v283
  // Predicated region
  $region14: #{_lambda_.171} parent=0 // pred_check
    _
  $region15: #{_lambda_.171} parent=0 // pred_check_branch
    %290 = sbr.rel (0) target = $region17
  $region16: #{_lambda_.171} parent=0 // pred_region
    _
  $region17: #{_lambda_.171} parent=0 // pred_fallthru
    _
  // Predicated region
  $region18: #{_lambda_.171} parent=0 // pred_check
    _
  $region19: #{_lambda_.171} parent=0 // pred_check_branch
    %292 = sbr.rel (0) target = $region21
  $region20: #{_lambda_.171} parent=0 // pred_region
    _
  $region21: #{_lambda_.171} parent=0 // pred_fallthru
    _

// kernel: _lambda_.176
$region0: #{_lambda_.176}
  #allocation0 [shape = 'u32[]', space=smem, size = 0x4, offset = 0x4, fixed_abs, tag = 'smem constant byte address 0x4 - core index']
  #allocation1 [shape = 'u32[72,128]{1,0:T(1,128)}', space=vmem, size = 0x9000, scoped, tag = 'internal scratch']
  %s0 = inlined_call_operand.vmem [shape: f32[32,128], index: 0, kind: input, shape index: {}]
  %s1 = inlined_call_operand.vmem [shape: f32[32,1], index: 1, kind: input, shape index: {}]
  %s2 = inlined_call_operand.vmem [shape: f32[32,1], index: 2, kind: input, shape index: {}]
  %s3 = inlined_call_operand.vmem [shape: f32[32,128], index: 3, kind: input, shape index: {}]
  %s4 = inlined_call_operand.vmem [shape: f32[32,128], index: 4, kind: output, shape index: {}]
  %s5 = sld [smem:[#allocation0]]
  $region26: #{_lambda_.176} parent=0
    _
  %s7 = ssub.s32 1, %s5
  %s8 = scalar_select 0, %s7, %s5
  // Predicated region
  $region2: #{_lambda_.176} parent=0 // pred_check
    _
  $region3: #{_lambda_.176} parent=0 // pred_check_branch
    %10 = sbr.rel (0) target = $region5
  $region4: #{_lambda_.176} parent=0 // pred_region
    _
  $region5: #{_lambda_.176} parent=0 // pred_fallthru
    _
  // Predicated region
  $region6: #{_lambda_.176} parent=0 // pred_check
    _
  $region7: #{_lambda_.176} parent=0 // pred_check_branch
    %12 = sbr.rel (0) target = $region9
  $region8: #{_lambda_.176} parent=0 // pred_region
    _
  $region9: #{_lambda_.176} parent=0 // pred_fallthru
    _
  // Predicated region
  $region10: #{_lambda_.176} parent=0 // pred_check
    _
  $region11: #{_lambda_.176} parent=0 // pred_check_branch
    %14 = sbr.rel (0) target = $region13
  $region12: #{_lambda_.176} parent=0 // pred_region
    _
  $region13: #{_lambda_.176} parent=0 // pred_fallthru
    _
  // Predicated region
  $region14: #{_lambda_.176} parent=0 // pred_check
    _
  $region15: #{_lambda_.176} parent=0 // pred_check_branch
    %16 = sbr.rel (0) target = $region17
  $region16: #{_lambda_.176} parent=0 // pred_region
    _
  $region17: #{_lambda_.176} parent=0 // pred_fallthru
    _
  %v17 = vld [vmem:[%s0] sm:$0xff]
  %v18 = vld [vmem:[%s0 + $0x8] sm:$0xff]
  %v19 = vld [vmem:[%s0 + $0x10] sm:$0xff]
  %v20 = vld [vmem:[%s0 + $0x18] sm:$0xff]
  %v21 = vld [vmem:[%s1] sm:$0xff]
  %v22 = vld [vmem:[%s1 + $0x8] sm:$0xff]
  %v23 = vld [vmem:[%s1 + $0x10] sm:$0xff]
  %v24 = vld [vmem:[%s1 + $0x18] sm:$0xff]
  %v25 = vmul.f32 %v21, 0.03125
  %v26 = vmul.f32 %v22, 0.03125
  %v27 = vmul.f32 %v23, 0.03125
  %v28 = vmul.f32 %v24, 0.03125
  %v29 = vld [vmem:[%s2] sm:$0xff]
  %v30 = vld [vmem:[%s2 + $0x8] sm:$0xff]
  %v31 = vld [vmem:[%s2 + $0x10] sm:$0xff]
  %v32 = vld [vmem:[%s2 + $0x18] sm:$0xff]
  %v33 = vmul.f32 %v29, 0.03125
  %v34 = vmul.f32 %v30, 0.03125
  %v35 = vmul.f32 %v31, 0.03125
  %v36 = vmul.f32 %v32, 0.03125
  %v37 = vmul.f32 %v25, %v25
  %v38 = vmul.f32 %v26, %v26
  %v39 = vmul.f32 %v27, %v27
  %v40 = vmul.f32 %v28, %v28
  %v41 = vsub.f32 %v33, %v37
  %v42 = vsub.f32 %v34, %v38
  %v43 = vsub.f32 %v35, %v39
  %v44 = vsub.f32 %v36, %v40
  %v45 = vmax.f32 %v41, 0.0
  %v46 = vmax.f32 %v42, 0.0
  %v47 = vmax.f32 %v43, 0.0
  %v48 = vmax.f32 %v44, 0.0
  %50 = vset.pattern.permute.xlu0 0
  %51 = vperm.xlu0 %50, %v25
  %v52 = vpop.permute.xlu0 %51
  %55 = vset.pattern.permute.xlu0 0
  %56 = vperm.xlu0 %55, %v26
  %v57 = vpop.permute.xlu0 %56
  %60 = vset.pattern.permute.xlu0 0
  %61 = vperm.xlu0 %60, %v27
  %v62 = vpop.permute.xlu0 %61
  %65 = vset.pattern.permute.xlu0 0
  %66 = vperm.xlu0 %65, %v28
  %v67 = vpop.permute.xlu0 %66
  %v69 = vsub.f32 %v17, %v52
  %v70 = vsub.f32 %v18, %v57
  %v71 = vsub.f32 %v19, %v62
  %v72 = vsub.f32 %v20, %v67
  %v73 = vadd.f32 %v45, 1e-05
  %v74 = vadd.f32 %v46, 1e-05
  %v75 = vadd.f32 %v47, 1e-05
  %v76 = vadd.f32 %v48, 1e-05
  %v77 = vrsqrt.pop %v73
  %v78 = vmul.f32 %v77, %v73
  %v79 = vmul.f32 %v78, %v77
  %v80 = vmul.f32 0.5, %v79
  %v81 = vsub.f32 1.5, %v80
  %v82 = vmul.f32 %v77, %v81
  %vm83 = vweird.f32 %v73
  %vm84 = vweird.f32 %v77
  %vm85 = vmor %vm83, %vm84
  %v86 = vsel %vm85, %v77, %v82
  %v87 = vrsqrt.pop %v74
  %v88 = vmul.f32 %v87, %v74
  %v89 = vmul.f32 %v88, %v87
  %v90 = vmul.f32 0.5, %v89
  %v91 = vsub.f32 1.5, %v90
  %v92 = vmul.f32 %v87, %v91
  %vm93 = vweird.f32 %v74
  %vm94 = vweird.f32 %v87
  %vm95 = vmor %vm93, %vm94
  %v96 = vsel %vm95, %v87, %v92
  %v97 = vrsqrt.pop %v75
  %v98 = vmul.f32 %v97, %v75
  %v99 = vmul.f32 %v98, %v97
  %v100 = vmul.f32 0.5, %v99
  %v101 = vsub.f32 1.5, %v100
  %v102 = vmul.f32 %v97, %v101
  %vm103 = vweird.f32 %v75
  %vm104 = vweird.f32 %v97
  %vm105 = vmor %vm103, %vm104
  %v106 = vsel %vm105, %v97, %v102
  %v107 = vrsqrt.pop %v76
  %v108 = vmul.f32 %v107, %v76
  %v109 = vmul.f32 %v108, %v107
  %v110 = vmul.f32 0.5, %v109
  %v111 = vsub.f32 1.5, %v110
  %v112 = vmul.f32 %v107, %v111
  %vm113 = vweird.f32 %v76
  %vm114 = vweird.f32 %v107
  %vm115 = vmor %vm113, %vm114
  %v116 = vsel %vm115, %v107, %v112
  %118 = vset.pattern.permute.xlu0 0
  %119 = vperm.xlu0 %118, %v86
  %v120 = vpop.permute.xlu0 %119
  %123 = vset.pattern.permute.xlu0 0
  %124 = vperm.xlu0 %123, %v96
  %v125 = vpop.permute.xlu0 %124
  %128 = vset.pattern.permute.xlu0 0
  %129 = vperm.xlu0 %128, %v106
  %v130 = vpop.permute.xlu0 %129
  %133 = vset.pattern.permute.xlu0 0
  %134 = vperm.xlu0 %133, %v116
  %v135 = vpop.permute.xlu0 %134
  %v137 = vmul.f32 %v69, %v120
  %v138 = vmul.f32 %v70, %v125
  %v139 = vmul.f32 %v71, %v130
  %v140 = vmul.f32 %v72, %v135
  %v141 = vld [vmem:[%s3] sm:$0xff]
  %v142 = vld [vmem:[%s3 + $0x8] sm:$0xff]
  %v143 = vld [vmem:[%s3 + $0x10] sm:$0xff]
  %v144 = vld [vmem:[%s3 + $0x18] sm:$0xff]
  %v145 = vadd.f32 %v137, %v141
  %v146 = vadd.f32 %v138, %v142
  %v147 = vadd.f32 %v139, %v143
  %v148 = vadd.f32 %v140, %v144
  %vm149 = vcmp.gt.f32.partialorder %v145, 0.0
  %vm150 = vcmp.gt.f32.partialorder %v146, 0.0
  %vm151 = vcmp.gt.f32.partialorder %v147, 0.0
  %vm152 = vcmp.gt.f32.partialorder %v148, 0.0
  %v153 = vmul.f32 %v145, 0.2
  %v154 = vmul.f32 %v146, 0.2
  %v155 = vmul.f32 %v147, 0.2
  %v156 = vmul.f32 %v148, 0.2
  %v157 = vsel %vm149, %v145, %v153
  %v158 = vsel %vm150, %v146, %v154
  %v159 = vsel %vm151, %v147, %v155
  %v160 = vsel %vm152, %v148, %v156
  %161 = vst [vmem:[%s4] sm:$0xff] %v157
  %162 = vst [vmem:[%s4 + $0x8] sm:$0xff] %v158
  %163 = vst [vmem:[%s4 + $0x10] sm:$0xff] %v159
  %164 = vst [vmem:[%s4 + $0x18] sm:$0xff] %v160
  // Predicated region
  $region18: #{_lambda_.176} parent=0 // pred_check
    _
  $region19: #{_lambda_.176} parent=0 // pred_check_branch
    %166 = sbr.rel (0) target = $region21
  $region20: #{_lambda_.176} parent=0 // pred_region
    _
  $region21: #{_lambda_.176} parent=0 // pred_fallthru
    _
  // Predicated region
  $region22: #{_lambda_.176} parent=0 // pred_check
    _
  $region23: #{_lambda_.176} parent=0 // pred_check_branch
    %168 = sbr.rel (0) target = $region25
  $region24: #{_lambda_.176} parent=0 // pred_region
    _
  $region25: #{_lambda_.176} parent=0 // pred_fallthru
    _

// kernel: _lambda_.208
$region0: #{_lambda_.208}
  #allocation0 [shape = 'u32[]', space=smem, size = 0x4, offset = 0x4, fixed_abs, tag = 'smem constant byte address 0x4 - core index']
  #allocation1 [shape = 'u32[72,128]{1,0:T(1,128)}', space=vmem, size = 0x9000, scoped, tag = 'internal scratch']
  %s0 = inlined_call_operand.vmem [shape: bf16[32,864], index: 0, kind: input, shape index: {}]
  %s1 = inlined_call_operand.vmem [shape: bf16[864,128], index: 1, kind: input, shape index: {}]
  %s2 = inlined_call_operand.vmem [shape: f32[32,1], index: 2, kind: input, shape index: {}]
  %s3 = inlined_call_operand.vmem [shape: f32[32,128], index: 3, kind: output, shape index: {}]
  %s4 = sld [smem:[#allocation0]]
  $region22: #{_lambda_.208} parent=0
    _
  %s6 = ssub.s32 1, %s4
  %s7 = scalar_select 0, %s6, %s4
  // Predicated region
  $region2: #{_lambda_.208} parent=0 // pred_check
    _
  $region3: #{_lambda_.208} parent=0 // pred_check_branch
    %9 = sbr.rel (0) target = $region5
  $region4: #{_lambda_.208} parent=0 // pred_region
    _
  $region5: #{_lambda_.208} parent=0 // pred_fallthru
    _
  // Predicated region
  $region6: #{_lambda_.208} parent=0 // pred_check
    _
  $region7: #{_lambda_.208} parent=0 // pred_check_branch
    %11 = sbr.rel (0) target = $region9
  $region8: #{_lambda_.208} parent=0 // pred_region
    _
  $region9: #{_lambda_.208} parent=0 // pred_fallthru
    _
  // Predicated region
  $region10: #{_lambda_.208} parent=0 // pred_check
    _
  $region11: #{_lambda_.208} parent=0 // pred_check_branch
    %13 = sbr.rel (0) target = $region13
  $region12: #{_lambda_.208} parent=0 // pred_region
    _
  $region13: #{_lambda_.208} parent=0 // pred_fallthru
    _
  %v15 = vld [vmem:[%s0] sm:$0xff]
  %v16 = vld [vmem:[%s0 + $0x8] sm:$0xff]
  %v17 = vld [vmem:[%s0 + $0x10] sm:$0xff]
  %v18 = vld [vmem:[%s0 + $0x18] sm:$0xf]
  %v19 = vld [vmem:[%s0 + $0x1c] sm:$0xff]
  %v20 = vld [vmem:[%s0 + $0x24] sm:$0xff]
  %v21 = vld [vmem:[%s0 + $0x2c] sm:$0xff]
  %v22 = vld [vmem:[%s0 + $0x34] sm:$0xf]
  %v23 = vld [vmem:[%s0 + $0x38] sm:$0xff]
  %v24 = vld [vmem:[%s0 + $0x40] sm:$0xff]
  %v25 = vld [vmem:[%s0 + $0x48] sm:$0xff]
  %v26 = vld [vmem:[%s0 + $0x50] sm:$0xf]
  %v27 = vld [vmem:[%s0 + $0x54] sm:$0xff]
  %v28 = vld [vmem:[%s0 + $0x5c] sm:$0xff]
  %v29 = vld [vmem:[%s0 + $0x64] sm:$0xff]
  %v30 = vld [vmem:[%s0 + $0x6c] sm:$0xf]
  %v31 = vld [vmem:[%s1] sm:$0xf]
  %v32 = vld [vmem:[%s1 + $0x4] sm:$0xf]
  %v33 = vld [vmem:[%s1 + $0x8] sm:$0xf]
  %v34 = vld [vmem:[%s1 + $0xc] sm:$0xf]
  %v35 = vld [vmem:[%s1 + $0x10] sm:$0xf]
  %v36 = vld [vmem:[%s1 + $0x14] sm:$0xf]
  %v37 = vld [vmem:[%s1 + $0x18] sm:$0xf]
  %v38 = vld [vmem:[%s1 + $0x1c] sm:$0xf]
  %v39 = vld [vmem:[%s1 + $0x20] sm:$0xf]
  %v40 = vld [vmem:[%s1 + $0x24] sm:$0xf]
  %v41 = vld [vmem:[%s1 + $0x28] sm:$0xf]
  %v42 = vld [vmem:[%s1 + $0x2c] sm:$0xf]
  %v43 = vld [vmem:[%s1 + $0x30] sm:$0xf]
  %v44 = vld [vmem:[%s1 + $0x34] sm:$0xf]
  %v45 = vld [vmem:[%s1 + $0x38] sm:$0xf]
  %v46 = vld [vmem:[%s1 + $0x3c] sm:$0xf]
  %v47 = vld [vmem:[%s1 + $0x40] sm:$0xf]
  %v48 = vld [vmem:[%s1 + $0x44] sm:$0xf]
  %v49 = vld [vmem:[%s1 + $0x48] sm:$0xf]
  %v50 = vld [vmem:[%s1 + $0x4c] sm:$0xf]
  %v51 = vld [vmem:[%s1 + $0x50] sm:$0xf]
  %v52 = vld [vmem:[%s1 + $0x54] sm:$0xf]
  %v53 = vld [vmem:[%s1 + $0x58] sm:$0xf]
  %v54 = vld [vmem:[%s1 + $0x5c] sm:$0xf]
  %v55 = vld [vmem:[%s1 + $0x60] sm:$0xf]
  %v56 = vld [vmem:[%s1 + $0x64] sm:$0xf]
  %v57 = vld [vmem:[%s1 + $0x68] sm:$0xf]
  %v58 = vld [vmem:[%s1 + $0x6c] sm:$0xf]
  %v59 = vld [vmem:[%s1 + $0x70] sm:$0xf]
  %v60 = vld [vmem:[%s1 + $0x74] sm:$0xf]
  %v61 = vld [vmem:[%s1 + $0x78] sm:$0xf]
  %v62 = vld [vmem:[%s1 + $0x7c] sm:$0xf]
  %v63 = vld [vmem:[%s1 + $0x80] sm:$0xf]
  %v64 = vld [vmem:[%s1 + $0x84] sm:$0xf]
  %v65 = vld [vmem:[%s1 + $0x88] sm:$0xf]
  %v66 = vld [vmem:[%s1 + $0x8c] sm:$0xf]
  %v67 = vld [vmem:[%s1 + $0x90] sm:$0xf]
  %v68 = vld [vmem:[%s1 + $0x94] sm:$0xf]
  %v69 = vld [vmem:[%s1 + $0x98] sm:$0xf]
  %v70 = vld [vmem:[%s1 + $0x9c] sm:$0xf]
  %v71 = vld [vmem:[%s1 + $0xa0] sm:$0xf]
  %v72 = vld [vmem:[%s1 + $0xa4] sm:$0xf]
  %v73 = vld [vmem:[%s1 + $0xa8] sm:$0xf]
  %v74 = vld [vmem:[%s1 + $0xac] sm:$0xf]
  %v75 = vld [vmem:[%s1 + $0xb0] sm:$0xf]
  %v76 = vld [vmem:[%s1 + $0xb4] sm:$0xf]
  %v77 = vld [vmem:[%s1 + $0xb8] sm:$0xf]
  %v78 = vld [vmem:[%s1 + $0xbc] sm:$0xf]
  %v79 = vld [vmem:[%s1 + $0xc0] sm:$0xf]
  %v80 = vld [vmem:[%s1 + $0xc4] sm:$0xf]
  %v81 = vld [vmem:[%s1 + $0xc8] sm:$0xf]
  %v82 = vld [vmem:[%s1 + $0xcc] sm:$0xf]
  %v83 = vld [vmem:[%s1 + $0xd0] sm:$0xf]
  %v84 = vld [vmem:[%s1 + $0xd4] sm:$0xf]
  %v85 = vld [vmem:[%s1 + $0xd8] sm:$0xf]
  %v86 = vld [vmem:[%s1 + $0xdc] sm:$0xf]
  %v87 = vld [vmem:[%s1 + $0xe0] sm:$0xf]
  %v88 = vld [vmem:[%s1 + $0xe4] sm:$0xf]
  %v89 = vld [vmem:[%s1 + $0xe8] sm:$0xf]
  %v90 = vld [vmem:[%s1 + $0xec] sm:$0xf]
  %v91 = vld [vmem:[%s1 + $0xf0] sm:$0xf]
  %v92 = vld [vmem:[%s1 + $0xf4] sm:$0xf]
  %v93 = vld [vmem:[%s1 + $0xf8] sm:$0xf]
  %v94 = vld [vmem:[%s1 + $0xfc] sm:$0xf]
  %v95 = vld [vmem:[%s1 + $0x100] sm:$0xf]
  %v96 = vld [vmem:[%s1 + $0x104] sm:$0xf]
  %v97 = vld [vmem:[%s1 + $0x108] sm:$0xf]
  %v98 = vld [vmem:[%s1 + $0x10c] sm:$0xf]
  %v99 = vld [vmem:[%s1 + $0x110] sm:$0xf]
  %v100 = vld [vmem:[%s1 + $0x114] sm:$0xf]
  %v101 = vld [vmem:[%s1 + $0x118] sm:$0xf]
  %v102 = vld [vmem:[%s1 + $0x11c] sm:$0xf]
  %v103 = vld [vmem:[%s1 + $0x120] sm:$0xf]
  %v104 = vld [vmem:[%s1 + $0x124] sm:$0xf]
  %v105 = vld [vmem:[%s1 + $0x128] sm:$0xf]
  %v106 = vld [vmem:[%s1 + $0x12c] sm:$0xf]
  %v107 = vld [vmem:[%s1 + $0x130] sm:$0xf]
  %v108 = vld [vmem:[%s1 + $0x134] sm:$0xf]
  %v109 = vld [vmem:[%s1 + $0x138] sm:$0xf]
  %v110 = vld [vmem:[%s1 + $0x13c] sm:$0xf]
  %v111 = vld [vmem:[%s1 + $0x140] sm:$0xf]
  %v112 = vld [vmem:[%s1 + $0x144] sm:$0xf]
  %v113 = vld [vmem:[%s1 + $0x148] sm:$0xf]
  %v114 = vld [vmem:[%s1 + $0x14c] sm:$0xf]
  %v115 = vld [vmem:[%s1 + $0x150] sm:$0xf]
  %v116 = vld [vmem:[%s1 + $0x154] sm:$0xf]
  %v117 = vld [vmem:[%s1 + $0x158] sm:$0xf]
  %v118 = vld [vmem:[%s1 + $0x15c] sm:$0xf]
  %v119 = vld [vmem:[%s1 + $0x160] sm:$0xf]
  %v120 = vld [vmem:[%s1 + $0x164] sm:$0xf]
  %v121 = vld [vmem:[%s1 + $0x168] sm:$0xf]
  %v122 = vld [vmem:[%s1 + $0x16c] sm:$0xf]
  %v123 = vld [vmem:[%s1 + $0x170] sm:$0xf]
  %v124 = vld [vmem:[%s1 + $0x174] sm:$0xf]
  %v125 = vld [vmem:[%s1 + $0x178] sm:$0xf]
  %v126 = vld [vmem:[%s1 + $0x17c] sm:$0xf]
  %v127 = vld [vmem:[%s1 + $0x180] sm:$0xf]
  %v128 = vld [vmem:[%s1 + $0x184] sm:$0xf]
  %v129 = vld [vmem:[%s1 + $0x188] sm:$0xf]
  %v130 = vld [vmem:[%s1 + $0x18c] sm:$0xf]
  %v131 = vld [vmem:[%s1 + $0x190] sm:$0xf]
  %v132 = vld [vmem:[%s1 + $0x194] sm:$0xf]
  %v133 = vld [vmem:[%s1 + $0x198] sm:$0xf]
  %v134 = vld [vmem:[%s1 + $0x19c] sm:$0xf]
  %v135 = vld [vmem:[%s1 + $0x1a0] sm:$0xf]
  %v136 = vld [vmem:[%s1 + $0x1a4] sm:$0xf]
  %v137 = vld [vmem:[%s1 + $0x1a8] sm:$0xf]
  %v138 = vld [vmem:[%s1 + $0x1ac] sm:$0xf]
  %v139 = vld [vmem:[%s2] sm:$0xff]
  %v140 = vld [vmem:[%s2 + $0x8] sm:$0xff]
  %v141 = vld [vmem:[%s2 + $0x10] sm:$0xff]
  %v142 = vld [vmem:[%s2 + $0x18] sm:$0xff]
  %144 = vset.pattern.permute.xlu0 0
  %145 = vperm.xlu0 %144, %v139
  %v146 = vpop.permute.xlu0 %145
  %149 = vset.pattern.permute.xlu0 0
  %150 = vperm.xlu0 %149, %v140
  %v151 = vpop.permute.xlu0 %150
  %154 = vset.pattern.permute.xlu0 0
  %155 = vperm.xlu0 %154, %v141
  %v156 = vpop.permute.xlu0 %155
  %159 = vset.pattern.permute.xlu0 0
  %160 = vperm.xlu0 %159, %v142
  %v161 = vpop.permute.xlu0 %160
  %v179 = vunpack.c.l.b16 %v15
  %v180 = vunpack.c.h.b16 %v15
  %v181 = vunpack.c.l.b16 %v16
  %v182 = vunpack.c.h.b16 %v16
  %v183 = vunpack.c.l.b16 %v17
  %v184 = vunpack.c.h.b16 %v17
  %v185 = vunpack.c.l.b16 %v18
  %v186 = vunpack.c.l.b16 %v19
  %v187 = vunpack.c.h.b16 %v19
  %v188 = vunpack.c.l.b16 %v20
  %v189 = vunpack.c.h.b16 %v20
  %v190 = vunpack.c.l.b16 %v21
  %v191 = vunpack.c.h.b16 %v21
  %v192 = vunpack.c.l.b16 %v22
  %v193 = vunpack.c.l.b16 %v23
  %v194 = vunpack.c.h.b16 %v23
  %v195 = vunpack.c.l.b16 %v24
  %v196 = vunpack.c.h.b16 %v24
  %v197 = vunpack.c.l.b16 %v25
  %v198 = vunpack.c.h.b16 %v25
  %v199 = vunpack.c.l.b16 %v26
  %v200 = vunpack.c.l.b16 %v27
  %v201 = vunpack.c.h.b16 %v27
  %v202 = vunpack.c.l.b16 %v28
  %v203 = vunpack.c.h.b16 %v28
  %v204 = vunpack.c.l.b16 %v29
  %v205 = vunpack.c.h.b16 %v29
  %v206 = vunpack.c.l.b16 %v30
  %v207 = vpack.c.b16 %v186, %v179
  %v208 = vpack.c.b16 %v187, %v180
  %v209 = vpack.c.b16 %v188, %v181
  %v210 = vpack.c.b16 %v189, %v182
  %v211 = vpack.c.b16 %v190, %v183
  %v212 = vpack.c.b16 %v191, %v184
  %v213 = vpack.c.b16 %v192, %v185
  %v214 = vpack.c.b16 %v200, %v193
  %v215 = vpack.c.b16 %v201, %v194
  %v216 = vpack.c.b16 %v202, %v195
  %v217 = vpack.c.b16 %v203, %v196
  %v218 = vpack.c.b16 %v204, %v197
  %v219 = vpack.c.b16 %v205, %v198
  %v220 = vpack.c.b16 %v206, %v199
  %v341 = vunpack.c.l.b16 %v31
  %v342 = vunpack.c.l.b16 %v32
  %v343 = vunpack.c.l.b16 %v33
  %v344 = vunpack.c.l.b16 %v34
  %v345 = vunpack.c.l.b16 %v35
  %v346 = vunpack.c.l.b16 %v36
  %v347 = vunpack.c.l.b16 %v37
  %v348 = vunpack.c.l.b16 %v38
  %v349 = vunpack.c.l.b16 %v39
  %v350 = vunpack.c.l.b16 %v40
  %v351 = vunpack.c.l.b16 %v41
  %v352 = vunpack.c.l.b16 %v42
  %v353 = vunpack.c.l.b16 %v43
  %v354 = vunpack.c.l.b16 %v44
  %v355 = vunpack.c.l.b16 %v45
  %v356 = vunpack.c.l.b16 %v46
  %v357 = vunpack.c.l.b16 %v47
  %v358 = vunpack.c.l.b16 %v48
  %v359 = vunpack.c.l.b16 %v49
  %v360 = vunpack.c.l.b16 %v50
  %v361 = vunpack.c.l.b16 %v51
  %v362 = vunpack.c.l.b16 %v52
  %v363 = vunpack.c.l.b16 %v53
  %v364 = vunpack.c.l.b16 %v54
  %v365 = vunpack.c.l.b16 %v55
  %v366 = vunpack.c.l.b16 %v56
  %v367 = vunpack.c.l.b16 %v57
  %v368 = vunpack.c.l.b16 %v58
  %v369 = vunpack.c.l.b16 %v59
  %v370 = vunpack.c.l.b16 %v60
  %v371 = vunpack.c.l.b16 %v61
  %v372 = vunpack.c.l.b16 %v62
  %v373 = vunpack.c.l.b16 %v63
  %v374 = vunpack.c.l.b16 %v64
  %v375 = vunpack.c.l.b16 %v65
  %v376 = vunpack.c.l.b16 %v66
  %v377 = vunpack.c.l.b16 %v67
  %v378 = vunpack.c.l.b16 %v68
  %v379 = vunpack.c.l.b16 %v69
  %v380 = vunpack.c.l.b16 %v70
  %v381 = vunpack.c.l.b16 %v71
  %v382 = vunpack.c.l.b16 %v72
  %v383 = vunpack.c.l.b16 %v73
  %v384 = vunpack.c.l.b16 %v74
  %v385 = vunpack.c.l.b16 %v75
  %v386 = vunpack.c.l.b16 %v76
  %v387 = vunpack.c.l.b16 %v77
  %v388 = vunpack.c.l.b16 %v78
  %v389 = vunpack.c.l.b16 %v79
  %v390 = vunpack.c.l.b16 %v80
  %v391 = vunpack.c.l.b16 %v81
  %v392 = vunpack.c.l.b16 %v82
  %v393 = vunpack.c.l.b16 %v83
  %v394 = vunpack.c.l.b16 %v84
  %v395 = vunpack.c.l.b16 %v85
  %v396 = vunpack.c.l.b16 %v86
  %v397 = vunpack.c.l.b16 %v87
  %v398 = vunpack.c.l.b16 %v88
  %v399 = vunpack.c.l.b16 %v89
  %v400 = vunpack.c.l.b16 %v90
  %v401 = vunpack.c.l.b16 %v91
  %v402 = vunpack.c.l.b16 %v92
  %v403 = vunpack.c.l.b16 %v93
  %v404 = vunpack.c.l.b16 %v94
  %v405 = vunpack.c.l.b16 %v95
  %v406 = vunpack.c.l.b16 %v96
  %v407 = vunpack.c.l.b16 %v97
  %v408 = vunpack.c.l.b16 %v98
  %v409 = vunpack.c.l.b16 %v99
  %v410 = vunpack.c.l.b16 %v100
  %v411 = vunpack.c.l.b16 %v101
  %v412 = vunpack.c.l.b16 %v102
  %v413 = vunpack.c.l.b16 %v103
  %v414 = vunpack.c.l.b16 %v104
  %v415 = vunpack.c.l.b16 %v105
  %v416 = vunpack.c.l.b16 %v106
  %v417 = vunpack.c.l.b16 %v107
  %v418 = vunpack.c.l.b16 %v108
  %v419 = vunpack.c.l.b16 %v109
  %v420 = vunpack.c.l.b16 %v110
  %v421 = vunpack.c.l.b16 %v111
  %v422 = vunpack.c.l.b16 %v112
  %v423 = vunpack.c.l.b16 %v113
  %v424 = vunpack.c.l.b16 %v114
  %v425 = vunpack.c.l.b16 %v115
  %v426 = vunpack.c.l.b16 %v116
  %v427 = vunpack.c.l.b16 %v117
  %v428 = vunpack.c.l.b16 %v118
  %v429 = vunpack.c.l.b16 %v119
  %v430 = vunpack.c.l.b16 %v120
  %v431 = vunpack.c.l.b16 %v121
  %v432 = vunpack.c.l.b16 %v122
  %v433 = vunpack.c.l.b16 %v123
  %v434 = vunpack.c.l.b16 %v124
  %v435 = vunpack.c.l.b16 %v125
  %v436 = vunpack.c.l.b16 %v126
  %v437 = vunpack.c.l.b16 %v127
  %v438 = vunpack.c.l.b16 %v128
  %v439 = vunpack.c.l.b16 %v129
  %v440 = vunpack.c.l.b16 %v130
  %v441 = vunpack.c.l.b16 %v131
  %v442 = vunpack.c.l.b16 %v132
  %v443 = vunpack.c.l.b16 %v133
  %v444 = vunpack.c.l.b16 %v134
  %v445 = vunpack.c.l.b16 %v135
  %v446 = vunpack.c.l.b16 %v136
  %v447 = vunpack.c.l.b16 %v137
  %v448 = vunpack.c.l.b16 %v138
  %v449 = vpack.c.b16 %v342, %v341
  %v450 = vpack.c.b16 %v344, %v343
  %v451 = vpack.c.b16 %v346, %v345
  %v452 = vpack.c.b16 %v348, %v347
  %v453 = vpack.c.b16 %v350, %v349
  %v454 = vpack.c.b16 %v352, %v351
  %v455 = vpack.c.b16 %v354, %v353
  %v456 = vpack.c.b16 %v356, %v355
  %v457 = vpack.c.b16 %v358, %v357
  %v458 = vpack.c.b16 %v360, %v359
  %v459 = vpack.c.b16 %v362, %v361
  %v460 = vpack.c.b16 %v364, %v363
  %v461 = vpack.c.b16 %v366, %v365
  %v462 = vpack.c.b16 %v368, %v367
  %v463 = vpack.c.b16 %v370, %v369
  %v464 = vpack.c.b16 %v372, %v371
  %v465 = vpack.c.b16 %v374, %v373
  %v466 = vpack.c.b16 %v376, %v375
  %v467 = vpack.c.b16 %v378, %v377
  %v468 = vpack.c.b16 %v380, %v379
  %v469 = vpack.c.b16 %v382, %v381
  %v470 = vpack.c.b16 %v384, %v383
  %v471 = vpack.c.b16 %v386, %v385
  %v472 = vpack.c.b16 %v388, %v387
  %v473 = vpack.c.b16 %v390, %v389
  %v474 = vpack.c.b16 %v392, %v391
  %v475 = vpack.c.b16 %v394, %v393
  %v476 = vpack.c.b16 %v396, %v395
  %v477 = vpack.c.b16 %v398, %v397
  %v478 = vpack.c.b16 %v400, %v399
  %v479 = vpack.c.b16 %v402, %v401
  %v480 = vpack.c.b16 %v404, %v403
  %v481 = vpack.c.b16 %v406, %v405
  %v482 = vpack.c.b16 %v408, %v407
  %v483 = vpack.c.b16 %v410, %v409
  %v484 = vpack.c.b16 %v412, %v411
  %v485 = vpack.c.b16 %v414, %v413
  %v486 = vpack.c.b16 %v416, %v415
  %v487 = vpack.c.b16 %v418, %v417
  %v488 = vpack.c.b16 %v420, %v419
  %v489 = vpack.c.b16 %v422, %v421
  %v490 = vpack.c.b16 %v424, %v423
  %v491 = vpack.c.b16 %v426, %v425
  %v492 = vpack.c.b16 %v428, %v427
  %v493 = vpack.c.b16 %v430, %v429
  %v494 = vpack.c.b16 %v432, %v431
  %v495 = vpack.c.b16 %v434, %v433
  %v496 = vpack.c.b16 %v436, %v435
  %v497 = vpack.c.b16 %v438, %v437
  %v498 = vpack.c.b16 %v440, %v439
  %v499 = vpack.c.b16 %v442, %v441
  %v500 = vpack.c.b16 %v444, %v443
  %v501 = vpack.c.b16 %v446, %v445
  %v502 = vpack.c.b16 %v448, %v447
  %vm557 = vcmask 785408
  %v559 = vsel %vm557, %v213, 0
  %v562 = vsel %vm557, %v220, 0
  %564 = vmatpush.bf16.msra.mxu0 %v456
  %565 = vmatpush.bf16.msra.mxu0 %v455
  %566 = vmatpush.bf16.msra.mxu0 %v454
  %567 = vmatpush.bf16.msra.mxu0 %v453
  %568 = vmatpush.bf16.msra.mxu0 %v452
  %569 = vmatpush.bf16.msra.mxu0 %v451
  %570 = vmatpush.bf16.msra.mxu0 %v450
  %571 = vmatpush.bf16.msra.mxu0 %v449
  %572 = vmatmul.bf16.gmra.mxu0 %v207
  %v573 = vpop.f32.mrf.mxu0
  %v574 = vadd.f32 %v146, %v573
  %v575 = vpop.f32.mrf.mxu0
  %v576 = vadd.f32 %v151, %v575
  %577 = vmatmul.bf16.gmra.mxu0 %v214
  %v578 = vpop.f32.mrf.mxu0
  %v579 = vadd.f32 %v156, %v578
  %v580 = vpop.f32.mrf.mxu0
  %v581 = vadd.f32 %v161, %v580
  %582 = vdwg.mxu0
  %583 = vmatpush.bf16.msra.mxu0 %v464
  %584 = vmatpush.bf16.msra.mxu0 %v463
  %585 = vmatpush.bf16.msra.mxu0 %v462
  %586 = vmatpush.bf16.msra.mxu0 %v461
  %587 = vmatpush.bf16.msra.mxu0 %v460
  %588 = vmatpush.bf16.msra.mxu0 %v459
  %589 = vmatpush.bf16.msra.mxu0 %v458
  %590 = vmatpush.bf16.msra.mxu0 %v457
  %591 = vmatmul.bf16.gmra.mxu0 %v208
  %v592 = vpop.f32.mrf.mxu0
  %v593 = vadd.f32 %v574, %v592
  %v594 = vpop.f32.mrf.mxu0
  %v595 = vadd.f32 %v576, %v594
  %596 = vmatmul.bf16.gmra.mxu0 %v215
  %v597 = vpop.f32.mrf.mxu0
  %v598 = vadd.f32 %v579, %v597
  %v599 = vpop.f32.mrf.mxu0
  %v600 = vadd.f32 %v581, %v599
  %601 = vdwg.mxu0
  %602 = vmatpush.bf16.msra.mxu0 %v472
  %603 = vmatpush.bf16.msra.mxu0 %v471
  %604 = vmatpush.bf16.msra.mxu0 %v470
  %605 = vmatpush.bf16.msra.mxu0 %v469
  %606 = vmatpush.bf16.msra.mxu0 %v468
  %607 = vmatpush.bf16.msra.mxu0 %v467
  %608 = vmatpush.bf16.msra.mxu0 %v466
  %609 = vmatpush.bf16.msra.mxu0 %v465
  %610 = vmatmul.bf16.gmra.mxu0 %v209
  %v611 = vpop.f32.mrf.mxu0
  %v612 = vadd.f32 %v593, %v611
  %v613 = vpop.f32.mrf.mxu0
  %v614 = vadd.f32 %v595, %v613
  %615 = vmatmul.bf16.gmra.mxu0 %v216
  %v616 = vpop.f32.mrf.mxu0
  %v617 = vadd.f32 %v598, %v616
  %v618 = vpop.f32.mrf.mxu0
  %v619 = vadd.f32 %v600, %v618
  %620 = vdwg.mxu0
  %621 = vmatpush.bf16.msra.mxu0 %v480
  %622 = vmatpush.bf16.msra.mxu0 %v479
  %623 = vmatpush.bf16.msra.mxu0 %v478
  %624 = vmatpush.bf16.msra.mxu0 %v477
  %625 = vmatpush.bf16.msra.mxu0 %v476
  %626 = vmatpush.bf16.msra.mxu0 %v475
  %627 = vmatpush.bf16.msra.mxu0 %v474
  %628 = vmatpush.bf16.msra.mxu0 %v473
  %629 = vmatmul.bf16.gmra.mxu0 %v210
  %v630 = vpop.f32.mrf.mxu0
  %v631 = vadd.f32 %v612, %v630
  %v632 = vpop.f32.mrf.mxu0
  %v633 = vadd.f32 %v614, %v632
  %634 = vmatmul.bf16.gmra.mxu0 %v217
  %v635 = vpop.f32.mrf.mxu0
  %v636 = vadd.f32 %v617, %v635
  %v637 = vpop.f32.mrf.mxu0
  %v638 = vadd.f32 %v619, %v637
  %639 = vdwg.mxu0
  %640 = vmatpush.bf16.msra.mxu0 %v488
  %641 = vmatpush.bf16.msra.mxu0 %v487
  %642 = vmatpush.bf16.msra.mxu0 %v486
  %643 = vmatpush.bf16.msra.mxu0 %v485
  %644 = vmatpush.bf16.msra.mxu0 %v484
  %645 = vmatpush.bf16.msra.mxu0 %v483
  %646 = vmatpush.bf16.msra.mxu0 %v482
  %647 = vmatpush.bf16.msra.mxu0 %v481
  %648 = vmatmul.bf16.gmra.mxu0 %v211
  %v649 = vpop.f32.mrf.mxu0
  %v650 = vadd.f32 %v631, %v649
  %v651 = vpop.f32.mrf.mxu0
  %v652 = vadd.f32 %v633, %v651
  %653 = vmatmul.bf16.gmra.mxu0 %v218
  %v654 = vpop.f32.mrf.mxu0
  %v655 = vadd.f32 %v636, %v654
  %v656 = vpop.f32.mrf.mxu0
  %v657 = vadd.f32 %v638, %v656
  %658 = vdwg.mxu0
  %659 = vmatpush.bf16.msra.mxu0 %v496
  %660 = vmatpush.bf16.msra.mxu0 %v495
  %661 = vmatpush.bf16.msra.mxu0 %v494
  %662 = vmatpush.bf16.msra.mxu0 %v493
  %663 = vmatpush.bf16.msra.mxu0 %v492
  %664 = vmatpush.bf16.msra.mxu0 %v491
  %665 = vmatpush.bf16.msra.mxu0 %v490
  %666 = vmatpush.bf16.msra.mxu0 %v489
  %667 = vmatmul.bf16.gmra.mxu0 %v212
  %v668 = vpop.f32.mrf.mxu0
  %v669 = vadd.f32 %v650, %v668
  %v670 = vpop.f32.mrf.mxu0
  %v671 = vadd.f32 %v652, %v670
  %672 = vmatmul.bf16.gmra.mxu0 %v219
  %v673 = vpop.f32.mrf.mxu0
  %v674 = vadd.f32 %v655, %v673
  %v675 = vpop.f32.mrf.mxu0
  %v676 = vadd.f32 %v657, %v675
  %677 = vdwg.mxu0
  %678 = vmatpush.bf16.msra.mxu0 0
  %679 = vmatpush.bf16.msra.mxu0 0
  %680 = vmatpush.bf16.msra.mxu0 %v502
  %681 = vmatpush.bf16.msra.mxu0 %v501
  %682 = vmatpush.bf16.msra.mxu0 %v500
  %683 = vmatpush.bf16.msra.mxu0 %v499
  %684 = vmatpush.bf16.msra.mxu0 %v498
  %685 = vmatpush.bf16.msra.mxu0 %v497
  %686 = vmatmul.bf16.gmra.mxu0 %v559
  %v687 = vpop.f32.mrf.mxu0
  %v688 = vadd.f32 %v669, %v687
  %v689 = vpop.f32.mrf.mxu0
  %v690 = vadd.f32 %v671, %v689
  %691 = vmatmul.bf16.gmra.mxu0 %v562
  %v692 = vpop.f32.mrf.mxu0
  %v693 = vadd.f32 %v674, %v692
  %v694 = vpop.f32.mrf.mxu0
  %v695 = vadd.f32 %v676, %v694
  %696 = vdwg.mxu0
  %697 = vst [vmem:[%s3] sm:$0xff] %v688
  %698 = vst [vmem:[%s3 + $0x8] sm:$0xff] %v690
  %699 = vst [vmem:[%s3 + $0x10] sm:$0xff] %v693
  %700 = vst [vmem:[%s3 + $0x18] sm:$0xff] %v695
  // Predicated region
  $region14: #{_lambda_.208} parent=0 // pred_check
    _
  $region15: #{_lambda_.208} parent=0 // pred_check_branch
    %702 = sbr.rel (0) target = $region17
  $region16: #{_lambda_.208} parent=0 // pred_region
    _
  $region17: #{_lambda_.208} parent=0 // pred_fallthru
    _
  // Predicated region
  $region18: #{_lambda_.208} parent=0 // pred_check
    _
  $region19: #{_lambda_.208} parent=0 // pred_check_branch
    %704 = sbr.rel (0) target = $region21
  $region20: #{_lambda_.208} parent=0 // pred_region
    _
  $region21: #{_lambda_.208} parent=0 // pred_fallthru
    _

// kernel: _lambda_.210
$region0: #{_lambda_.210}
  #allocation0 [shape = 'u32[]', space=smem, size = 0x4, offset = 0x4, fixed_abs, tag = 'smem constant byte address 0x4 - core index']
  #allocation1 [shape = 'u32[72,128]{1,0:T(1,128)}', space=vmem, size = 0x9000, scoped, tag = 'internal scratch']
  %s0 = inlined_call_operand.vmem [shape: f32[32,128], index: 0, kind: input, shape index: {}]
  %s1 = inlined_call_operand.vmem [shape: f32[32,1], index: 1, kind: input, shape index: {}]
  %s2 = inlined_call_operand.vmem [shape: f32[32,1], index: 2, kind: input, shape index: {}]
  %s3 = inlined_call_operand.vmem [shape: f32[32,128], index: 3, kind: output, shape index: {}]
  %s4 = sld [smem:[#allocation0]]
  $region22: #{_lambda_.210} parent=0
    _
  %s6 = ssub.s32 1, %s4
  %s7 = scalar_select 0, %s6, %s4
  // Predicated region
  $region2: #{_lambda_.210} parent=0 // pred_check
    _
  $region3: #{_lambda_.210} parent=0 // pred_check_branch
    %9 = sbr.rel (0) target = $region5
  $region4: #{_lambda_.210} parent=0 // pred_region
    _
  $region5: #{_lambda_.210} parent=0 // pred_fallthru
    _
  // Predicated region
  $region6: #{_lambda_.210} parent=0 // pred_check
    _
  $region7: #{_lambda_.210} parent=0 // pred_check_branch
    %11 = sbr.rel (0) target = $region9
  $region8: #{_lambda_.210} parent=0 // pred_region
    _
  $region9: #{_lambda_.210} parent=0 // pred_fallthru
    _
  // Predicated region
  $region10: #{_lambda_.210} parent=0 // pred_check
    _
  $region11: #{_lambda_.210} parent=0 // pred_check_branch
    %13 = sbr.rel (0) target = $region13
  $region12: #{_lambda_.210} parent=0 // pred_region
    _
  $region13: #{_lambda_.210} parent=0 // pred_fallthru
    _
  %v14 = vld [vmem:[%s0] sm:$0xff]
  %v15 = vld [vmem:[%s0 + $0x8] sm:$0xff]
  %v16 = vld [vmem:[%s0 + $0x10] sm:$0xff]
  %v17 = vld [vmem:[%s0 + $0x18] sm:$0xff]
  %v18 = vld [vmem:[%s1] sm:$0xff]
  %v19 = vld [vmem:[%s1 + $0x8] sm:$0xff]
  %v20 = vld [vmem:[%s1 + $0x10] sm:$0xff]
  %v21 = vld [vmem:[%s1 + $0x18] sm:$0xff]
  %v22 = vmul.f32 %v18, 0.015625
  %v23 = vmul.f32 %v19, 0.015625
  %v24 = vmul.f32 %v20, 0.015625
  %v25 = vmul.f32 %v21, 0.015625
  %v26 = vld [vmem:[%s2] sm:$0xff]
  %v27 = vld [vmem:[%s2 + $0x8] sm:$0xff]
  %v28 = vld [vmem:[%s2 + $0x10] sm:$0xff]
  %v29 = vld [vmem:[%s2 + $0x18] sm:$0xff]
  %v30 = vmul.f32 %v26, 0.015625
  %v31 = vmul.f32 %v27, 0.015625
  %v32 = vmul.f32 %v28, 0.015625
  %v33 = vmul.f32 %v29, 0.015625
  %v34 = vmul.f32 %v22, %v22
  %v35 = vmul.f32 %v23, %v23
  %v36 = vmul.f32 %v24, %v24
  %v37 = vmul.f32 %v25, %v25
  %v38 = vsub.f32 %v30, %v34
  %v39 = vsub.f32 %v31, %v35
  %v40 = vsub.f32 %v32, %v36
  %v41 = vsub.f32 %v33, %v37
  %v42 = vmax.f32 %v38, 0.0
  %v43 = vmax.f32 %v39, 0.0
  %v44 = vmax.f32 %v40, 0.0
  %v45 = vmax.f32 %v41, 0.0
  %47 = vset.pattern.permute.xlu0 0
  %48 = vperm.xlu0 %47, %v22
  %v49 = vpop.permute.xlu0 %48
  %52 = vset.pattern.permute.xlu0 0
  %53 = vperm.xlu0 %52, %v23
  %v54 = vpop.permute.xlu0 %53
  %57 = vset.pattern.permute.xlu0 0
  %58 = vperm.xlu0 %57, %v24
  %v59 = vpop.permute.xlu0 %58
  %62 = vset.pattern.permute.xlu0 0
  %63 = vperm.xlu0 %62, %v25
  %v64 = vpop.permute.xlu0 %63
  %v66 = vsub.f32 %v14, %v49
  %v67 = vsub.f32 %v15, %v54
  %v68 = vsub.f32 %v16, %v59
  %v69 = vsub.f32 %v17, %v64
  %v70 = vadd.f32 %v42, 1e-05
  %v71 = vadd.f32 %v43, 1e-05
  %v72 = vadd.f32 %v44, 1e-05
  %v73 = vadd.f32 %v45, 1e-05
  %v74 = vrsqrt.pop %v70
  %v75 = vmul.f32 %v74, %v70
  %v76 = vmul.f32 %v75, %v74
  %v77 = vmul.f32 0.5, %v76
  %v78 = vsub.f32 1.5, %v77
  %v79 = vmul.f32 %v74, %v78
  %vm80 = vweird.f32 %v70
  %vm81 = vweird.f32 %v74
  %vm82 = vmor %vm80, %vm81
  %v83 = vsel %vm82, %v74, %v79
  %v84 = vrsqrt.pop %v71
  %v85 = vmul.f32 %v84, %v71
  %v86 = vmul.f32 %v85, %v84
  %v87 = vmul.f32 0.5, %v86
  %v88 = vsub.f32 1.5, %v87
  %v89 = vmul.f32 %v84, %v88
  %vm90 = vweird.f32 %v71
  %vm91 = vweird.f32 %v84
  %vm92 = vmor %vm90, %vm91
  %v93 = vsel %vm92, %v84, %v89
  %v94 = vrsqrt.pop %v72
  %v95 = vmul.f32 %v94, %v72
  %v96 = vmul.f32 %v95, %v94
  %v97 = vmul.f32 0.5, %v96
  %v98 = vsub.f32 1.5, %v97
  %v99 = vmul.f32 %v94, %v98
  %vm100 = vweird.f32 %v72
  %vm101 = vweird.f32 %v94
  %vm102 = vmor %vm100, %vm101
  %v103 = vsel %vm102, %v94, %v99
  %v104 = vrsqrt.pop %v73
  %v105 = vmul.f32 %v104, %v73
  %v106 = vmul.f32 %v105, %v104
  %v107 = vmul.f32 0.5, %v106
  %v108 = vsub.f32 1.5, %v107
  %v109 = vmul.f32 %v104, %v108
  %vm110 = vweird.f32 %v73
  %vm111 = vweird.f32 %v104
  %vm112 = vmor %vm110, %vm111
  %v113 = vsel %vm112, %v104, %v109
  %115 = vset.pattern.permute.xlu0 0
  %116 = vperm.xlu0 %115, %v83
  %v117 = vpop.permute.xlu0 %116
  %120 = vset.pattern.permute.xlu0 0
  %121 = vperm.xlu0 %120, %v93
  %v122 = vpop.permute.xlu0 %121
  %125 = vset.pattern.permute.xlu0 0
  %126 = vperm.xlu0 %125, %v103
  %v127 = vpop.permute.xlu0 %126
  %130 = vset.pattern.permute.xlu0 0
  %131 = vperm.xlu0 %130, %v113
  %v132 = vpop.permute.xlu0 %131
  %v134 = vmul.f32 %v66, %v117
  %v135 = vmul.f32 %v67, %v122
  %v136 = vmul.f32 %v68, %v127
  %v137 = vmul.f32 %v69, %v132
  %vm138 = vcmp.gt.f32.partialorder %v134, 0.0
  %vm139 = vcmp.gt.f32.partialorder %v135, 0.0
  %vm140 = vcmp.gt.f32.partialorder %v136, 0.0
  %vm141 = vcmp.gt.f32.partialorder %v137, 0.0
  %v142 = vmul.f32 %v134, 0.2
  %v143 = vmul.f32 %v135, 0.2
  %v144 = vmul.f32 %v136, 0.2
  %v145 = vmul.f32 %v137, 0.2
  %v146 = vsel %vm138, %v134, %v142
  %v147 = vsel %vm139, %v135, %v143
  %v148 = vsel %vm140, %v136, %v144
  %v149 = vsel %vm141, %v137, %v145
  %150 = vst [vmem:[%s3] sm:$0xff] %v146
  %151 = vst [vmem:[%s3 + $0x8] sm:$0xff] %v147
  %152 = vst [vmem:[%s3 + $0x10] sm:$0xff] %v148
  %153 = vst [vmem:[%s3 + $0x18] sm:$0xff] %v149
  // Predicated region
  $region14: #{_lambda_.210} parent=0 // pred_check
    _
  $region15: #{_lambda_.210} parent=0 // pred_check_branch
    %155 = sbr.rel (0) target = $region17
  $region16: #{_lambda_.210} parent=0 // pred_region
    _
  $region17: #{_lambda_.210} parent=0 // pred_fallthru
    _
  // Predicated region
  $region18: #{_lambda_.210} parent=0 // pred_check
    _
  $region19: #{_lambda_.210} parent=0 // pred_check_branch
    %157 = sbr.rel (0) target = $region21
  $region20: #{_lambda_.210} parent=0 // pred_region
    _
  $region21: #{_lambda_.210} parent=0 // pred_fallthru
    _

// kernel: _lambda_.220
$region0: #{_lambda_.220}
  #allocation0 [shape = 'u32[]', space=smem, size = 0x4, offset = 0x4, fixed_abs, tag = 'smem constant byte address 0x4 - core index']
  #allocation1 [shape = 'u32[72,128]{1,0:T(1,128)}', space=vmem, size = 0x9000, scoped, tag = 'internal scratch']
  %s0 = inlined_call_operand.vmem [shape: bf16[8,864], index: 0, kind: input, shape index: {}]
  %s1 = inlined_call_operand.vmem [shape: bf16[864,128], index: 1, kind: input, shape index: {}]
  %s2 = inlined_call_operand.vmem [shape: f32[8,1], index: 2, kind: input, shape index: {}]
  %s3 = inlined_call_operand.vmem [shape: f32[8,128], index: 3, kind: output, shape index: {}]
  %s4 = sld [smem:[#allocation0]]
  $region22: #{_lambda_.220} parent=0
    _
  %s6 = ssub.s32 1, %s4
  %s7 = scalar_select 0, %s6, %s4
  // Predicated region
  $region2: #{_lambda_.220} parent=0 // pred_check
    _
  $region3: #{_lambda_.220} parent=0 // pred_check_branch
    %9 = sbr.rel (0) target = $region5
  $region4: #{_lambda_.220} parent=0 // pred_region
    _
  $region5: #{_lambda_.220} parent=0 // pred_fallthru
    _
  // Predicated region
  $region6: #{_lambda_.220} parent=0 // pred_check
    _
  $region7: #{_lambda_.220} parent=0 // pred_check_branch
    %11 = sbr.rel (0) target = $region9
  $region8: #{_lambda_.220} parent=0 // pred_region
    _
  $region9: #{_lambda_.220} parent=0 // pred_fallthru
    _
  // Predicated region
  $region10: #{_lambda_.220} parent=0 // pred_check
    _
  $region11: #{_lambda_.220} parent=0 // pred_check_branch
    %13 = sbr.rel (0) target = $region13
  $region12: #{_lambda_.220} parent=0 // pred_region
    _
  $region13: #{_lambda_.220} parent=0 // pred_fallthru
    _
  %v15 = vld [vmem:[%s0] sm:$0xff]
  %v16 = vld [vmem:[%s0 + $0x8] sm:$0xff]
  %v17 = vld [vmem:[%s0 + $0x10] sm:$0xff]
  %v18 = vld [vmem:[%s0 + $0x18] sm:$0xf]
  %v19 = vld [vmem:[%s1] sm:$0xf]
  %v20 = vld [vmem:[%s1 + $0x4] sm:$0xf]
  %v21 = vld [vmem:[%s1 + $0x8] sm:$0xf]
  %v22 = vld [vmem:[%s1 + $0xc] sm:$0xf]
  %v23 = vld [vmem:[%s1 + $0x10] sm:$0xf]
  %v24 = vld [vmem:[%s1 + $0x14] sm:$0xf]
  %v25 = vld [vmem:[%s1 + $0x18] sm:$0xf]
  %v26 = vld [vmem:[%s1 + $0x1c] sm:$0xf]
  %v27 = vld [vmem:[%s1 + $0x20] sm:$0xf]
  %v28 = vld [vmem:[%s1 + $0x24] sm:$0xf]
  %v29 = vld [vmem:[%s1 + $0x28] sm:$0xf]
  %v30 = vld [vmem:[%s1 + $0x2c] sm:$0xf]
  %v31 = vld [vmem:[%s1 + $0x30] sm:$0xf]
  %v32 = vld [vmem:[%s1 + $0x34] sm:$0xf]
  %v33 = vld [vmem:[%s1 + $0x38] sm:$0xf]
  %v34 = vld [vmem:[%s1 + $0x3c] sm:$0xf]
  %v35 = vld [vmem:[%s1 + $0x40] sm:$0xf]
  %v36 = vld [vmem:[%s1 + $0x44] sm:$0xf]
  %v37 = vld [vmem:[%s1 + $0x48] sm:$0xf]
  %v38 = vld [vmem:[%s1 + $0x4c] sm:$0xf]
  %v39 = vld [vmem:[%s1 + $0x50] sm:$0xf]
  %v40 = vld [vmem:[%s1 + $0x54] sm:$0xf]
  %v41 = vld [vmem:[%s1 + $0x58] sm:$0xf]
  %v42 = vld [vmem:[%s1 + $0x5c] sm:$0xf]
  %v43 = vld [vmem:[%s1 + $0x60] sm:$0xf]
  %v44 = vld [vmem:[%s1 + $0x64] sm:$0xf]
  %v45 = vld [vmem:[%s1 + $0x68] sm:$0xf]
  %v46 = vld [vmem:[%s1 + $0x6c] sm:$0xf]
  %v47 = vld [vmem:[%s1 + $0x70] sm:$0xf]
  %v48 = vld [vmem:[%s1 + $0x74] sm:$0xf]
  %v49 = vld [vmem:[%s1 + $0x78] sm:$0xf]
  %v50 = vld [vmem:[%s1 + $0x7c] sm:$0xf]
  %v51 = vld [vmem:[%s1 + $0x80] sm:$0xf]
  %v52 = vld [vmem:[%s1 + $0x84] sm:$0xf]
  %v53 = vld [vmem:[%s1 + $0x88] sm:$0xf]
  %v54 = vld [vmem:[%s1 + $0x8c] sm:$0xf]
  %v55 = vld [vmem:[%s1 + $0x90] sm:$0xf]
  %v56 = vld [vmem:[%s1 + $0x94] sm:$0xf]
  %v57 = vld [vmem:[%s1 + $0x98] sm:$0xf]
  %v58 = vld [vmem:[%s1 + $0x9c] sm:$0xf]
  %v59 = vld [vmem:[%s1 + $0xa0] sm:$0xf]
  %v60 = vld [vmem:[%s1 + $0xa4] sm:$0xf]
  %v61 = vld [vmem:[%s1 + $0xa8] sm:$0xf]
  %v62 = vld [vmem:[%s1 + $0xac] sm:$0xf]
  %v63 = vld [vmem:[%s1 + $0xb0] sm:$0xf]
  %v64 = vld [vmem:[%s1 + $0xb4] sm:$0xf]
  %v65 = vld [vmem:[%s1 + $0xb8] sm:$0xf]
  %v66 = vld [vmem:[%s1 + $0xbc] sm:$0xf]
  %v67 = vld [vmem:[%s1 + $0xc0] sm:$0xf]
  %v68 = vld [vmem:[%s1 + $0xc4] sm:$0xf]
  %v69 = vld [vmem:[%s1 + $0xc8] sm:$0xf]
  %v70 = vld [vmem:[%s1 + $0xcc] sm:$0xf]
  %v71 = vld [vmem:[%s1 + $0xd0] sm:$0xf]
  %v72 = vld [vmem:[%s1 + $0xd4] sm:$0xf]
  %v73 = vld [vmem:[%s1 + $0xd8] sm:$0xf]
  %v74 = vld [vmem:[%s1 + $0xdc] sm:$0xf]
  %v75 = vld [vmem:[%s1 + $0xe0] sm:$0xf]
  %v76 = vld [vmem:[%s1 + $0xe4] sm:$0xf]
  %v77 = vld [vmem:[%s1 + $0xe8] sm:$0xf]
  %v78 = vld [vmem:[%s1 + $0xec] sm:$0xf]
  %v79 = vld [vmem:[%s1 + $0xf0] sm:$0xf]
  %v80 = vld [vmem:[%s1 + $0xf4] sm:$0xf]
  %v81 = vld [vmem:[%s1 + $0xf8] sm:$0xf]
  %v82 = vld [vmem:[%s1 + $0xfc] sm:$0xf]
  %v83 = vld [vmem:[%s1 + $0x100] sm:$0xf]
  %v84 = vld [vmem:[%s1 + $0x104] sm:$0xf]
  %v85 = vld [vmem:[%s1 + $0x108] sm:$0xf]
  %v86 = vld [vmem:[%s1 + $0x10c] sm:$0xf]
  %v87 = vld [vmem:[%s1 + $0x110] sm:$0xf]
  %v88 = vld [vmem:[%s1 + $0x114] sm:$0xf]
  %v89 = vld [vmem:[%s1 + $0x118] sm:$0xf]
  %v90 = vld [vmem:[%s1 + $0x11c] sm:$0xf]
  %v91 = vld [vmem:[%s1 + $0x120] sm:$0xf]
  %v92 = vld [vmem:[%s1 + $0x124] sm:$0xf]
  %v93 = vld [vmem:[%s1 + $0x128] sm:$0xf]
  %v94 = vld [vmem:[%s1 + $0x12c] sm:$0xf]
  %v95 = vld [vmem:[%s1 + $0x130] sm:$0xf]
  %v96 = vld [vmem:[%s1 + $0x134] sm:$0xf]
  %v97 = vld [vmem:[%s1 + $0x138] sm:$0xf]
  %v98 = vld [vmem:[%s1 + $0x13c] sm:$0xf]
  %v99 = vld [vmem:[%s1 + $0x140] sm:$0xf]
  %v100 = vld [vmem:[%s1 + $0x144] sm:$0xf]
  %v101 = vld [vmem:[%s1 + $0x148] sm:$0xf]
  %v102 = vld [vmem:[%s1 + $0x14c] sm:$0xf]
  %v103 = vld [vmem:[%s1 + $0x150] sm:$0xf]
  %v104 = vld [vmem:[%s1 + $0x154] sm:$0xf]
  %v105 = vld [vmem:[%s1 + $0x158] sm:$0xf]
  %v106 = vld [vmem:[%s1 + $0x15c] sm:$0xf]
  %v107 = vld [vmem:[%s1 + $0x160] sm:$0xf]
  %v108 = vld [vmem:[%s1 + $0x164] sm:$0xf]
  %v109 = vld [vmem:[%s1 + $0x168] sm:$0xf]
  %v110 = vld [vmem:[%s1 + $0x16c] sm:$0xf]
  %v111 = vld [vmem:[%s1 + $0x170] sm:$0xf]
  %v112 = vld [vmem:[%s1 + $0x174] sm:$0xf]
  %v113 = vld [vmem:[%s1 + $0x178] sm:$0xf]
  %v114 = vld [vmem:[%s1 + $0x17c] sm:$0xf]
  %v115 = vld [vmem:[%s1 + $0x180] sm:$0xf]
  %v116 = vld [vmem:[%s1 + $0x184] sm:$0xf]
  %v117 = vld [vmem:[%s1 + $0x188] sm:$0xf]
  %v118 = vld [vmem:[%s1 + $0x18c] sm:$0xf]
  %v119 = vld [vmem:[%s1 + $0x190] sm:$0xf]
  %v120 = vld [vmem:[%s1 + $0x194] sm:$0xf]
  %v121 = vld [vmem:[%s1 + $0x198] sm:$0xf]
  %v122 = vld [vmem:[%s1 + $0x19c] sm:$0xf]
  %v123 = vld [vmem:[%s1 + $0x1a0] sm:$0xf]
  %v124 = vld [vmem:[%s1 + $0x1a4] sm:$0xf]
  %v125 = vld [vmem:[%s1 + $0x1a8] sm:$0xf]
  %v126 = vld [vmem:[%s1 + $0x1ac] sm:$0xf]
  %v127 = vld [vmem:[%s2] sm:$0xff]
  %129 = vset.pattern.permute.xlu0 0
  %130 = vperm.xlu0 %129, %v127
  %v131 = vpop.permute.xlu0 %130
  %v137 = vunpack.c.l.b16 %v15
  %v138 = vunpack.c.h.b16 %v15
  %v139 = vunpack.c.l.b16 %v16
  %v140 = vunpack.c.h.b16 %v16
  %v141 = vunpack.c.l.b16 %v17
  %v142 = vunpack.c.h.b16 %v17
  %v143 = vunpack.c.l.b16 %v18
  %v144 = vpack.c.b16 %v137, %v137
  %v145 = vpack.c.b16 %v138, %v138
  %v146 = vpack.c.b16 %v139, %v139
  %v147 = vpack.c.b16 %v140, %v140
  %v148 = vpack.c.b16 %v141, %v141
  %v149 = vpack.c.b16 %v142, %v142
  %v150 = vpack.c.b16 %v143, %v143
  %v265 = vunpack.c.l.b16 %v19
  %v266 = vunpack.c.l.b16 %v20
  %v267 = vunpack.c.l.b16 %v21
  %v268 = vunpack.c.l.b16 %v22
  %v269 = vunpack.c.l.b16 %v23
  %v270 = vunpack.c.l.b16 %v24
  %v271 = vunpack.c.l.b16 %v25
  %v272 = vunpack.c.l.b16 %v26
  %v273 = vunpack.c.l.b16 %v27
  %v274 = vunpack.c.l.b16 %v28
  %v275 = vunpack.c.l.b16 %v29
  %v276 = vunpack.c.l.b16 %v30
  %v277 = vunpack.c.l.b16 %v31
  %v278 = vunpack.c.l.b16 %v32
  %v279 = vunpack.c.l.b16 %v33
  %v280 = vunpack.c.l.b16 %v34
  %v281 = vunpack.c.l.b16 %v35
  %v282 = vunpack.c.l.b16 %v36
  %v283 = vunpack.c.l.b16 %v37
  %v284 = vunpack.c.l.b16 %v38
  %v285 = vunpack.c.l.b16 %v39
  %v286 = vunpack.c.l.b16 %v40
  %v287 = vunpack.c.l.b16 %v41
  %v288 = vunpack.c.l.b16 %v42
  %v289 = vunpack.c.l.b16 %v43
  %v290 = vunpack.c.l.b16 %v44
  %v291 = vunpack.c.l.b16 %v45
  %v292 = vunpack.c.l.b16 %v46
  %v293 = vunpack.c.l.b16 %v47
  %v294 = vunpack.c.l.b16 %v48
  %v295 = vunpack.c.l.b16 %v49
  %v296 = vunpack.c.l.b16 %v50
  %v297 = vunpack.c.l.b16 %v51
  %v298 = vunpack.c.l.b16 %v52
  %v299 = vunpack.c.l.b16 %v53
  %v300 = vunpack.c.l.b16 %v54
  %v301 = vunpack.c.l.b16 %v55
  %v302 = vunpack.c.l.b16 %v56
  %v303 = vunpack.c.l.b16 %v57
  %v304 = vunpack.c.l.b16 %v58
  %v305 = vunpack.c.l.b16 %v59
  %v306 = vunpack.c.l.b16 %v60
  %v307 = vunpack.c.l.b16 %v61
  %v308 = vunpack.c.l.b16 %v62
  %v309 = vunpack.c.l.b16 %v63
  %v310 = vunpack.c.l.b16 %v64
  %v311 = vunpack.c.l.b16 %v65
  %v312 = vunpack.c.l.b16 %v66
  %v313 = vunpack.c.l.b16 %v67
  %v314 = vunpack.c.l.b16 %v68
  %v315 = vunpack.c.l.b16 %v69
  %v316 = vunpack.c.l.b16 %v70
  %v317 = vunpack.c.l.b16 %v71
  %v318 = vunpack.c.l.b16 %v72
  %v319 = vunpack.c.l.b16 %v73
  %v320 = vunpack.c.l.b16 %v74
  %v321 = vunpack.c.l.b16 %v75
  %v322 = vunpack.c.l.b16 %v76
  %v323 = vunpack.c.l.b16 %v77
  %v324 = vunpack.c.l.b16 %v78
  %v325 = vunpack.c.l.b16 %v79
  %v326 = vunpack.c.l.b16 %v80
  %v327 = vunpack.c.l.b16 %v81
  %v328 = vunpack.c.l.b16 %v82
  %v329 = vunpack.c.l.b16 %v83
  %v330 = vunpack.c.l.b16 %v84
  %v331 = vunpack.c.l.b16 %v85
  %v332 = vunpack.c.l.b16 %v86
  %v333 = vunpack.c.l.b16 %v87
  %v334 = vunpack.c.l.b16 %v88
  %v335 = vunpack.c.l.b16 %v89
  %v336 = vunpack.c.l.b16 %v90
  %v337 = vunpack.c.l.b16 %v91
  %v338 = vunpack.c.l.b16 %v92
  %v339 = vunpack.c.l.b16 %v93
  %v340 = vunpack.c.l.b16 %v94
  %v341 = vunpack.c.l.b16 %v95
  %v342 = vunpack.c.l.b16 %v96
  %v343 = vunpack.c.l.b16 %v97
  %v344 = vunpack.c.l.b16 %v98
  %v345 = vunpack.c.l.b16 %v99
  %v346 = vunpack.c.l.b16 %v100
  %v347 = vunpack.c.l.b16 %v101
  %v348 = vunpack.c.l.b16 %v102
  %v349 = vunpack.c.l.b16 %v103
  %v350 = vunpack.c.l.b16 %v104
  %v351 = vunpack.c.l.b16 %v105
  %v352 = vunpack.c.l.b16 %v106
  %v353 = vunpack.c.l.b16 %v107
  %v354 = vunpack.c.l.b16 %v108
  %v355 = vunpack.c.l.b16 %v109
  %v356 = vunpack.c.l.b16 %v110
  %v357 = vunpack.c.l.b16 %v111
  %v358 = vunpack.c.l.b16 %v112
  %v359 = vunpack.c.l.b16 %v113
  %v360 = vunpack.c.l.b16 %v114
  %v361 = vunpack.c.l.b16 %v115
  %v362 = vunpack.c.l.b16 %v116
  %v363 = vunpack.c.l.b16 %v117
  %v364 = vunpack.c.l.b16 %v118
  %v365 = vunpack.c.l.b16 %v119
  %v366 = vunpack.c.l.b16 %v120
  %v367 = vunpack.c.l.b16 %v121
  %v368 = vunpack.c.l.b16 %v122
  %v369 = vunpack.c.l.b16 %v123
  %v370 = vunpack.c.l.b16 %v124
  %v371 = vunpack.c.l.b16 %v125
  %v372 = vunpack.c.l.b16 %v126
  %v373 = vpack.c.b16 %v266, %v265
  %v374 = vpack.c.b16 %v268, %v267
  %v375 = vpack.c.b16 %v270, %v269
  %v376 = vpack.c.b16 %v272, %v271
  %v377 = vpack.c.b16 %v274, %v273
  %v378 = vpack.c.b16 %v276, %v275
  %v379 = vpack.c.b16 %v278, %v277
  %v380 = vpack.c.b16 %v280, %v279
  %v381 = vpack.c.b16 %v282, %v281
  %v382 = vpack.c.b16 %v284, %v283
  %v383 = vpack.c.b16 %v286, %v285
  %v384 = vpack.c.b16 %v288, %v287
  %v385 = vpack.c.b16 %v290, %v289
  %v386 = vpack.c.b16 %v292, %v291
  %v387 = vpack.c.b16 %v294, %v293
  %v388 = vpack.c.b16 %v296, %v295
  %v389 = vpack.c.b16 %v298, %v297
  %v390 = vpack.c.b16 %v300, %v299
  %v391 = vpack.c.b16 %v302, %v301
  %v392 = vpack.c.b16 %v304, %v303
  %v393 = vpack.c.b16 %v306, %v305
  %v394 = vpack.c.b16 %v308, %v307
  %v395 = vpack.c.b16 %v310, %v309
  %v396 = vpack.c.b16 %v312, %v311
  %v397 = vpack.c.b16 %v314, %v313
  %v398 = vpack.c.b16 %v316, %v315
  %v399 = vpack.c.b16 %v318, %v317
  %v400 = vpack.c.b16 %v320, %v319
  %v401 = vpack.c.b16 %v322, %v321
  %v402 = vpack.c.b16 %v324, %v323
  %v403 = vpack.c.b16 %v326, %v325
  %v404 = vpack.c.b16 %v328, %v327
  %v405 = vpack.c.b16 %v330, %v329
  %v406 = vpack.c.b16 %v332, %v331
  %v407 = vpack.c.b16 %v334, %v333
  %v408 = vpack.c.b16 %v336, %v335
  %v409 = vpack.c.b16 %v338, %v337
  %v410 = vpack.c.b16 %v340, %v339
  %v411 = vpack.c.b16 %v342, %v341
  %v412 = vpack.c.b16 %v344, %v343
  %v413 = vpack.c.b16 %v346, %v345
  %v414 = vpack.c.b16 %v348, %v347
  %v415 = vpack.c.b16 %v350, %v349
  %v416 = vpack.c.b16 %v352, %v351
  %v417 = vpack.c.b16 %v354, %v353
  %v418 = vpack.c.b16 %v356, %v355
  %v419 = vpack.c.b16 %v358, %v357
  %v420 = vpack.c.b16 %v360, %v359
  %v421 = vpack.c.b16 %v362, %v361
  %v422 = vpack.c.b16 %v364, %v363
  %v423 = vpack.c.b16 %v366, %v365
  %v424 = vpack.c.b16 %v368, %v367
  %v425 = vpack.c.b16 %v370, %v369
  %v426 = vpack.c.b16 %v372, %v371
  %vm481 = vcmask 785408
  %v483 = vsel %vm481, %v150, 0
  %485 = vmatpush.bf16.msra.mxu0 %v380
  %486 = vmatpush.bf16.msra.mxu0 %v379
  %487 = vmatpush.bf16.msra.mxu0 %v378
  %488 = vmatpush.bf16.msra.mxu0 %v377
  %489 = vmatpush.bf16.msra.mxu0 %v376
  %490 = vmatpush.bf16.msra.mxu0 %v375
  %491 = vmatpush.bf16.msra.mxu0 %v374
  %492 = vmatpush.bf16.msra.mxu0 %v373
  %493 = vmatmul.bf16.gmra.mxu0 %v144
  %v494 = vpop.f32.mrf.mxu0
  %v495 = vadd.f32 %v131, %v494
  %v496 = vpop.f32.mrf.mxu0
  %497 = vdwg.mxu0
  %498 = vmatpush.bf16.msra.mxu0 %v388
  %499 = vmatpush.bf16.msra.mxu0 %v387
  %500 = vmatpush.bf16.msra.mxu0 %v386
  %501 = vmatpush.bf16.msra.mxu0 %v385
  %502 = vmatpush.bf16.msra.mxu0 %v384
  %503 = vmatpush.bf16.msra.mxu0 %v383
  %504 = vmatpush.bf16.msra.mxu0 %v382
  %505 = vmatpush.bf16.msra.mxu0 %v381
  %506 = vmatmul.bf16.gmra.mxu0 %v145
  %v507 = vpop.f32.mrf.mxu0
  %v508 = vadd.f32 %v495, %v507
  %v509 = vpop.f32.mrf.mxu0
  %510 = vdwg.mxu0
  %511 = vmatpush.bf16.msra.mxu0 %v396
  %512 = vmatpush.bf16.msra.mxu0 %v395
  %513 = vmatpush.bf16.msra.mxu0 %v394
  %514 = vmatpush.bf16.msra.mxu0 %v393
  %515 = vmatpush.bf16.msra.mxu0 %v392
  %516 = vmatpush.bf16.msra.mxu0 %v391
  %517 = vmatpush.bf16.msra.mxu0 %v390
  %518 = vmatpush.bf16.msra.mxu0 %v389
  %519 = vmatmul.bf16.gmra.mxu0 %v146
  %v520 = vpop.f32.mrf.mxu0
  %v521 = vadd.f32 %v508, %v520
  %v522 = vpop.f32.mrf.mxu0
  %523 = vdwg.mxu0
  %524 = vmatpush.bf16.msra.mxu0 %v404
  %525 = vmatpush.bf16.msra.mxu0 %v403
  %526 = vmatpush.bf16.msra.mxu0 %v402
  %527 = vmatpush.bf16.msra.mxu0 %v401
  %528 = vmatpush.bf16.msra.mxu0 %v400
  %529 = vmatpush.bf16.msra.mxu0 %v399
  %530 = vmatpush.bf16.msra.mxu0 %v398
  %531 = vmatpush.bf16.msra.mxu0 %v397
  %532 = vmatmul.bf16.gmra.mxu0 %v147
  %v533 = vpop.f32.mrf.mxu0
  %v534 = vadd.f32 %v521, %v533
  %v535 = vpop.f32.mrf.mxu0
  %536 = vdwg.mxu0
  %537 = vmatpush.bf16.msra.mxu0 %v412
  %538 = vmatpush.bf16.msra.mxu0 %v411
  %539 = vmatpush.bf16.msra.mxu0 %v410
  %540 = vmatpush.bf16.msra.mxu0 %v409
  %541 = vmatpush.bf16.msra.mxu0 %v408
  %542 = vmatpush.bf16.msra.mxu0 %v407
  %543 = vmatpush.bf16.msra.mxu0 %v406
  %544 = vmatpush.bf16.msra.mxu0 %v405
  %545 = vmatmul.bf16.gmra.mxu0 %v148
  %v546 = vpop.f32.mrf.mxu0
  %v547 = vadd.f32 %v534, %v546
  %v548 = vpop.f32.mrf.mxu0
  %549 = vdwg.mxu0
  %550 = vmatpush.bf16.msra.mxu0 %v420
  %551 = vmatpush.bf16.msra.mxu0 %v419
  %552 = vmatpush.bf16.msra.mxu0 %v418
  %553 = vmatpush.bf16.msra.mxu0 %v417
  %554 = vmatpush.bf16.msra.mxu0 %v416
  %555 = vmatpush.bf16.msra.mxu0 %v415
  %556 = vmatpush.bf16.msra.mxu0 %v414
  %557 = vmatpush.bf16.msra.mxu0 %v413
  %558 = vmatmul.bf16.gmra.mxu0 %v149
  %v559 = vpop.f32.mrf.mxu0
  %v560 = vadd.f32 %v547, %v559
  %v561 = vpop.f32.mrf.mxu0
  %562 = vdwg.mxu0
  %563 = vmatpush.bf16.msra.mxu0 0
  %564 = vmatpush.bf16.msra.mxu0 0
  %565 = vmatpush.bf16.msra.mxu0 %v426
  %566 = vmatpush.bf16.msra.mxu0 %v425
  %567 = vmatpush.bf16.msra.mxu0 %v424
  %568 = vmatpush.bf16.msra.mxu0 %v423
  %569 = vmatpush.bf16.msra.mxu0 %v422
  %570 = vmatpush.bf16.msra.mxu0 %v421
  %571 = vmatmul.bf16.gmra.mxu0 %v483
  %v572 = vpop.f32.mrf.mxu0
  %v573 = vadd.f32 %v560, %v572
  %v574 = vpop.f32.mrf.mxu0
  %575 = vdwg.mxu0
  %576 = vst [vmem:[%s3] sm:$0xff] %v573
  // Predicated region
  $region14: #{_lambda_.220} parent=0 // pred_check
    _
  $region15: #{_lambda_.220} parent=0 // pred_check_branch
    %578 = sbr.rel (0) target = $region17
  $region16: #{_lambda_.220} parent=0 // pred_region
    _
  $region17: #{_lambda_.220} parent=0 // pred_fallthru
    _
  // Predicated region
  $region18: #{_lambda_.220} parent=0 // pred_check
    _
  $region19: #{_lambda_.220} parent=0 // pred_check_branch
    %580 = sbr.rel (0) target = $region21
  $region20: #{_lambda_.220} parent=0 // pred_region
    _
  $region21: #{_lambda_.220} parent=0 // pred_fallthru
    _

// kernel: _lambda_.221
$region0: #{_lambda_.221}
  #allocation0 [shape = 'u32[]', space=smem, size = 0x4, offset = 0x4, fixed_abs, tag = 'smem constant byte address 0x4 - core index']
  #allocation1 [shape = 'u32[72,128]{1,0:T(1,128)}', space=vmem, size = 0x9000, scoped, tag = 'internal scratch']
  %s0 = inlined_call_operand.vmem [shape: f32[8,2,4], index: 0, kind: input, shape index: {}]
  %s1 = inlined_call_operand.vmem [shape: f32[8,1,4], index: 1, kind: output, shape index: {}]
  %s2 = sld [smem:[#allocation0]]
  $region14: #{_lambda_.221} parent=0
    _
  %s4 = ssub.s32 1, %s2
  %s5 = scalar_select 0, %s4, %s2
  // Predicated region
  $region2: #{_lambda_.221} parent=0 // pred_check
    _
  $region3: #{_lambda_.221} parent=0 // pred_check_branch
    %7 = sbr.rel (0) target = $region5
  $region4: #{_lambda_.221} parent=0 // pred_region
    _
  $region5: #{_lambda_.221} parent=0 // pred_fallthru
    _
  %v8 = vld [vmem:[%s0] sm:$0x3]
  %v9 = vld [vmem:[%s0 + $0x2] sm:$0x3]
  %v10 = vld [vmem:[%s0 + $0x4] sm:$0x3]
  %v11 = vld [vmem:[%s0 + $0x6] sm:$0x3]
  %v12 = vld [vmem:[%s0 + $0x8] sm:$0x3]
  %v13 = vld [vmem:[%s0 + $0xa] sm:$0x3]
  %v14 = vld [vmem:[%s0 + $0xc] sm:$0x3]
  %v15 = vld [vmem:[%s0 + $0xe] sm:$0x3]
  %v16 = vsub.f32 0.0, %v8
  %v17 = vsub.f32 0.0, %v9
  %v18 = vsub.f32 0.0, %v10
  %v19 = vsub.f32 0.0, %v11
  %v20 = vsub.f32 0.0, %v12
  %v21 = vsub.f32 0.0, %v13
  %v22 = vsub.f32 0.0, %v14
  %v23 = vsub.f32 0.0, %v15
  %vm24 = vcmask 25600
  %v25 = vsel %vm24, %v16, -inf
  %v26 = vrot.slane %v25, 4
  %v27 = vmax.f32 %v25, %v26
  %v28 = vrot.slane %v27, 2
  %v29 = vmax.f32 %v27, %v28
  %v30 = vrot.slane %v29, 1
  %v31 = vmax.f32 %v29, %v30
  %v32 = vsel %vm24, %v17, -inf
  %v33 = vrot.slane %v32, 4
  %v34 = vmax.f32 %v32, %v33
  %v35 = vrot.slane %v34, 2
  %v36 = vmax.f32 %v34, %v35
  %v37 = vrot.slane %v36, 1
  %v38 = vmax.f32 %v36, %v37
  %v39 = vsel %vm24, %v18, -inf
  %v40 = vrot.slane %v39, 4
  %v41 = vmax.f32 %v39, %v40
  %v42 = vrot.slane %v41, 2
  %v43 = vmax.f32 %v41, %v42
  %v44 = vrot.slane %v43, 1
  %v45 = vmax.f32 %v43, %v44
  %v46 = vsel %vm24, %v19, -inf
  %v47 = vrot.slane %v46, 4
  %v48 = vmax.f32 %v46, %v47
  %v49 = vrot.slane %v48, 2
  %v50 = vmax.f32 %v48, %v49
  %v51 = vrot.slane %v50, 1
  %v52 = vmax.f32 %v50, %v51
  %v53 = vsel %vm24, %v20, -inf
  %v54 = vrot.slane %v53, 4
  %v55 = vmax.f32 %v53, %v54
  %v56 = vrot.slane %v55, 2
  %v57 = vmax.f32 %v55, %v56
  %v58 = vrot.slane %v57, 1
  %v59 = vmax.f32 %v57, %v58
  %v60 = vsel %vm24, %v21, -inf
  %v61 = vrot.slane %v60, 4
  %v62 = vmax.f32 %v60, %v61
  %v63 = vrot.slane %v62, 2
  %v64 = vmax.f32 %v62, %v63
  %v65 = vrot.slane %v64, 1
  %v66 = vmax.f32 %v64, %v65
  %v67 = vsel %vm24, %v22, -inf
  %v68 = vrot.slane %v67, 4
  %v69 = vmax.f32 %v67, %v68
  %v70 = vrot.slane %v69, 2
  %v71 = vmax.f32 %v69, %v70
  %v72 = vrot.slane %v71, 1
  %v73 = vmax.f32 %v71, %v72
  %v74 = vsel %vm24, %v23, -inf
  %v75 = vrot.slane %v74, 4
  %v76 = vmax.f32 %v74, %v75
  %v77 = vrot.slane %v76, 2
  %v78 = vmax.f32 %v76, %v77
  %v79 = vrot.slane %v78, 1
  %v80 = vmax.f32 %v78, %v79
  %v81 = vsub.f32 %v16, %v31
  %v82 = vsub.f32 %v17, %v38
  %v83 = vsub.f32 %v18, %v45
  %v84 = vsub.f32 %v19, %v52
  %v85 = vsub.f32 %v20, %v59
  %v86 = vsub.f32 %v21, %v66
  %v87 = vsub.f32 %v22, %v73
  %v88 = vsub.f32 %v23, %v80
  %v89 = vmul.f32 %v81, 1.442695
  %v90 = vpow.pop %v89
  %v91 = vmul.f32 %v82, 1.442695
  %v92 = vpow.pop %v91
  %v93 = vmul.f32 %v83, 1.442695
  %v94 = vpow.pop %v93
  %v95 = vmul.f32 %v84, 1.442695
  %v96 = vpow.pop %v95
  %v97 = vmul.f32 %v85, 1.442695
  %v98 = vpow.pop %v97
  %v99 = vmul.f32 %v86, 1.442695
  %v100 = vpow.pop %v99
  %v101 = vmul.f32 %v87, 1.442695
  %v102 = vpow.pop %v101
  %v103 = vmul.f32 %v88, 1.442695
  %v104 = vpow.pop %v103
  %v105 = vsel %vm24, %v90, 0.0
  %v106 = vrot.slane %v105, 4
  %v107 = vadd.f32 %v105, %v106
  %v108 = vrot.slane %v107, 2
  %v109 = vadd.f32 %v107, %v108
  %v110 = vrot.slane %v109, 1
  %v111 = vadd.f32 %v109, %v110
  %v112 = vsel %vm24, %v92, 0.0
  %v113 = vrot.slane %v112, 4
  %v114 = vadd.f32 %v112, %v113
  %v115 = vrot.slane %v114, 2
  %v116 = vadd.f32 %v114, %v115
  %v117 = vrot.slane %v116, 1
  %v118 = vadd.f32 %v116, %v117
  %v119 = vsel %vm24, %v94, 0.0
  %v120 = vrot.slane %v119, 4
  %v121 = vadd.f32 %v119, %v120
  %v122 = vrot.slane %v121, 2
  %v123 = vadd.f32 %v121, %v122
  %v124 = vrot.slane %v123, 1
  %v125 = vadd.f32 %v123, %v124
  %v126 = vsel %vm24, %v96, 0.0
  %v127 = vrot.slane %v126, 4
  %v128 = vadd.f32 %v126, %v127
  %v129 = vrot.slane %v128, 2
  %v130 = vadd.f32 %v128, %v129
  %v131 = vrot.slane %v130, 1
  %v132 = vadd.f32 %v130, %v131
  %v133 = vsel %vm24, %v98, 0.0
  %v134 = vrot.slane %v133, 4
  %v135 = vadd.f32 %v133, %v134
  %v136 = vrot.slane %v135, 2
  %v137 = vadd.f32 %v135, %v136
  %v138 = vrot.slane %v137, 1
  %v139 = vadd.f32 %v137, %v138
  %v140 = vsel %vm24, %v100, 0.0
  %v141 = vrot.slane %v140, 4
  %v142 = vadd.f32 %v140, %v141
  %v143 = vrot.slane %v142, 2
  %v144 = vadd.f32 %v142, %v143
  %v145 = vrot.slane %v144, 1
  %v146 = vadd.f32 %v144, %v145
  %v147 = vsel %vm24, %v102, 0.0
  %v148 = vrot.slane %v147, 4
  %v149 = vadd.f32 %v147, %v148
  %v150 = vrot.slane %v149, 2
  %v151 = vadd.f32 %v149, %v150
  %v152 = vrot.slane %v151, 1
  %v153 = vadd.f32 %v151, %v152
  %v154 = vsel %vm24, %v104, 0.0
  %v155 = vrot.slane %v154, 4
  %v156 = vadd.f32 %v154, %v155
  %v157 = vrot.slane %v156, 2
  %v158 = vadd.f32 %v156, %v157
  %v159 = vrot.slane %v158, 1
  %v160 = vadd.f32 %v158, %v159
  %v161 = vrcp.pop %v111
  %v162 = vmul.f32 %v111, %v161
  %v163 = vsub.f32 1.0, %v162
  %v164 = vmul.f32 %v161, %v163
  %v165 = vadd.f32 %v161, %v164
  %vm166 = vweird.f32 %v111
  %vm167 = vweird.f32 %v161
  %vm168 = vmor %vm166, %vm167
  %v169 = vsel %vm168, %v161, %v165
  %v170 = vand.u32 2147483647, %v111
  %vm171 = vcmp.eq.f32.partialorder %v170, 8.507059e+37
  %v172 = vand.u32 %v111, 2147483648
  %v173 = vor.u32 1.1754944e-38, %v172
  %v174 = vsel %vm171, %v173, %v169
  %v175 = vmul.f32 %v90, %v174
  %v176 = vrcp.pop %v118
  %v177 = vmul.f32 %v118, %v176
  %v178 = vsub.f32 1.0, %v177
  %v179 = vmul.f32 %v176, %v178
  %v180 = vadd.f32 %v176, %v179
  %vm181 = vweird.f32 %v118
  %vm182 = vweird.f32 %v176
  %vm183 = vmor %vm181, %vm182
  %v184 = vsel %vm183, %v176, %v180
  %v185 = vand.u32 2147483647, %v118
  %vm186 = vcmp.eq.f32.partialorder %v185, 8.507059e+37
  %v187 = vand.u32 %v118, 2147483648
  %v188 = vor.u32 1.1754944e-38, %v187
  %v189 = vsel %vm186, %v188, %v184
  %v190 = vmul.f32 %v92, %v189
  %v191 = vrcp.pop %v125
  %v192 = vmul.f32 %v125, %v191
  %v193 = vsub.f32 1.0, %v192
  %v194 = vmul.f32 %v191, %v193
  %v195 = vadd.f32 %v191, %v194
  %vm196 = vweird.f32 %v125
  %vm197 = vweird.f32 %v191
  %vm198 = vmor %vm196, %vm197
  %v199 = vsel %vm198, %v191, %v195
  %v200 = vand.u32 2147483647, %v125
  %vm201 = vcmp.eq.f32.partialorder %v200, 8.507059e+37
  %v202 = vand.u32 %v125, 2147483648
  %v203 = vor.u32 1.1754944e-38, %v202
  %v204 = vsel %vm201, %v203, %v199
  %v205 = vmul.f32 %v94, %v204
  %v206 = vrcp.pop %v132
  %v207 = vmul.f32 %v132, %v206
  %v208 = vsub.f32 1.0, %v207
  %v209 = vmul.f32 %v206, %v208
  %v210 = vadd.f32 %v206, %v209
  %vm211 = vweird.f32 %v132
  %vm212 = vweird.f32 %v206
  %vm213 = vmor %vm211, %vm212
  %v214 = vsel %vm213, %v206, %v210
  %v215 = vand.u32 2147483647, %v132
  %vm216 = vcmp.eq.f32.partialorder %v215, 8.507059e+37
  %v217 = vand.u32 %v132, 2147483648
  %v218 = vor.u32 1.1754944e-38, %v217
  %v219 = vsel %vm216, %v218, %v214
  %v220 = vmul.f32 %v96, %v219
  %v221 = vrcp.pop %v139
  %v222 = vmul.f32 %v139, %v221
  %v223 = vsub.f32 1.0, %v222
  %v224 = vmul.f32 %v221, %v223
  %v225 = vadd.f32 %v221, %v224
  %vm226 = vweird.f32 %v139
  %vm227 = vweird.f32 %v221
  %vm228 = vmor %vm226, %vm227
  %v229 = vsel %vm228, %v221, %v225
  %v230 = vand.u32 2147483647, %v139
  %vm231 = vcmp.eq.f32.partialorder %v230, 8.507059e+37
  %v232 = vand.u32 %v139, 2147483648
  %v233 = vor.u32 1.1754944e-38, %v232
  %v234 = vsel %vm231, %v233, %v229
  %v235 = vmul.f32 %v98, %v234
  %v236 = vrcp.pop %v146
  %v237 = vmul.f32 %v146, %v236
  %v238 = vsub.f32 1.0, %v237
  %v239 = vmul.f32 %v236, %v238
  %v240 = vadd.f32 %v236, %v239
  %vm241 = vweird.f32 %v146
  %vm242 = vweird.f32 %v236
  %vm243 = vmor %vm241, %vm242
  %v244 = vsel %vm243, %v236, %v240
  %v245 = vand.u32 2147483647, %v146
  %vm246 = vcmp.eq.f32.partialorder %v245, 8.507059e+37
  %v247 = vand.u32 %v146, 2147483648
  %v248 = vor.u32 1.1754944e-38, %v247
  %v249 = vsel %vm246, %v248, %v244
  %v250 = vmul.f32 %v100, %v249
  %v251 = vrcp.pop %v153
  %v252 = vmul.f32 %v153, %v251
  %v253 = vsub.f32 1.0, %v252
  %v254 = vmul.f32 %v251, %v253
  %v255 = vadd.f32 %v251, %v254
  %vm256 = vweird.f32 %v153
  %vm257 = vweird.f32 %v251
  %vm258 = vmor %vm256, %vm257
  %v259 = vsel %vm258, %v251, %v255
  %v260 = vand.u32 2147483647, %v153
  %vm261 = vcmp.eq.f32.partialorder %v260, 8.507059e+37
  %v262 = vand.u32 %v153, 2147483648
  %v263 = vor.u32 1.1754944e-38, %v262
  %v264 = vsel %vm261, %v263, %v259
  %v265 = vmul.f32 %v102, %v264
  %v266 = vrcp.pop %v160
  %v267 = vmul.f32 %v160, %v266
  %v268 = vsub.f32 1.0, %v267
  %v269 = vmul.f32 %v266, %v268
  %v270 = vadd.f32 %v266, %v269
  %vm271 = vweird.f32 %v160
  %vm272 = vweird.f32 %v266
  %vm273 = vmor %vm271, %vm272
  %v274 = vsel %vm273, %v266, %v270
  %v275 = vand.u32 2147483647, %v160
  %vm276 = vcmp.eq.f32.partialorder %v275, 8.507059e+37
  %v277 = vand.u32 %v160, 2147483648
  %v278 = vor.u32 1.1754944e-38, %v277
  %v279 = vsel %vm276, %v278, %v274
  %v280 = vmul.f32 %v104, %v279
  %v281 = vlaneseq
  %v282 = vshrl.u32 %v281, 7
  %v283 = vcvt.s32.f32 %v282
  %v284 = vmul.f32 %v283, %v175
  %v285 = vmul.f32 %v283, %v190
  %v286 = vmul.f32 %v283, %v205
  %v287 = vmul.f32 %v283, %v220
  %v288 = vmul.f32 %v283, %v235
  %v289 = vmul.f32 %v283, %v250
  %v290 = vmul.f32 %v283, %v265
  %v291 = vmul.f32 %v283, %v280
  %v292 = vsel %vm24, %v284, 0.0
  %v293 = vrot.slane %v292, 4
  %v294 = vadd.f32 %v292, %v293
  %v295 = vrot.slane %v294, 2
  %v296 = vadd.f32 %v294, %v295
  %v297 = vrot.slane %v296, 1
  %v298 = vadd.f32 %v296, %v297
  %v299 = vsel %vm24, %v285, 0.0
  %v300 = vrot.slane %v299, 4
  %v301 = vadd.f32 %v299, %v300
  %v302 = vrot.slane %v301, 2
  %v303 = vadd.f32 %v301, %v302
  %v304 = vrot.slane %v303, 1
  %v305 = vadd.f32 %v303, %v304
  %v306 = vsel %vm24, %v286, 0.0
  %v307 = vrot.slane %v306, 4
  %v308 = vadd.f32 %v306, %v307
  %v309 = vrot.slane %v308, 2
  %v310 = vadd.f32 %v308, %v309
  %v311 = vrot.slane %v310, 1
  %v312 = vadd.f32 %v310, %v311
  %v313 = vsel %vm24, %v287, 0.0
  %v314 = vrot.slane %v313, 4
  %v315 = vadd.f32 %v313, %v314
  %v316 = vrot.slane %v315, 2
  %v317 = vadd.f32 %v315, %v316
  %v318 = vrot.slane %v317, 1
  %v319 = vadd.f32 %v317, %v318
  %v320 = vsel %vm24, %v288, 0.0
  %v321 = vrot.slane %v320, 4
  %v322 = vadd.f32 %v320, %v321
  %v323 = vrot.slane %v322, 2
  %v324 = vadd.f32 %v322, %v323
  %v325 = vrot.slane %v324, 1
  %v326 = vadd.f32 %v324, %v325
  %v327 = vsel %vm24, %v289, 0.0
  %v328 = vrot.slane %v327, 4
  %v329 = vadd.f32 %v327, %v328
  %v330 = vrot.slane %v329, 2
  %v331 = vadd.f32 %v329, %v330
  %v332 = vrot.slane %v331, 1
  %v333 = vadd.f32 %v331, %v332
  %v334 = vsel %vm24, %v290, 0.0
  %v335 = vrot.slane %v334, 4
  %v336 = vadd.f32 %v334, %v335
  %v337 = vrot.slane %v336, 2
  %v338 = vadd.f32 %v336, %v337
  %v339 = vrot.slane %v338, 1
  %v340 = vadd.f32 %v338, %v339
  %v341 = vsel %vm24, %v291, 0.0
  %v342 = vrot.slane %v341, 4
  %v343 = vadd.f32 %v341, %v342
  %v344 = vrot.slane %v343, 2
  %v345 = vadd.f32 %v343, %v344
  %v346 = vrot.slane %v345, 1
  %v347 = vadd.f32 %v345, %v346
  %vm348 = vcmask 24576
  %349 = vst.msk [vmem:[%s1] sm:$0x1] %vm348, %v298
  %350 = vst.msk [vmem:[%s1 + $0x1] sm:$0x1] %vm348, %v305
  %351 = vst.msk [vmem:[%s1 + $0x2] sm:$0x1] %vm348, %v312
  %352 = vst.msk [vmem:[%s1 + $0x3] sm:$0x1] %vm348, %v319
  %353 = vst.msk [vmem:[%s1 + $0x4] sm:$0x1] %vm348, %v326
  %354 = vst.msk [vmem:[%s1 + $0x5] sm:$0x1] %vm348, %v333
  %355 = vst.msk [vmem:[%s1 + $0x6] sm:$0x1] %vm348, %v340
  %356 = vst.msk [vmem:[%s1 + $0x7] sm:$0x1] %vm348, %v347
  // Predicated region
  $region6: #{_lambda_.221} parent=0 // pred_check
    _
  $region7: #{_lambda_.221} parent=0 // pred_check_branch
    %358 = sbr.rel (0) target = $region9
  $region8: #{_lambda_.221} parent=0 // pred_region
    _
  $region9: #{_lambda_.221} parent=0 // pred_fallthru
    _
  // Predicated region
  $region10: #{_lambda_.221} parent=0 // pred_check
    _
  $region11: #{_lambda_.221} parent=0 // pred_check_branch
    %360 = sbr.rel (0) target = $region13
  $region12: #{_lambda_.221} parent=0 // pred_region
    _
  $region13: #{_lambda_.221} parent=0 // pred_fallthru
    _

// kernel: _lambda_.222
$region0: #{_lambda_.222}
  #allocation0 [shape = 'u32[]', space=smem, size = 0x4, offset = 0x4, fixed_abs, tag = 'smem constant byte address 0x4 - core index']
  #allocation1 [shape = 'u32[72,128]{1,0:T(1,128)}', space=vmem, size = 0x9000, scoped, tag = 'internal scratch']
  %s0 = inlined_call_operand.vmem [shape: bf16[32,36], index: 0, kind: input, shape index: {}]
  %s1 = inlined_call_operand.vmem [shape: bf16[36,128], index: 1, kind: input, shape index: {}]
  %s2 = inlined_call_operand.vmem [shape: f32[32,1], index: 2, kind: input, shape index: {}]
  %s3 = inlined_call_operand.vmem [shape: f32[32,128], index: 3, kind: output, shape index: {}]
  %s4 = sld [smem:[#allocation0]]
  $region22: #{_lambda_.222} parent=0
    _
  %s6 = ssub.s32 1, %s4
  %s7 = scalar_select 0, %s6, %s4
  // Predicated region
  $region2: #{_lambda_.222} parent=0 // pred_check
    _
  $region3: #{_lambda_.222} parent=0 // pred_check_branch
    %9 = sbr.rel (0) target = $region5
  $region4: #{_lambda_.222} parent=0 // pred_region
    _
  $region5: #{_lambda_.222} parent=0 // pred_fallthru
    _
  // Predicated region
  $region6: #{_lambda_.222} parent=0 // pred_check
    _
  $region7: #{_lambda_.222} parent=0 // pred_check_branch
    %11 = sbr.rel (0) target = $region9
  $region8: #{_lambda_.222} parent=0 // pred_region
    _
  $region9: #{_lambda_.222} parent=0 // pred_fallthru
    _
  // Predicated region
  $region10: #{_lambda_.222} parent=0 // pred_check
    _
  $region11: #{_lambda_.222} parent=0 // pred_check_branch
    %13 = sbr.rel (0) target = $region13
  $region12: #{_lambda_.222} parent=0 // pred_region
    _
  $region13: #{_lambda_.222} parent=0 // pred_fallthru
    _
  %v15 = vld [vmem:[%s0] sm:$0xf]
  %v16 = vld [vmem:[%s0 + $0x4] sm:$0xf]
  %v17 = vld [vmem:[%s0 + $0x8] sm:$0xf]
  %v18 = vld [vmem:[%s0 + $0xc] sm:$0xf]
  %v19 = vld [vmem:[%s1] sm:$0xf]
  %v20 = vld [vmem:[%s1 + $0x4] sm:$0xf]
  %v21 = vld [vmem:[%s1 + $0x8] sm:$0xf]
  %v22 = vld [vmem:[%s1 + $0xc] sm:$0xf]
  %v23 = vld [vmem:[%s1 + $0x10] sm:$0x3]
  %v24 = vld [vmem:[%s2] sm:$0xff]
  %v25 = vld [vmem:[%s2 + $0x8] sm:$0xff]
  %v26 = vld [vmem:[%s2 + $0x10] sm:$0xff]
  %v27 = vld [vmem:[%s2 + $0x18] sm:$0xff]
  %29 = vset.pattern.permute.xlu0 0
  %30 = vperm.xlu0 %29, %v24
  %v31 = vpop.permute.xlu0 %30
  %34 = vset.pattern.permute.xlu0 0
  %35 = vperm.xlu0 %34, %v25
  %v36 = vpop.permute.xlu0 %35
  %39 = vset.pattern.permute.xlu0 0
  %40 = vperm.xlu0 %39, %v26
  %v41 = vpop.permute.xlu0 %40
  %44 = vset.pattern.permute.xlu0 0
  %45 = vperm.xlu0 %44, %v27
  %v46 = vpop.permute.xlu0 %45
  %v52 = vunpack.c.l.b16 %v15
  %v53 = vunpack.c.l.b16 %v16
  %v54 = vunpack.c.l.b16 %v17
  %v55 = vunpack.c.l.b16 %v18
  %v56 = vpack.c.b16 %v53, %v52
  %v57 = vpack.c.b16 %v55, %v54
  %v63 = vunpack.c.l.b16 %v19
  %v64 = vunpack.c.l.b16 %v20
  %v65 = vunpack.c.l.b16 %v21
  %v66 = vunpack.c.l.b16 %v22
  %v67 = vunpack.c.l.b16 %v23
  %v68 = vpack.c.b16 %v64, %v63
  %v69 = vpack.c.b16 %v66, %v65
  %v70 = vpack.c.b16 %v67, %v67
  %vm73 = vcmask 293888
  %v75 = vsel %vm73, %v56, 0
  %v78 = vsel %vm73, %v57, 0
  %vm80 = vcmask 1041408
  %v82 = vsel %vm80, %v70, 0
  %84 = vmatpush.bf16.msra.mxu0 0
  %85 = vmatpush.bf16.msra.mxu0 0
  %86 = vmatpush.bf16.msra.mxu0 0
  %87 = vmatpush.bf16.msra.mxu0 0
  %88 = vmatpush.bf16.msra.mxu0 0
  %89 = vmatpush.bf16.msra.mxu0 %v82
  %90 = vmatpush.bf16.msra.mxu0 %v69
  %91 = vmatpush.bf16.msra.mxu0 %v68
  %92 = vmatmul.bf16.gmra.mxu0 %v75
  %v93 = vpop.f32.mrf.mxu0
  %v94 = vadd.f32 %v31, %v93
  %v95 = vpop.f32.mrf.mxu0
  %v96 = vadd.f32 %v36, %v95
  %97 = vmatmul.bf16.gmra.mxu0 %v78
  %v98 = vpop.f32.mrf.mxu0
  %v99 = vadd.f32 %v41, %v98
  %v100 = vpop.f32.mrf.mxu0
  %v101 = vadd.f32 %v46, %v100
  %102 = vdwg.mxu0
  %103 = vst [vmem:[%s3] sm:$0xff] %v94
  %104 = vst [vmem:[%s3 + $0x8] sm:$0xff] %v96
  %105 = vst [vmem:[%s3 + $0x10] sm:$0xff] %v99
  %106 = vst [vmem:[%s3 + $0x18] sm:$0xff] %v101
  // Predicated region
  $region14: #{_lambda_.222} parent=0 // pred_check
    _
  $region15: #{_lambda_.222} parent=0 // pred_check_branch
    %108 = sbr.rel (0) target = $region17
  $region16: #{_lambda_.222} parent=0 // pred_region
    _
  $region17: #{_lambda_.222} parent=0 // pred_fallthru
    _
  // Predicated region
  $region18: #{_lambda_.222} parent=0 // pred_check
    _
  $region19: #{_lambda_.222} parent=0 // pred_check_branch
    %110 = sbr.rel (0) target = $region21
  $region20: #{_lambda_.222} parent=0 // pred_region
    _
  $region21: #{_lambda_.222} parent=0 // pred_fallthru
    _

// kernel: _lambda_.228
$region0: #{_lambda_.228}
  #allocation0 [shape = 'u32[]', space=smem, size = 0x4, offset = 0x4, fixed_abs, tag = 'smem constant byte address 0x4 - core index']
  #allocation1 [shape = 'u32[72,128]{1,0:T(1,128)}', space=vmem, size = 0x9000, scoped, tag = 'internal scratch']
  %s0 = inlined_call_operand.vmem [shape: f32[32,128], index: 0, kind: input, shape index: {}]
  %s1 = inlined_call_operand.vmem [shape: f32[32,1], index: 1, kind: input, shape index: {}]
  %s2 = inlined_call_operand.vmem [shape: f32[32,1], index: 2, kind: input, shape index: {}]
  %s3 = inlined_call_operand.vmem [shape: f32[32,128], index: 3, kind: input, shape index: {}]
  %s4 = inlined_call_operand.vmem [shape: f32[32,128], index: 4, kind: output, shape index: {}]
  %s5 = sld [smem:[#allocation0]]
  $region26: #{_lambda_.228} parent=0
    _
  %s7 = ssub.s32 1, %s5
  %s8 = scalar_select 0, %s7, %s5
  // Predicated region
  $region2: #{_lambda_.228} parent=0 // pred_check
    _
  $region3: #{_lambda_.228} parent=0 // pred_check_branch
    %10 = sbr.rel (0) target = $region5
  $region4: #{_lambda_.228} parent=0 // pred_region
    _
  $region5: #{_lambda_.228} parent=0 // pred_fallthru
    _
  // Predicated region
  $region6: #{_lambda_.228} parent=0 // pred_check
    _
  $region7: #{_lambda_.228} parent=0 // pred_check_branch
    %12 = sbr.rel (0) target = $region9
  $region8: #{_lambda_.228} parent=0 // pred_region
    _
  $region9: #{_lambda_.228} parent=0 // pred_fallthru
    _
  // Predicated region
  $region10: #{_lambda_.228} parent=0 // pred_check
    _
  $region11: #{_lambda_.228} parent=0 // pred_check_branch
    %14 = sbr.rel (0) target = $region13
  $region12: #{_lambda_.228} parent=0 // pred_region
    _
  $region13: #{_lambda_.228} parent=0 // pred_fallthru
    _
  // Predicated region
  $region14: #{_lambda_.228} parent=0 // pred_check
    _
  $region15: #{_lambda_.228} parent=0 // pred_check_branch
    %16 = sbr.rel (0) target = $region17
  $region16: #{_lambda_.228} parent=0 // pred_region
    _
  $region17: #{_lambda_.228} parent=0 // pred_fallthru
    _
  %v17 = vld [vmem:[%s0] sm:$0xff]
  %v18 = vld [vmem:[%s0 + $0x8] sm:$0xff]
  %v19 = vld [vmem:[%s0 + $0x10] sm:$0xff]
  %v20 = vld [vmem:[%s0 + $0x18] sm:$0xff]
  %v21 = vld [vmem:[%s1] sm:$0xff]
  %v22 = vld [vmem:[%s1 + $0x8] sm:$0xff]
  %v23 = vld [vmem:[%s1 + $0x10] sm:$0xff]
  %v24 = vld [vmem:[%s1 + $0x18] sm:$0xff]
  %v25 = vmul.f32 %v21, 0.0078125
  %v26 = vmul.f32 %v22, 0.0078125
  %v27 = vmul.f32 %v23, 0.0078125
  %v28 = vmul.f32 %v24, 0.0078125
  %v29 = vld [vmem:[%s2] sm:$0xff]
  %v30 = vld [vmem:[%s2 + $0x8] sm:$0xff]
  %v31 = vld [vmem:[%s2 + $0x10] sm:$0xff]
  %v32 = vld [vmem:[%s2 + $0x18] sm:$0xff]
  %v33 = vmul.f32 %v29, 0.0078125
  %v34 = vmul.f32 %v30, 0.0078125
  %v35 = vmul.f32 %v31, 0.0078125
  %v36 = vmul.f32 %v32, 0.0078125
  %v37 = vmul.f32 %v25, %v25
  %v38 = vmul.f32 %v26, %v26
  %v39 = vmul.f32 %v27, %v27
  %v40 = vmul.f32 %v28, %v28
  %v41 = vsub.f32 %v33, %v37
  %v42 = vsub.f32 %v34, %v38
  %v43 = vsub.f32 %v35, %v39
  %v44 = vsub.f32 %v36, %v40
  %v45 = vmax.f32 %v41, 0.0
  %v46 = vmax.f32 %v42, 0.0
  %v47 = vmax.f32 %v43, 0.0
  %v48 = vmax.f32 %v44, 0.0
  %50 = vset.pattern.permute.xlu0 0
  %51 = vperm.xlu0 %50, %v25
  %v52 = vpop.permute.xlu0 %51
  %55 = vset.pattern.permute.xlu0 0
  %56 = vperm.xlu0 %55, %v26
  %v57 = vpop.permute.xlu0 %56
  %60 = vset.pattern.permute.xlu0 0
  %61 = vperm.xlu0 %60, %v27
  %v62 = vpop.permute.xlu0 %61
  %65 = vset.pattern.permute.xlu0 0
  %66 = vperm.xlu0 %65, %v28
  %v67 = vpop.permute.xlu0 %66
  %v69 = vsub.f32 %v17, %v52
  %v70 = vsub.f32 %v18, %v57
  %v71 = vsub.f32 %v19, %v62
  %v72 = vsub.f32 %v20, %v67
  %v73 = vadd.f32 %v45, 1e-05
  %v74 = vadd.f32 %v46, 1e-05
  %v75 = vadd.f32 %v47, 1e-05
  %v76 = vadd.f32 %v48, 1e-05
  %v77 = vrsqrt.pop %v73
  %v78 = vmul.f32 %v77, %v73
  %v79 = vmul.f32 %v78, %v77
  %v80 = vmul.f32 0.5, %v79
  %v81 = vsub.f32 1.5, %v80
  %v82 = vmul.f32 %v77, %v81
  %vm83 = vweird.f32 %v73
  %vm84 = vweird.f32 %v77
  %vm85 = vmor %vm83, %vm84
  %v86 = vsel %vm85, %v77, %v82
  %v87 = vrsqrt.pop %v74
  %v88 = vmul.f32 %v87, %v74
  %v89 = vmul.f32 %v88, %v87
  %v90 = vmul.f32 0.5, %v89
  %v91 = vsub.f32 1.5, %v90
  %v92 = vmul.f32 %v87, %v91
  %vm93 = vweird.f32 %v74
  %vm94 = vweird.f32 %v87
  %vm95 = vmor %vm93, %vm94
  %v96 = vsel %vm95, %v87, %v92
  %v97 = vrsqrt.pop %v75
  %v98 = vmul.f32 %v97, %v75
  %v99 = vmul.f32 %v98, %v97
  %v100 = vmul.f32 0.5, %v99
  %v101 = vsub.f32 1.5, %v100
  %v102 = vmul.f32 %v97, %v101
  %vm103 = vweird.f32 %v75
  %vm104 = vweird.f32 %v97
  %vm105 = vmor %vm103, %vm104
  %v106 = vsel %vm105, %v97, %v102
  %v107 = vrsqrt.pop %v76
  %v108 = vmul.f32 %v107, %v76
  %v109 = vmul.f32 %v108, %v107
  %v110 = vmul.f32 0.5, %v109
  %v111 = vsub.f32 1.5, %v110
  %v112 = vmul.f32 %v107, %v111
  %vm113 = vweird.f32 %v76
  %vm114 = vweird.f32 %v107
  %vm115 = vmor %vm113, %vm114
  %v116 = vsel %vm115, %v107, %v112
  %118 = vset.pattern.permute.xlu0 0
  %119 = vperm.xlu0 %118, %v86
  %v120 = vpop.permute.xlu0 %119
  %123 = vset.pattern.permute.xlu0 0
  %124 = vperm.xlu0 %123, %v96
  %v125 = vpop.permute.xlu0 %124
  %128 = vset.pattern.permute.xlu0 0
  %129 = vperm.xlu0 %128, %v106
  %v130 = vpop.permute.xlu0 %129
  %133 = vset.pattern.permute.xlu0 0
  %134 = vperm.xlu0 %133, %v116
  %v135 = vpop.permute.xlu0 %134
  %v137 = vmul.f32 %v69, %v120
  %v138 = vmul.f32 %v70, %v125
  %v139 = vmul.f32 %v71, %v130
  %v140 = vmul.f32 %v72, %v135
  %v141 = vld [vmem:[%s3] sm:$0xff]
  %v142 = vld [vmem:[%s3 + $0x8] sm:$0xff]
  %v143 = vld [vmem:[%s3 + $0x10] sm:$0xff]
  %v144 = vld [vmem:[%s3 + $0x18] sm:$0xff]
  %v145 = vadd.f32 %v137, %v141
  %v146 = vadd.f32 %v138, %v142
  %v147 = vadd.f32 %v139, %v143
  %v148 = vadd.f32 %v140, %v144
  %vm149 = vcmp.gt.f32.partialorder %v145, 0.0
  %vm150 = vcmp.gt.f32.partialorder %v146, 0.0
  %vm151 = vcmp.gt.f32.partialorder %v147, 0.0
  %vm152 = vcmp.gt.f32.partialorder %v148, 0.0
  %v153 = vmul.f32 %v145, 0.2
  %v154 = vmul.f32 %v146, 0.2
  %v155 = vmul.f32 %v147, 0.2
  %v156 = vmul.f32 %v148, 0.2
  %v157 = vsel %vm149, %v145, %v153
  %v158 = vsel %vm150, %v146, %v154
  %v159 = vsel %vm151, %v147, %v155
  %v160 = vsel %vm152, %v148, %v156
  %161 = vst [vmem:[%s4] sm:$0xff] %v157
  %162 = vst [vmem:[%s4 + $0x8] sm:$0xff] %v158
  %163 = vst [vmem:[%s4 + $0x10] sm:$0xff] %v159
  %164 = vst [vmem:[%s4 + $0x18] sm:$0xff] %v160
  // Predicated region
  $region18: #{_lambda_.228} parent=0 // pred_check
    _
  $region19: #{_lambda_.228} parent=0 // pred_check_branch
    %166 = sbr.rel (0) target = $region21
  $region20: #{_lambda_.228} parent=0 // pred_region
    _
  $region21: #{_lambda_.228} parent=0 // pred_fallthru
    _
  // Predicated region
  $region22: #{_lambda_.228} parent=0 // pred_check
    _
  $region23: #{_lambda_.228} parent=0 // pred_check_branch
    %168 = sbr.rel (0) target = $region25
  $region24: #{_lambda_.228} parent=0 // pred_region
    _
  $region25: #{_lambda_.228} parent=0 // pred_fallthru
    _

// kernel: _lambda_.225
$region0: #{_lambda_.225}
  #allocation0 [shape = 'u32[]', space=smem, size = 0x4, offset = 0x4, fixed_abs, tag = 'smem constant byte address 0x4 - core index']
  #allocation1 [shape = 'u32[72,128]{1,0:T(1,128)}', space=vmem, size = 0x9000, scoped, tag = 'internal scratch']
  %s0 = inlined_call_operand.vmem [shape: f32[32,128], index: 0, kind: input, shape index: {}]
  %s1 = inlined_call_operand.vmem [shape: f32[32,1], index: 1, kind: input, shape index: {}]
  %s2 = inlined_call_operand.vmem [shape: f32[32,1], index: 2, kind: input, shape index: {}]
  %s3 = inlined_call_operand.vmem [shape: f32[32,128], index: 3, kind: output, shape index: {}]
  %s4 = sld [smem:[#allocation0]]
  $region22: #{_lambda_.225} parent=0
    _
  %s6 = ssub.s32 1, %s4
  %s7 = scalar_select 0, %s6, %s4
  // Predicated region
  $region2: #{_lambda_.225} parent=0 // pred_check
    _
  $region3: #{_lambda_.225} parent=0 // pred_check_branch
    %9 = sbr.rel (0) target = $region5
  $region4: #{_lambda_.225} parent=0 // pred_region
    _
  $region5: #{_lambda_.225} parent=0 // pred_fallthru
    _
  // Predicated region
  $region6: #{_lambda_.225} parent=0 // pred_check
    _
  $region7: #{_lambda_.225} parent=0 // pred_check_branch
    %11 = sbr.rel (0) target = $region9
  $region8: #{_lambda_.225} parent=0 // pred_region
    _
  $region9: #{_lambda_.225} parent=0 // pred_fallthru
    _
  // Predicated region
  $region10: #{_lambda_.225} parent=0 // pred_check
    _
  $region11: #{_lambda_.225} parent=0 // pred_check_branch
    %13 = sbr.rel (0) target = $region13
  $region12: #{_lambda_.225} parent=0 // pred_region
    _
  $region13: #{_lambda_.225} parent=0 // pred_fallthru
    _
  %v14 = vld [vmem:[%s0] sm:$0xff]
  %v15 = vld [vmem:[%s0 + $0x8] sm:$0xff]
  %v16 = vld [vmem:[%s0 + $0x10] sm:$0xff]
  %v17 = vld [vmem:[%s0 + $0x18] sm:$0xff]
  %v18 = vld [vmem:[%s1] sm:$0xff]
  %v19 = vld [vmem:[%s1 + $0x8] sm:$0xff]
  %v20 = vld [vmem:[%s1 + $0x10] sm:$0xff]
  %v21 = vld [vmem:[%s1 + $0x18] sm:$0xff]
  %v22 = vmul.f32 %v18, 0.0078125
  %v23 = vmul.f32 %v19, 0.0078125
  %v24 = vmul.f32 %v20, 0.0078125
  %v25 = vmul.f32 %v21, 0.0078125
  %v26 = vld [vmem:[%s2] sm:$0xff]
  %v27 = vld [vmem:[%s2 + $0x8] sm:$0xff]
  %v28 = vld [vmem:[%s2 + $0x10] sm:$0xff]
  %v29 = vld [vmem:[%s2 + $0x18] sm:$0xff]
  %v30 = vmul.f32 %v26, 0.0078125
  %v31 = vmul.f32 %v27, 0.0078125
  %v32 = vmul.f32 %v28, 0.0078125
  %v33 = vmul.f32 %v29, 0.0078125
  %v34 = vmul.f32 %v22, %v22
  %v35 = vmul.f32 %v23, %v23
  %v36 = vmul.f32 %v24, %v24
  %v37 = vmul.f32 %v25, %v25
  %v38 = vsub.f32 %v30, %v34
  %v39 = vsub.f32 %v31, %v35
  %v40 = vsub.f32 %v32, %v36
  %v41 = vsub.f32 %v33, %v37
  %v42 = vmax.f32 %v38, 0.0
  %v43 = vmax.f32 %v39, 0.0
  %v44 = vmax.f32 %v40, 0.0
  %v45 = vmax.f32 %v41, 0.0
  %47 = vset.pattern.permute.xlu0 0
  %48 = vperm.xlu0 %47, %v22
  %v49 = vpop.permute.xlu0 %48
  %52 = vset.pattern.permute.xlu0 0
  %53 = vperm.xlu0 %52, %v23
  %v54 = vpop.permute.xlu0 %53
  %57 = vset.pattern.permute.xlu0 0
  %58 = vperm.xlu0 %57, %v24
  %v59 = vpop.permute.xlu0 %58
  %62 = vset.pattern.permute.xlu0 0
  %63 = vperm.xlu0 %62, %v25
  %v64 = vpop.permute.xlu0 %63
  %v66 = vsub.f32 %v14, %v49
  %v67 = vsub.f32 %v15, %v54
  %v68 = vsub.f32 %v16, %v59
  %v69 = vsub.f32 %v17, %v64
  %v70 = vadd.f32 %v42, 1e-05
  %v71 = vadd.f32 %v43, 1e-05
  %v72 = vadd.f32 %v44, 1e-05
  %v73 = vadd.f32 %v45, 1e-05
  %v74 = vrsqrt.pop %v70
  %v75 = vmul.f32 %v74, %v70
  %v76 = vmul.f32 %v75, %v74
  %v77 = vmul.f32 0.5, %v76
  %v78 = vsub.f32 1.5, %v77
  %v79 = vmul.f32 %v74, %v78
  %vm80 = vweird.f32 %v70
  %vm81 = vweird.f32 %v74
  %vm82 = vmor %vm80, %vm81
  %v83 = vsel %vm82, %v74, %v79
  %v84 = vrsqrt.pop %v71
  %v85 = vmul.f32 %v84, %v71
  %v86 = vmul.f32 %v85, %v84
  %v87 = vmul.f32 0.5, %v86
  %v88 = vsub.f32 1.5, %v87
  %v89 = vmul.f32 %v84, %v88
  %vm90 = vweird.f32 %v71
  %vm91 = vweird.f32 %v84
  %vm92 = vmor %vm90, %vm91
  %v93 = vsel %vm92, %v84, %v89
  %v94 = vrsqrt.pop %v72
  %v95 = vmul.f32 %v94, %v72
  %v96 = vmul.f32 %v95, %v94
  %v97 = vmul.f32 0.5, %v96
  %v98 = vsub.f32 1.5, %v97
  %v99 = vmul.f32 %v94, %v98
  %vm100 = vweird.f32 %v72
  %vm101 = vweird.f32 %v94
  %vm102 = vmor %vm100, %vm101
  %v103 = vsel %vm102, %v94, %v99
  %v104 = vrsqrt.pop %v73
  %v105 = vmul.f32 %v104, %v73
  %v106 = vmul.f32 %v105, %v104
  %v107 = vmul.f32 0.5, %v106
  %v108 = vsub.f32 1.5, %v107
  %v109 = vmul.f32 %v104, %v108
  %vm110 = vweird.f32 %v73
  %vm111 = vweird.f32 %v104
  %vm112 = vmor %vm110, %vm111
  %v113 = vsel %vm112, %v104, %v109
  %115 = vset.pattern.permute.xlu0 0
  %116 = vperm.xlu0 %115, %v83
  %v117 = vpop.permute.xlu0 %116
  %120 = vset.pattern.permute.xlu0 0
  %121 = vperm.xlu0 %120, %v93
  %v122 = vpop.permute.xlu0 %121
  %125 = vset.pattern.permute.xlu0 0
  %126 = vperm.xlu0 %125, %v103
  %v127 = vpop.permute.xlu0 %126
  %130 = vset.pattern.permute.xlu0 0
  %131 = vperm.xlu0 %130, %v113
  %v132 = vpop.permute.xlu0 %131
  %v134 = vmul.f32 %v66, %v117
  %v135 = vmul.f32 %v67, %v122
  %v136 = vmul.f32 %v68, %v127
  %v137 = vmul.f32 %v69, %v132
  %vm138 = vcmp.gt.f32.partialorder %v134, 0.0
  %vm139 = vcmp.gt.f32.partialorder %v135, 0.0
  %vm140 = vcmp.gt.f32.partialorder %v136, 0.0
  %vm141 = vcmp.gt.f32.partialorder %v137, 0.0
  %v142 = vmul.f32 %v134, 0.2
  %v143 = vmul.f32 %v135, 0.2
  %v144 = vmul.f32 %v136, 0.2
  %v145 = vmul.f32 %v137, 0.2
  %v146 = vsel %vm138, %v134, %v142
  %v147 = vsel %vm139, %v135, %v143
  %v148 = vsel %vm140, %v136, %v144
  %v149 = vsel %vm141, %v137, %v145
  %150 = vst [vmem:[%s3] sm:$0xff] %v146
  %151 = vst [vmem:[%s3 + $0x8] sm:$0xff] %v147
  %152 = vst [vmem:[%s3 + $0x10] sm:$0xff] %v148
  %153 = vst [vmem:[%s3 + $0x18] sm:$0xff] %v149
  // Predicated region
  $region14: #{_lambda_.225} parent=0 // pred_check
    _
  $region15: #{_lambda_.225} parent=0 // pred_check_branch
    %155 = sbr.rel (0) target = $region17
  $region16: #{_lambda_.225} parent=0 // pred_region
    _
  $region17: #{_lambda_.225} parent=0 // pred_fallthru
    _
  // Predicated region
  $region18: #{_lambda_.225} parent=0 // pred_check
    _
  $region19: #{_lambda_.225} parent=0 // pred_check_branch
    %157 = sbr.rel (0) target = $region21
  $region20: #{_lambda_.225} parent=0 // pred_region
    _
  $region21: #{_lambda_.225} parent=0 // pred_fallthru
    _

// kernel: _lambda_.259
$region0: #{_lambda_.259}
  #allocation0 [shape = 'u32[]', space=smem, size = 0x4, offset = 0x4, fixed_abs, tag = 'smem constant byte address 0x4 - core index']
  #allocation1 [shape = 'u32[72,128]{1,0:T(1,128)}', space=vmem, size = 0x9000, scoped, tag = 'internal scratch']
  %s0 = inlined_call_operand.vmem [shape: bf16[8,288], index: 0, kind: input, shape index: {}]
  %s1 = inlined_call_operand.vmem [shape: bf16[288,128], index: 1, kind: input, shape index: {}]
  %s2 = inlined_call_operand.vmem [shape: f32[8,1], index: 2, kind: input, shape index: {}]
  %s3 = inlined_call_operand.vmem [shape: f32[8,128], index: 3, kind: output, shape index: {}]
  %s4 = sld [smem:[#allocation0]]
  $region22: #{_lambda_.259} parent=0
    _
  %s6 = ssub.s32 1, %s4
  %s7 = scalar_select 0, %s6, %s4
  // Predicated region
  $region2: #{_lambda_.259} parent=0 // pred_check
    _
  $region3: #{_lambda_.259} parent=0 // pred_check_branch
    %9 = sbr.rel (0) target = $region5
  $region4: #{_lambda_.259} parent=0 // pred_region
    _
  $region5: #{_lambda_.259} parent=0 // pred_fallthru
    _
  // Predicated region
  $region6: #{_lambda_.259} parent=0 // pred_check
    _
  $region7: #{_lambda_.259} parent=0 // pred_check_branch
    %11 = sbr.rel (0) target = $region9
  $region8: #{_lambda_.259} parent=0 // pred_region
    _
  $region9: #{_lambda_.259} parent=0 // pred_fallthru
    _
  // Predicated region
  $region10: #{_lambda_.259} parent=0 // pred_check
    _
  $region11: #{_lambda_.259} parent=0 // pred_check_branch
    %13 = sbr.rel (0) target = $region13
  $region12: #{_lambda_.259} parent=0 // pred_region
    _
  $region13: #{_lambda_.259} parent=0 // pred_fallthru
    _
  %v15 = vld [vmem:[%s0] sm:$0xff]
  %v16 = vld [vmem:[%s0 + $0x8] sm:$0xf]
  %v17 = vld [vmem:[%s1] sm:$0xf]
  %v18 = vld [vmem:[%s1 + $0x4] sm:$0xf]
  %v19 = vld [vmem:[%s1 + $0x8] sm:$0xf]
  %v20 = vld [vmem:[%s1 + $0xc] sm:$0xf]
  %v21 = vld [vmem:[%s1 + $0x10] sm:$0xf]
  %v22 = vld [vmem:[%s1 + $0x14] sm:$0xf]
  %v23 = vld [vmem:[%s1 + $0x18] sm:$0xf]
  %v24 = vld [vmem:[%s1 + $0x1c] sm:$0xf]
  %v25 = vld [vmem:[%s1 + $0x20] sm:$0xf]
  %v26 = vld [vmem:[%s1 + $0x24] sm:$0xf]
  %v27 = vld [vmem:[%s1 + $0x28] sm:$0xf]
  %v28 = vld [vmem:[%s1 + $0x2c] sm:$0xf]
  %v29 = vld [vmem:[%s1 + $0x30] sm:$0xf]
  %v30 = vld [vmem:[%s1 + $0x34] sm:$0xf]
  %v31 = vld [vmem:[%s1 + $0x38] sm:$0xf]
  %v32 = vld [vmem:[%s1 + $0x3c] sm:$0xf]
  %v33 = vld [vmem:[%s1 + $0x40] sm:$0xf]
  %v34 = vld [vmem:[%s1 + $0x44] sm:$0xf]
  %v35 = vld [vmem:[%s1 + $0x48] sm:$0xf]
  %v36 = vld [vmem:[%s1 + $0x4c] sm:$0xf]
  %v37 = vld [vmem:[%s1 + $0x50] sm:$0xf]
  %v38 = vld [vmem:[%s1 + $0x54] sm:$0xf]
  %v39 = vld [vmem:[%s1 + $0x58] sm:$0xf]
  %v40 = vld [vmem:[%s1 + $0x5c] sm:$0xf]
  %v41 = vld [vmem:[%s1 + $0x60] sm:$0xf]
  %v42 = vld [vmem:[%s1 + $0x64] sm:$0xf]
  %v43 = vld [vmem:[%s1 + $0x68] sm:$0xf]
  %v44 = vld [vmem:[%s1 + $0x6c] sm:$0xf]
  %v45 = vld [vmem:[%s1 + $0x70] sm:$0xf]
  %v46 = vld [vmem:[%s1 + $0x74] sm:$0xf]
  %v47 = vld [vmem:[%s1 + $0x78] sm:$0xf]
  %v48 = vld [vmem:[%s1 + $0x7c] sm:$0xf]
  %v49 = vld [vmem:[%s1 + $0x80] sm:$0xf]
  %v50 = vld [vmem:[%s1 + $0x84] sm:$0xf]
  %v51 = vld [vmem:[%s1 + $0x88] sm:$0xf]
  %v52 = vld [vmem:[%s1 + $0x8c] sm:$0xf]
  %v53 = vld [vmem:[%s2] sm:$0xff]
  %55 = vset.pattern.permute.xlu0 0
  %56 = vperm.xlu0 %55, %v53
  %v57 = vpop.permute.xlu0 %56
  %v61 = vunpack.c.l.b16 %v15
  %v62 = vunpack.c.h.b16 %v15
  %v63 = vunpack.c.l.b16 %v16
  %v64 = vpack.c.b16 %v61, %v61
  %v65 = vpack.c.b16 %v62, %v62
  %v66 = vpack.c.b16 %v63, %v63
  %v105 = vunpack.c.l.b16 %v17
  %v106 = vunpack.c.l.b16 %v18
  %v107 = vunpack.c.l.b16 %v19
  %v108 = vunpack.c.l.b16 %v20
  %v109 = vunpack.c.l.b16 %v21
  %v110 = vunpack.c.l.b16 %v22
  %v111 = vunpack.c.l.b16 %v23
  %v112 = vunpack.c.l.b16 %v24
  %v113 = vunpack.c.l.b16 %v25
  %v114 = vunpack.c.l.b16 %v26
  %v115 = vunpack.c.l.b16 %v27
  %v116 = vunpack.c.l.b16 %v28
  %v117 = vunpack.c.l.b16 %v29
  %v118 = vunpack.c.l.b16 %v30
  %v119 = vunpack.c.l.b16 %v31
  %v120 = vunpack.c.l.b16 %v32
  %v121 = vunpack.c.l.b16 %v33
  %v122 = vunpack.c.l.b16 %v34
  %v123 = vunpack.c.l.b16 %v35
  %v124 = vunpack.c.l.b16 %v36
  %v125 = vunpack.c.l.b16 %v37
  %v126 = vunpack.c.l.b16 %v38
  %v127 = vunpack.c.l.b16 %v39
  %v128 = vunpack.c.l.b16 %v40
  %v129 = vunpack.c.l.b16 %v41
  %v130 = vunpack.c.l.b16 %v42
  %v131 = vunpack.c.l.b16 %v43
  %v132 = vunpack.c.l.b16 %v44
  %v133 = vunpack.c.l.b16 %v45
  %v134 = vunpack.c.l.b16 %v46
  %v135 = vunpack.c.l.b16 %v47
  %v136 = vunpack.c.l.b16 %v48
  %v137 = vunpack.c.l.b16 %v49
  %v138 = vunpack.c.l.b16 %v50
  %v139 = vunpack.c.l.b16 %v51
  %v140 = vunpack.c.l.b16 %v52
  %v141 = vpack.c.b16 %v106, %v105
  %v142 = vpack.c.b16 %v108, %v107
  %v143 = vpack.c.b16 %v110, %v109
  %v144 = vpack.c.b16 %v112, %v111
  %v145 = vpack.c.b16 %v114, %v113
  %v146 = vpack.c.b16 %v116, %v115
  %v147 = vpack.c.b16 %v118, %v117
  %v148 = vpack.c.b16 %v120, %v119
  %v149 = vpack.c.b16 %v122, %v121
  %v150 = vpack.c.b16 %v124, %v123
  %v151 = vpack.c.b16 %v126, %v125
  %v152 = vpack.c.b16 %v128, %v127
  %v153 = vpack.c.b16 %v130, %v129
  %v154 = vpack.c.b16 %v132, %v131
  %v155 = vpack.c.b16 %v134, %v133
  %v156 = vpack.c.b16 %v136, %v135
  %v157 = vpack.c.b16 %v138, %v137
  %v158 = vpack.c.b16 %v140, %v139
  %vm177 = vcmask 261120
  %v179 = vsel %vm177, %v66, 0
  %181 = vmatpush.bf16.msra.mxu0 %v148
  %182 = vmatpush.bf16.msra.mxu0 %v147
  %183 = vmatpush.bf16.msra.mxu0 %v146
  %184 = vmatpush.bf16.msra.mxu0 %v145
  %185 = vmatpush.bf16.msra.mxu0 %v144
  %186 = vmatpush.bf16.msra.mxu0 %v143
  %187 = vmatpush.bf16.msra.mxu0 %v142
  %188 = vmatpush.bf16.msra.mxu0 %v141
  %189 = vmatmul.bf16.gmra.mxu0 %v64
  %v190 = vpop.f32.mrf.mxu0
  %v191 = vadd.f32 %v57, %v190
  %v192 = vpop.f32.mrf.mxu0
  %193 = vdwg.mxu0
  %194 = vmatpush.bf16.msra.mxu0 %v156
  %195 = vmatpush.bf16.msra.mxu0 %v155
  %196 = vmatpush.bf16.msra.mxu0 %v154
  %197 = vmatpush.bf16.msra.mxu0 %v153
  %198 = vmatpush.bf16.msra.mxu0 %v152
  %199 = vmatpush.bf16.msra.mxu0 %v151
  %200 = vmatpush.bf16.msra.mxu0 %v150
  %201 = vmatpush.bf16.msra.mxu0 %v149
  %202 = vmatmul.bf16.gmra.mxu0 %v65
  %v203 = vpop.f32.mrf.mxu0
  %v204 = vadd.f32 %v191, %v203
  %v205 = vpop.f32.mrf.mxu0
  %206 = vdwg.mxu0
  %207 = vmatpush.bf16.msra.mxu0 0
  %208 = vmatpush.bf16.msra.mxu0 0
  %209 = vmatpush.bf16.msra.mxu0 0
  %210 = vmatpush.bf16.msra.mxu0 0
  %211 = vmatpush.bf16.msra.mxu0 0
  %212 = vmatpush.bf16.msra.mxu0 0
  %213 = vmatpush.bf16.msra.mxu0 %v158
  %214 = vmatpush.bf16.msra.mxu0 %v157
  %215 = vmatmul.bf16.gmra.mxu0 %v179
  %v216 = vpop.f32.mrf.mxu0
  %v217 = vadd.f32 %v204, %v216
  %v218 = vpop.f32.mrf.mxu0
  %219 = vdwg.mxu0
  %220 = vst [vmem:[%s3] sm:$0xff] %v217
  // Predicated region
  $region14: #{_lambda_.259} parent=0 // pred_check
    _
  $region15: #{_lambda_.259} parent=0 // pred_check_branch
    %222 = sbr.rel (0) target = $region17
  $region16: #{_lambda_.259} parent=0 // pred_region
    _
  $region17: #{_lambda_.259} parent=0 // pred_fallthru
    _
  // Predicated region
  $region18: #{_lambda_.259} parent=0 // pred_check
    _
  $region19: #{_lambda_.259} parent=0 // pred_check_branch
    %224 = sbr.rel (0) target = $region21
  $region20: #{_lambda_.259} parent=0 // pred_region
    _
  $region21: #{_lambda_.259} parent=0 // pred_fallthru
    _

</llo_original>
